<compile_context>
chip_gen: v6e
topology: v6e:2x2x1
jax: 0.10.0
libtpu: 0.0.40
codegen_flags: <defaults>
</compile_context>

<pallas_src>
import jax
import jax.numpy as jnp
from jax.experimental import pallas as pl
from jax.experimental.pallas import tpu as pltpu

NEG_SLOPE = 0.01     # nn.LeakyReLU() default negative_slope


# ----------------------------- conv helper ------------------------------------

def _conv3x3(src, w_ref, rows, cols, cin, cout):
    """3x3 'same' convolution over a zero-padded (rows+2, cols+2, cin) window.

    `src` may be a VMEM ref or an in-register array.  Returns (rows*cols, cout)
    in float32 (MXU accumulation dtype).
    """
    m = rows * cols
    if cin < 128:
        # Fold the 9 taps into K = 9*cin (fills the MXU K dim for small C) and do
        # ONE 2D matmul with M = rows*cols.
        taps = [src[i:i + rows, j:j + cols, :] for i in range(3) for j in range(3)]
        p = jnp.concatenate(taps, axis=-1).reshape(m, 9 * cin)
        return jnp.dot(p, w_ref[...], preferred_element_type=jnp.float32)
    # C >= 128: per-tap K = C already fills the MXU; accumulate 9 dots and keep the
    # live activation footprint ~1/9 of the im2col form (no lane-axis concat).
    acc = jnp.zeros((m, cout), jnp.float32)
    tap_idx = 0
    for i in range(3):
        for j in range(3):
            tap = src[i:i + rows, j:j + cols, :].reshape(m, cin)
            acc = acc + jnp.dot(tap, w_ref[tap_idx * cin:(tap_idx + 1) * cin, :],
                                preferred_element_type=jnp.float32)
            tap_idx += 1
    return acc


# ----------------------------- Pallas kernel ----------------------------------

def _resblock_kernel(x_ref, w1_ref, b1_ref, w2_ref, b2_ref, out_ref, xpad_ref):
    # x_ref   : (H, W, Cin)        unpadded image of this batch element (VMEM resident)
    # w1_ref  : (9*Cin, Cout)      conv1 weights, taps folded into K
    # b1_ref  : (1, Cout)          f32
    # w2_ref  : (9*Cout, Cout)     conv2 weights, taps folded into K
    # b2_ref  : (1, Cout)          f32
    # out_ref : (TH, W, Cout)
    # xpad_ref: (TH+4, W+4, Cin)   VMEM staging window (zero-padded input rows/cols)
    th, w, cout = out_ref.shape
    hh, _, cin = x_ref.shape
    cdt = xpad_ref.dtype
    n_t = hh // th                       # static
    t = pl.program_id(1)
    row0 = pl.multiple_of(t * th, th)    # first output row of this tile

    # ---- Build the zero-padded input window in VMEM (pad=2: conv1's own padding
    #      plus one extra ring so conv2's halo rows of conv1 output can be computed
    #      from the same window).  Only the halo strips are zeroed; the interior is
    #      fully rewritten every step, so the scratch carries no state across grid
    #      iterations (both grid axes are legally "parallel").
    zcol = jnp.zeros((th + 4, 2, cin), cdt)
    zrow = jnp.zeros((2, w + 4, cin), cdt)
    xpad_ref[:, 0:2, :] = zcol
    xpad_ref[:, w + 2:w + 4, :] = zcol
    if n_t == 1:
        xpad_ref[0:2, :, :] = zrow
        xpad_ref[th + 2:th + 4, :, :] = zrow
        xpad_ref[2:2 + th, 2:2 + w, :] = x_ref[...].astype(cdt)
    else:
        @pl.when(t == 0)
        def _():                                                   # top image edge
            xpad_ref[0:2, :, :] = zrow
            xpad_ref[2:th + 4, 2:2 + w, :] = x_ref[pl.ds(0, th + 2), :, :].astype(cdt)

        @pl.when(t == n_t - 1)
        def _():                                                   # bottom image edge
            xpad_ref[th + 2:th + 4, :, :] = zrow
            xpad_ref[0:th + 2, 2:2 + w, :] = (
                x_ref[pl.ds(row0 - 2, th + 2), :, :].astype(cdt))

        if n_t > 2:
            @pl.when(jnp.logical_and(t > 0, t < n_t - 1))
            def _():                                               # interior tile
                xpad_ref[:, 2:2 + w, :] = (
                    x_ref[pl.ds(row0 - 2, th + 4), :, :].astype(cdt))

    # ---- conv1 over a (th+2, w+2) window: the tile's output rows/cols plus the
    #      one-element halo that conv2 needs.  Single 2D MXU contraction.
    r1, c1 = th + 2, w + 2
    y1 = _conv3x3(xpad_ref, w1_ref, r1, c1, cin, cout)        # (r1*c1, cout) f32
    y1 = y1 + b1_ref[...]
    y1 = jnp.where(y1 >= 0, y1, NEG_SLOPE * y1)               # LeakyReLU
    y1 = y1.reshape(r1, c1, cout)

    # conv2 zero-pads conv1's *output*: window positions that fall outside the image
    # must be exactly zero, not conv1 evaluated past the boundary.
    ridx = jax.lax.broadcasted_iota(jnp.int32, (r1, c1, 1), 0)
    cidx = jax.lax.broadcasted_iota(jnp.int32, (r1, c1, 1), 1)
    grow = row0 - 1 + ridx                                    # global conv1-output row
    valid = (grow >= 0) & (grow < hh) & (cidx >= 1) & (cidx <= w)
    y1 = jnp.where(valid, y1, 0.0).astype(cdt)

    # ---- conv2 + bias + residual; the intermediate never touches HBM or scratch.
    y2 = _conv3x3(y1, w2_ref, th, w, cout, cout)              # (th*w, cout) f32
    y2 = y2.reshape(th, w, cout) + b2_ref[...]
    y2 = y2 + x_ref[pl.ds(row0, th), :, :].astype(jnp.float32)   # residual, f32 add
    out_ref[...] = y2.astype(out_ref.dtype)


# ------------------------------- wrappers --------------------------------------

def _vmem_limit_bytes():
    """Generation-aware VMEM budget: ~3/4 of physical (≈96 MiB on 128 MiB v5e/v6e,
    ≈48 MiB on 64 MiB v7x), with a conservative fallback if the query fails."""
    try:
        cap = int(pltpu.get_tpu_info().vmem_capacity_bytes)
    except Exception:
        cap = 64 * 1024 * 1024
    return max(32 * 1024 * 1024, min(cap * 3 // 4, 100 * 1024 * 1024))


def _pick_tile_h(h, w, c_in, c_out, itemsize, vmem_budget):
    """Budget-driven row-tile: grow th (a divisor of H) until the flattened MXU M
    dim and the per-step output tile are comfortably large, while the per-step
    working set stays well inside the VMEM budget."""
    divisors = [d for d in range(2, h + 1) if h % d == 0] or [h]
    chosen = divisors[0]
    for th in divisors:
        m1 = (th + 2) * (w + 2)
        k1 = 9 * c_in if c_in < 128 else c_in
        k2 = 9 * c_out if c_out < 128 else c_out
        work = ((th + 4) * (w + 4) * c_in * itemsize            # padded input window
                + m1 * (k1 * itemsize + c_out * 4)              # conv1 taps + f32 out
                + th * w * (k2 * itemsize + c_out * 4)          # conv2 taps + f32 out
                + 2 * th * w * (c_in + c_out) * itemsize)       # pipelined I/O tiles
        if th != chosen and work > vmem_budget // 3:
            break
        chosen = th
        if m1 >= 512 and th * w * c_out * itemsize >= (1 << 20):
            break
    return chosen


def resblock_forward_nhwc(x_nhwc, w1, b1, w2, b2, *, tile_h=None,
                          compute_dtype=jnp.bfloat16):
    """Fused ResBlock on NHWC input. w*: (3,3,Cin,Cout) HWIO, b*: (Cout,).

    compute_dtype=bfloat16 (default) halves VMEM/MXU input bytes with f32
    accumulation; pass jnp.float32 for reference-accurate (≈1e-4) results.
    The input is NOT copied/cast on the host: casting happens in-kernel, so the
    only HBM streams are one read of x and one write of the output."""
    n, h, w, cin = x_nhwc.shape
    kh, kw, wcin, cout = w1.shape
    assert (kh, kw) == (3, 3) and wcin == cin
    assert w2.shape == (3, 3, cout, cout)
    assert cin == cout, "residual add requires in_channels == out_channels"

    compute_dtype = jnp.dtype(compute_dtype)
    vmem_limit = _vmem_limit_bytes()
    th = tile_h if tile_h is not None else _pick_tile_h(
        h, w, cin, cout, compute_dtype.itemsize, vmem_limit)
    if th != h and th < 2:        # row tiling needs >=2 rows per tile
        th = h
    assert h % th == 0, "tile_h must divide H"

    # Weights: taps folded into K on the host (tiny). Biases stay f32.
    w1f = w1.reshape(9 * cin, cout).astype(compute_dtype)
    w2f = w2.reshape(9 * cout, cout).astype(compute_dtype)
    b1r = b1.reshape(1, cout).astype(jnp.float32)
    b2r = b2.reshape(1, cout).astype(jnp.float32)

    grid = (n, h // th)
    return pl.pallas_call(
        _resblock_kernel,
        grid=grid,
        in_specs=[
            # Unpadded image, resident per batch element (constant index across t,
            # so it is fetched once per image, not per row tile).
            pl.BlockSpec((None, h, w, cin), lambda b, t: (b, 0, 0, 0)),
            # Weights / biases: constant index_map -> stay resident in VMEM.
            pl.BlockSpec((9 * cin, cout), lambda b, t: (0, 0)),
            pl.BlockSpec((1, cout), lambda b, t: (0, 0)),
            pl.BlockSpec((9 * cout, cout), lambda b, t: (0, 0)),
            pl.BlockSpec((1, cout), lambda b, t: (0, 0)),
        ],
        out_specs=pl.BlockSpec((None, th, w, cout), lambda b, t: (b, t, 0, 0)),
        out_shape=jax.ShapeDtypeStruct((n, h, w, cout), x_nhwc.dtype),
        scratch_shapes=[pltpu.VMEM((th + 4, w + 4, cin), compute_dtype)],
        compiler_params=pltpu.CompilerParams(
            # Row tiles are independent (each builds its own halo), so both axes
            # are parallel -> a v7x megacore splits work even at batch == 1.
            dimension_semantics=("parallel", "parallel"),
            vmem_limit_bytes=vmem_limit,
        ),
    )(x_nhwc, w1f, b1r, w2f, b2r)


def resblock_forward(x_nchw, w1, b1, w2, b2, **kwargs):
    """PyTorch-layout entry point (NCHW).  NHWC-native callers should use
    resblock_forward_nhwc directly and skip both transposes."""
    x = jnp.transpose(x_nchw, (0, 2, 3, 1))
    y = resblock_forward_nhwc(x, w1, b1, w2, b2, **kwargs)
    return jnp.transpose(y, (0, 3, 1, 2))


# --------------------------- pure-JAX reference --------------------------------

def resblock_ref(x_nchw, w1, b1, w2, b2):
    dn = ('NCHW', 'HWIO', 'NCHW')
    pad = [(1, 1), (1, 1)]
    hi = jax.lax.Precision.HIGHEST
    y = jax.lax.conv_general_dilated(x_nchw, w1, (1, 1), pad,
                                     dimension_numbers=dn, precision=hi)
    y = y + b1.reshape(1, -1, 1, 1)
    y = jnp.where(y >= 0, y, NEG_SLOPE * y)
    y = jax.lax.conv_general_dilated(y, w2, (1, 1), pad,
                                     dimension_numbers=dn, precision=hi)
    y = y + b2.reshape(1, -1, 1, 1)
    return y + x_nchw


# ---------------------------------- main ---------------------------------------

if __name__ == "__main__":
    def make_params(key, c, scale=0.1):
        kw1, kb1, kw2, kb2 = jax.random.split(key, 4)
        w1 = scale * jax.random.normal(kw1, (3, 3, c, c), jnp.float32)
        b1 = scale * jax.random.normal(kb1, (c,), jnp.float32)
        w2 = scale * jax.random.normal(kw2, (3, 3, c, c), jnp.float32)
        b2 = scale * jax.random.normal(kb2, (c,), jnp.float32)
        return w1, b1, w2, b2

    def check(x, params, tol, **kw):
        out = jax.block_until_ready(resblock_forward(x, *params, **kw))
        ref = resblock_ref(x, *params)
        assert out.shape == x.shape, (out.shape, x.shape)
        err = float(jnp.max(jnp.abs(out - ref)))
        assert err < tol, f"max abs error {err} (tol {tol}, kwargs {kw})"

    key = jax.random.PRNGKey(0)
    kx1, kx2, kx3, kp1, kp2, kp3 = jax.random.split(key, 6)

    # 1) Small channels (folded K=9C path), two row tiles -> top/bottom halo logic.
    x1 = jax.random.normal(kx1, (2, 4, 16, 16), jnp.float32)
    p1 = make_params(kp1, 4)
    check(x1, p1, 1e-4, tile_h=8, compute_dtype=jnp.float32)
    check(x1, p1, 0.3, tile_h=8)                      # default bf16 compute mode

    # 2) Four row tiles -> interior-tile halo path; plus default (budget) tiling.
    x2 = jax.random.normal(kx2, (1, 4, 32, 16), jnp.float32)
    p2 = make_params(kp2, 4)
    check(x2, p2, 1e-4, tile_h=8, compute_dtype=jnp.float32)
    check(x2, p2, 1e-4, compute_dtype=jnp.float32)    # picker -> single row tile

    # 3) C=128 -> per-tap accumulation path (K=C fills the MXU, no im2col concat).
    x3 = jax.random.normal(kx3, (1, 128, 8, 8), jnp.float32)
    p3 = make_params(kp3, 128, scale=0.02)
    check(x3, p3, 2e-3, compute_dtype=jnp.float32)
    check(x3, p3, 0.3)                                 # default bf16 compute mode

    print("KERNEL_OK")
</pallas_src>

<mosaic_0001>
module attributes {stable_mosaic.version = 11 : i64} {
  func.func @_resblock_kernel(%arg0: i32, %arg1: i32, %arg2: memref<1x16x16x4xf32, #tpu.memory_space<vmem>>, %arg3: memref<36x4xf32, #tpu.memory_space<vmem>>, %arg4: memref<1x4xf32, #tpu.memory_space<vmem>>, %arg5: memref<36x4xf32, #tpu.memory_space<vmem>>, %arg6: memref<1x4xf32, #tpu.memory_space<vmem>>, %arg7: memref<1x8x16x4xf32, #tpu.memory_space<vmem>>, %arg8: memref<12x20x4xf32, #tpu.memory_space<vmem>>) attributes {dimension_semantics = [#tpu.dimension_semantics<parallel>, #tpu.dimension_semantics<parallel>], iteration_bounds = array<i64: 2, 2>, scalar_prefetch = 0 : i64, scratch_operands = 1 : i64, tpu.core_type = #tpu.core_type<tc>, window_params = [{transform_indices = @transform_0, window_bounds = array<i64: 1, 16, 16, 4>}, {pipeline_mode = #tpu.pipeline_mode<synchronous>, transform_indices = @transform_1, window_bounds = array<i64: 36, 4>}, {pipeline_mode = #tpu.pipeline_mode<synchronous>, transform_indices = @transform_2, window_bounds = array<i64: 1, 4>}, {pipeline_mode = #tpu.pipeline_mode<synchronous>, transform_indices = @transform_3, window_bounds = array<i64: 36, 4>}, {pipeline_mode = #tpu.pipeline_mode<synchronous>, transform_indices = @transform_4, window_bounds = array<i64: 1, 4>}, {transform_indices = @transform_5, window_bounds = array<i64: 1, 8, 16, 4>}]} {
    %c8_i32 = arith.constant 8 : i32
    %0 = arith.muli %arg1, %c8_i32 : i32
    %1 = tpu.assume_multiple %0, 8 : i32
    %cst = arith.constant 0.000000e+00 : f32
    %2 = vector.broadcast %cst : f32 to vector<12x2x4xf32>
    %cst_0 = arith.constant 0.000000e+00 : f32
    %3 = vector.broadcast %cst_0 : f32 to vector<2x20x4xf32>
    %c0 = arith.constant 0 : index
    %c0_1 = arith.constant 0 : index
    %c0_2 = arith.constant 0 : index
    %4 = vector.load %arg8[%c0, %c0_1, %c0_2] : memref<12x20x4xf32, #tpu.memory_space<vmem>>, vector<12x2x4xf32>
    tpu.vector_store %arg8[%c0, %c0_1, %c0_2], %2 {strides = array<i32>} : memref<12x20x4xf32, #tpu.memory_space<vmem>>, vector<12x2x4xf32>,
    %c0_3 = arith.constant 0 : index
    %c18 = arith.constant 18 : index
    %c0_4 = arith.constant 0 : index
    %5 = vector.load %arg8[%c0_3, %c18, %c0_4] : memref<12x20x4xf32, #tpu.memory_space<vmem>>, vector<12x2x4xf32>
    tpu.vector_store %arg8[%c0_3, %c18, %c0_4], %2 {strides = array<i32>} : memref<12x20x4xf32, #tpu.memory_space<vmem>>, vector<12x2x4xf32>,
    %c0_i32 = arith.constant 0 : i32
    %6 = arith.cmpi eq, %arg1, %c0_i32 : i32
    %7 = arith.extui %6 : i1 to i32
    %c0_i32_5 = arith.constant 0 : i32
    %8 = arith.cmpi ne, %7, %c0_i32_5 : i32
    scf.if %8 {
      %c0_56 = arith.constant 0 : index
      %c0_57 = arith.constant 0 : index
      %c0_58 = arith.constant 0 : index
      %79 = vector.load %arg8[%c0_56, %c0_57, %c0_58] : memref<12x20x4xf32, #tpu.memory_space<vmem>>, vector<2x20x4xf32>
      tpu.vector_store %arg8[%c0_56, %c0_57, %c0_58], %3 {strides = array<i32>} : memref<12x20x4xf32, #tpu.memory_space<vmem>>, vector<2x20x4xf32>,
      %c0_59 = arith.constant 0 : index
      %c0_60 = arith.constant 0 : index
      %c0_61 = arith.constant 0 : index
      %c0_62 = arith.constant 0 : index
      %80 = vector.load %arg2[%c0_59, %c0_60, %c0_61, %c0_62] : memref<1x16x16x4xf32, #tpu.memory_space<vmem>>, vector<1x10x16x4xf32>
      %81 = vector.shape_cast %80 : vector<1x10x16x4xf32> to vector<10x16x4xf32>
      %c2_63 = arith.constant 2 : index
      %c2_64 = arith.constant 2 : index
      %c0_65 = arith.constant 0 : index
      %82 = vector.load %arg8[%c2_63, %c2_64, %c0_65] : memref<12x20x4xf32, #tpu.memory_space<vmem>>, vector<10x16x4xf32>
      tpu.vector_store %arg8[%c2_63, %c2_64, %c0_65], %81 {strides = array<i32>} : memref<12x20x4xf32, #tpu.memory_space<vmem>>, vector<10x16x4xf32>,
    } else {
    }
    %c1_i32 = arith.constant 1 : i32
    %9 = arith.cmpi eq, %arg1, %c1_i32 : i32
    %10 = arith.extui %9 : i1 to i32
    %c0_i32_6 = arith.constant 0 : i32
    %11 = arith.cmpi ne, %10, %c0_i32_6 : i32
    scf.if %11 {
      %c10 = arith.constant 10 : index
      %c0_56 = arith.constant 0 : index
      %c0_57 = arith.constant 0 : index
      %79 = vector.load %arg8[%c10, %c0_56, %c0_57] : memref<12x20x4xf32, #tpu.memory_space<vmem>>, vector<2x20x4xf32>
      tpu.vector_store %arg8[%c10, %c0_56, %c0_57], %3 {strides = array<i32>} : memref<12x20x4xf32, #tpu.memory_space<vmem>>, vector<2x20x4xf32>,
      %c2_i32 = arith.constant 2 : i32
      %80 = arith.subi %1, %c2_i32 : i32
      %c0_58 = arith.constant 0 : index
      %81 = arith.index_cast %80 : i32 to index
      %c0_59 = arith.constant 0 : index
      %c0_60 = arith.constant 0 : index
      %82 = vector.load %arg2[%c0_58, %81, %c0_59, %c0_60] : memref<1x16x16x4xf32, #tpu.memory_space<vmem>>, vector<1x10x16x4xf32>
      %83 = vector.shape_cast %82 : vector<1x10x16x4xf32> to vector<10x16x4xf32>
      %c0_61 = arith.constant 0 : index
      %c2_62 = arith.constant 2 : index
      %c0_63 = arith.constant 0 : index
      %84 = vector.load %arg8[%c0_61, %c2_62, %c0_63] : memref<12x20x4xf32, #tpu.memory_space<vmem>>, vector<10x16x4xf32>
      tpu.vector_store %arg8[%c0_61, %c2_62, %c0_63], %83 {strides = array<i32>} : memref<12x20x4xf32, #tpu.memory_space<vmem>>, vector<10x16x4xf32>,
    } else {
    }
    %c0_7 = arith.constant 0 : index
    %c0_8 = arith.constant 0 : index
    %c0_9 = arith.constant 0 : index
    %12 = vector.load %arg8[%c0_7, %c0_8, %c0_9] : memref<12x20x4xf32, #tpu.memory_space<vmem>>, vector<10x18x4xf32>
    %c0_10 = arith.constant 0 : index
    %c1 = arith.constant 1 : index
    %c0_11 = arith.constant 0 : index
    %13 = vector.load %arg8[%c0_10, %c1, %c0_11] : memref<12x20x4xf32, #tpu.memory_space<vmem>>, vector<10x18x4xf32>
    %c0_12 = arith.constant 0 : index
    %c2 = arith.constant 2 : index
    %c0_13 = arith.constant 0 : index
    %14 = vector.load %arg8[%c0_12, %c2, %c0_13] : memref<12x20x4xf32, #tpu.memory_space<vmem>>, vector<10x18x4xf32>
    %c1_14 = arith.constant 1 : index
    %c0_15 = arith.constant 0 : index
    %c0_16 = arith.constant 0 : index
    %15 = vector.load %arg8[%c1_14, %c0_15, %c0_16] : memref<12x20x4xf32, #tpu.memory_space<vmem>>, vector<10x18x4xf32>
    %c1_17 = arith.constant 1 : index
    %c1_18 = arith.constant 1 : index
    %c0_19 = arith.constant 0 : index
    %16 = vector.load %arg8[%c1_17, %c1_18, %c0_19] : memref<12x20x4xf32, #tpu.memory_space<vmem>>, vector<10x18x4xf32>
    %c1_20 = arith.constant 1 : index
    %c2_21 = arith.constant 2 : index
    %c0_22 = arith.constant 0 : index
    %17 = vector.load %arg8[%c1_20, %c2_21, %c0_22] : memref<12x20x4xf32, #tpu.memory_space<vmem>>, vector<10x18x4xf32>
    %c2_23 = arith.constant 2 : index
    %c0_24 = arith.constant 0 : index
    %c0_25 = arith.constant 0 : index
    %18 = vector.load %arg8[%c2_23, %c0_24, %c0_25] : memref<12x20x4xf32, #tpu.memory_space<vmem>>, vector<10x18x4xf32>
    %c2_26 = arith.constant 2 : index
    %c1_27 = arith.constant 1 : index
    %c0_28 = arith.constant 0 : index
    %19 = vector.load %arg8[%c2_26, %c1_27, %c0_28] : memref<12x20x4xf32, #tpu.memory_space<vmem>>, vector<10x18x4xf32>
    %c2_29 = arith.constant 2 : index
    %c2_30 = arith.constant 2 : index
    %c0_31 = arith.constant 0 : index
    %20 = vector.load %arg8[%c2_29, %c2_30, %c0_31] : memref<12x20x4xf32, #tpu.memory_space<vmem>>, vector<10x18x4xf32>
    %21 = tpu.concatenate %12, %13, %14, %15, %16, %17, %18, %19, %20 in 2 : vector<10x18x4xf32>, vector<10x18x4xf32>, vector<10x18x4xf32>, vector<10x18x4xf32>, vector<10x18x4xf32>, vector<10x18x4xf32>, vector<10x18x4xf32>, vector<10x18x4xf32>, vector<10x18x4xf32> -> vector<10x18x36xf32>
    %22 = vector.shape_cast %21 : vector<10x18x36xf32> to vector<180x36xf32>
    %c0_32 = arith.constant 0 : index
    %c0_33 = arith.constant 0 : index
    %23 = vector.load %arg3[%c0_32, %c0_33] : memref<36x4xf32, #tpu.memory_space<vmem>>, vector<36x4xf32>
    %cst_34 = arith.constant dense<0.000000e+00> : vector<180x4xf32>
    %24 = tpu.matmul %22, %23, %cst_34 {dimension_numbers = #tpu.dot_dimension_numbers<[1], [0], [0], [1], [0, 0, 1, 1], [], []>} : vector<180x36xf32>, vector<36x4xf32>, vector<180x4xf32> -> vector<180x4xf32>
    %c0_35 = arith.constant 0 : index
    %c0_36 = arith.constant 0 : index
    %25 = vector.load %arg4[%c0_35, %c0_36] : memref<1x4xf32, #tpu.memory_space<vmem>>, vector<1x4xf32>
    %26 = vector.broadcast %25 : vector<1x4xf32> to vector<180x4xf32>
    %27 = arith.addf %24, %26 : vector<180x4xf32>
    %cst_37 = arith.constant 0.000000e+00 : f32
    %28 = vector.broadcast %cst_37 : f32 to vector<180x4xf32>
    %29 = arith.cmpf oge, %27, %28 : vector<180x4xf32>
    %cst_38 = arith.constant 0.00999999977 : f32
    %30 = vector.broadcast %cst_38 : f32 to vector<180x4xf32>
    %31 = arith.mulf %30, %27 : vector<180x4xf32>
    %32 = arith.select %29, %27, %31 : vector<180x4xi1>, vector<180x4xf32>
    %33 = vector.shape_cast %32 : vector<180x4xf32> to vector<10x18x4xf32>
    %34 = tpu.iota {dimensions = array<i32: 0>} : vector<10x18x1xi32>
    %35 = tpu.iota {dimensions = array<i32: 1>} : vector<10x18x1xi32>
    %c1_i32_39 = arith.constant 1 : i32
    %36 = arith.subi %1, %c1_i32_39 : i32
    %37 = vector.broadcast %36 : i32 to vector<10x18x1xi32>
    %38 = arith.addi %37, %34 : vector<10x18x1xi32>
    %c0_i32_40 = arith.constant 0 : i32
    %39 = vector.broadcast %c0_i32_40 : i32 to vector<10x18x1xi32>
    %40 = arith.cmpi sge, %38, %39 : vector<10x18x1xi32>
    %c16_i32 = arith.constant 16 : i32
    %41 = vector.broadcast %c16_i32 : i32 to vector<10x18x1xi32>
    %42 = arith.cmpi slt, %38, %41 : vector<10x18x1xi32>
    %43 = arith.andi %40, %42 : vector<10x18x1xi1>
    %c1_i32_41 = arith.constant 1 : i32
    %44 = vector.broadcast %c1_i32_41 : i32 to vector<10x18x1xi32>
    %45 = arith.cmpi sge, %35, %44 : vector<10x18x1xi32>
    %46 = arith.andi %43, %45 : vector<10x18x1xi1>
    %c16_i32_42 = arith.constant 16 : i32
    %47 = vector.broadcast %c16_i32_42 : i32 to vector<10x18x1xi32>
    %48 = arith.cmpi sle, %35, %47 : vector<10x18x1xi32>
    %49 = arith.andi %46, %48 : vector<10x18x1xi1>
    %cst_43 = arith.constant 0.000000e+00 : f32
    %50 = vector.shape_cast %49 : vector<10x18x1xi1> to vector<10x18x1xi1>
    %51 = vector.broadcast %50 : vector<10x18x1xi1> to vector<10x18x4xi1>
    %52 = vector.broadcast %cst_43 : f32 to vector<10x18x4xf32>
    %53 = arith.select %51, %33, %52 : vector<10x18x4xi1>, vector<10x18x4xf32>
    %54 = vector.extract_strided_slice %53 {offsets = [0, 0, 0], sizes = [8, 16, 4], strides = [1, 1, 1]} : vector<10x18x4xf32> to vector<8x16x4xf32>
    %55 = vector.extract_strided_slice %53 {offsets = [0, 1, 0], sizes = [8, 16, 4], strides = [1, 1, 1]} : vector<10x18x4xf32> to vector<8x16x4xf32>
    %56 = vector.extract_strided_slice %53 {offsets = [0, 2, 0], sizes = [8, 16, 4], strides = [1, 1, 1]} : vector<10x18x4xf32> to vector<8x16x4xf32>
    %57 = vector.extract_strided_slice %53 {offsets = [1, 0, 0], sizes = [8, 16, 4], strides = [1, 1, 1]} : vector<10x18x4xf32> to vector<8x16x4xf32>
    %58 = vector.extract_strided_slice %53 {offsets = [1, 1, 0], sizes = [8, 16, 4], strides = [1, 1, 1]} : vector<10x18x4xf32> to vector<8x16x4xf32>
    %59 = vector.extract_strided_slice %53 {offsets = [1, 2, 0], sizes = [8, 16, 4], strides = [1, 1, 1]} : vector<10x18x4xf32> to vector<8x16x4xf32>
    %60 = vector.extract_strided_slice %53 {offsets = [2, 0, 0], sizes = [8, 16, 4], strides = [1, 1, 1]} : vector<10x18x4xf32> to vector<8x16x4xf32>
    %61 = vector.extract_strided_slice %53 {offsets = [2, 1, 0], sizes = [8, 16, 4], strides = [1, 1, 1]} : vector<10x18x4xf32> to vector<8x16x4xf32>
    %62 = vector.extract_strided_slice %53 {offsets = [2, 2, 0], sizes = [8, 16, 4], strides = [1, 1, 1]} : vector<10x18x4xf32> to vector<8x16x4xf32>
    %63 = tpu.concatenate %54, %55, %56, %57, %58, %59, %60, %61, %62 in 2 : vector<8x16x4xf32>, vector<8x16x4xf32>, vector<8x16x4xf32>, vector<8x16x4xf32>, vector<8x16x4xf32>, vector<8x16x4xf32>, vector<8x16x4xf32>, vector<8x16x4xf32>, vector<8x16x4xf32> -> vector<8x16x36xf32>
    %64 = vector.shape_cast %63 : vector<8x16x36xf32> to vector<128x36xf32>
    %c0_44 = arith.constant 0 : index
    %c0_45 = arith.constant 0 : index
    %65 = vector.load %arg5[%c0_44, %c0_45] : memref<36x4xf32, #tpu.memory_space<vmem>>, vector<36x4xf32>
    %cst_46 = arith.constant dense<0.000000e+00> : vector<128x4xf32>
    %66 = tpu.matmul %64, %65, %cst_46 {dimension_numbers = #tpu.dot_dimension_numbers<[1], [0], [0], [1], [0, 0, 1, 1], [], []>} : vector<128x36xf32>, vector<36x4xf32>, vector<128x4xf32> -> vector<128x4xf32>
    %67 = vector.shape_cast %66 : vector<128x4xf32> to vector<8x16x4xf32>
    %c0_47 = arith.constant 0 : index
    %c0_48 = arith.constant 0 : index
    %68 = vector.load %arg6[%c0_47, %c0_48] : memref<1x4xf32, #tpu.memory_space<vmem>>, vector<1x4xf32>
    %69 = vector.shape_cast %68 : vector<1x4xf32> to vector<1x1x4xf32>
    %70 = vector.broadcast %69 : vector<1x1x4xf32> to vector<8x16x4xf32>
    %71 = arith.addf %67, %70 : vector<8x16x4xf32>
    %c0_49 = arith.constant 0 : index
    %72 = arith.index_cast %1 : i32 to index
    %c0_50 = arith.constant 0 : index
    %c0_51 = arith.constant 0 : index
    %73 = vector.load %arg2[%c0_49, %72, %c0_50, %c0_51] : memref<1x16x16x4xf32, #tpu.memory_space<vmem>>, vector<1x8x16x4xf32>
    %74 = vector.shape_cast %73 : vector<1x8x16x4xf32> to vector<8x16x4xf32>
    %75 = arith.addf %71, %74 : vector<8x16x4xf32>
    %c0_52 = arith.constant 0 : index
    %c0_53 = arith.constant 0 : index
    %c0_54 = arith.constant 0 : index
    %c0_55 = arith.constant 0 : index
    %76 = vector.load %arg7[%c0_52, %c0_53, %c0_54, %c0_55] : memref<1x8x16x4xf32, #tpu.memory_space<vmem>>, vector<1x8x16x4xf32>
    %77 = vector.shape_cast %76 : vector<1x8x16x4xf32> to vector<8x16x4xf32>
    %78 = vector.shape_cast %75 : vector<8x16x4xf32> to vector<1x8x16x4xf32>
    tpu.vector_store %arg7[%c0_52, %c0_53, %c0_54, %c0_55], %78 {strides = array<i32>} : memref<1x8x16x4xf32, #tpu.memory_space<vmem>>, vector<1x8x16x4xf32>,
    return
  }
  func.func @transform_0(%arg0: i32, %arg1: i32) -> (i32, i32, i32, i32) {
    %c0_i32 = arith.constant 0 : i32
    %c0_i32_0 = arith.constant 0 : i32
    %c0_i32_1 = arith.constant 0 : i32
    %c0_i32_2 = arith.constant 0 : i32
    return %arg0, %c0_i32, %c0_i32_0, %c0_i32_1 : i32, i32, i32, i32
  }
  func.func @transform_1(%arg0: i32, %arg1: i32) -> (i32, i32) {
    %c0_i32 = arith.constant 0 : i32
    %c0_i32_0 = arith.constant 0 : i32
    %c0_i32_1 = arith.constant 0 : i32
    return %c0_i32, %c0_i32_0 : i32, i32
  }
  func.func @transform_2(%arg0: i32, %arg1: i32) -> (i32, i32) {
    %c0_i32 = arith.constant 0 : i32
    %c0_i32_0 = arith.constant 0 : i32
    %c0_i32_1 = arith.constant 0 : i32
    return %c0_i32, %c0_i32_0 : i32, i32
  }
  func.func @transform_3(%arg0: i32, %arg1: i32) -> (i32, i32) {
    %c0_i32 = arith.constant 0 : i32
    %c0_i32_0 = arith.constant 0 : i32
    %c0_i32_1 = arith.constant 0 : i32
    return %c0_i32, %c0_i32_0 : i32, i32
  }
  func.func @transform_4(%arg0: i32, %arg1: i32) -> (i32, i32) {
    %c0_i32 = arith.constant 0 : i32
    %c0_i32_0 = arith.constant 0 : i32
    %c0_i32_1 = arith.constant 0 : i32
    return %c0_i32, %c0_i32_0 : i32, i32
  }
  func.func @transform_5(%arg0: i32, %arg1: i32) -> (i32, i32, i32, i32) {
    %c0_i32 = arith.constant 0 : i32
    %c0_i32_0 = arith.constant 0 : i32
    %c0_i32_1 = arith.constant 0 : i32
    return %arg0, %arg1, %c0_i32, %c0_i32_0 : i32, i32, i32, i32
  }
}

</mosaic_0001>

<llo_original>
// kernel: tpu_custom_call.1
$region0: #{tpu_custom_call.1}
  #allocation0 [shape = 'u32[]', space=smem, size = 0x4, offset = 0x4, fixed_abs, tag = 'smem constant byte address 0x4 - core index']
  #allocation1 [shape = 'u32[144,128]{1,0:T(1,128)}', space=vmem, size = 0x12000, scoped, tag = 'internal scratch']
  #allocation2 [shape = 'f32[12,20,4]{2,1,0:T(8,128)}', space=vmem, size = 0x24000, scoped, tag = 'scratch operand']
  %s0 = inlined_call_operand.vmem [shape: f32[2,16,16,4], index: 0, kind: input, shape index: {}]
  %s1 = inlined_call_operand.vmem [shape: f32[36,4], index: 1, kind: input, shape index: {}]
  %s2 = inlined_call_operand.vmem [shape: f32[1,4], index: 2, kind: input, shape index: {}]
  %s3 = inlined_call_operand.vmem [shape: f32[36,4], index: 3, kind: input, shape index: {}]
  %s4 = inlined_call_operand.vmem [shape: f32[1,4], index: 4, kind: input, shape index: {}]
  %s5 = inlined_call_operand.vmem [shape: f32[2,16,16,4], index: 5, kind: output, shape index: {}]
  %s6 = sld [smem:[#allocation0]]
  $region61: #{tpu_custom_call.1} parent=0
    _
  %s8 = ssub.s32 1, %s6
  %s9 = scalar_select 0, %s8, %s6
  loop: start=0, step=1, limit=6
  $region2: #{tpu_custom_call.1} parent=0 // loop_pre_header
    _
  $region3: #{tpu_custom_call.1} parent=0 // loop_header
    %s11 = sphi 0, %s15
    %p12 = scmp.ge.s32.totalorder %s11, 6
    %s18 = sphi 0, %s30
    %s19 = sphi 0, %s26
    %s20 = sphi 0, %s18
    %s21 = sphi 0, %s19
    %s22 = sphi 0, %s20
    %s23 = sphi 0, %s21
    %s33 = sphi 0, %s35
    %s36 = sphi 0, %s33
    %s37 = sphi 0, %s36
    %s53 = sphi 0, %s37
    %s57 = sphi 0, %s57
    %s59 = sphi 0, %s57
    %s60 = sphi 0, %s59
    %s74 = sphi 0, %s60
    %s78 = sphi 0, %s78
    %s80 = sphi 0, %s78
    %s81 = sphi 0, %s80
    %s95 = sphi 0, %s81
    %s99 = sphi 0, %s99
    %s101 = sphi 0, %s99
    %s102 = sphi 0, %s101
    %s116 = sphi 0, %s102
    %s120 = sphi 0, %s120
    %s122 = sphi 0, %s120
    %s123 = sphi 0, %s122
    %s137 = sphi 0, %s123
    %s145 = sphi 0, %s147
    %s148 = sphi 0, %s145
    %s149 = sphi 0, %s148
    %s165 = sphi 0, %s149
  $region4: #{tpu_custom_call.1} parent=0 // loop_header_branch
    %14 = sbr.rel (%p12) target = $region8
  $region5: #{tpu_custom_call.1} parent=0 // loop_body
    %s16 = ssub.s32 %s11, 1
    %s17 = ssub.s32 %s11, 2
    %s24 = sadd.s32 1, %s19
    %p25 = scmp.ge.s32.totalorder %s24, 2
    %s26 = scalar_select %p25, 0, %s24
    %s27 = sadd.s32 1, %s18
    %s28 = scalar_select %p25, %s27, %s18
    %p29 = scmp.ge.s32.totalorder %s28, 2
    %s30 = scalar_select %p29, 0, %s28
    %s31 = ssub.s32 %s18, %s30
    %p32 = scmp.eq.s32.totalorder %s31, 0
    %s34 = sadd.s32 %s33, 1
    %s35 = scalar_select %p32, %s33, %s34
    %p38 = pneg %p32
    %p39 = scmp.eq.s32.totalorder %s11, 3
    %p40 = por %p38, %p39
    %p41 = scmp.ne.s32.totalorder %s33, %s36
    %p42 = scmp.eq.s32.totalorder %s11, 0
    %p43 = por %p41, %p42
    %p44 = scmp.ne.s32.totalorder %s33, %s36
    %p45 = scmp.eq.s32.totalorder %s16, 3
    %p46 = por %p44, %p45
    %p47 = scmp.ne.s32.totalorder %s36, %s37
    %p48 = scmp.eq.s32.totalorder %s16, 0
    %p49 = por %p47, %p48
    %p50 = scmp.ne.s32.totalorder %s36, %s37
    %p51 = scmp.eq.s32.totalorder %s17, 3
    %p52 = por %p50, %p51
    %p54 = scmp.ne.s32.totalorder %s37, %s53
    %p55 = scmp.eq.s32.totalorder %s17, 0
    %p56 = por %p54, %p55
    %s58 = sadd.s32 %s57, 1
    %p61 = scmp.eq.s32.totalorder %s11, 3
    %p62 = scmp.ne.s32.totalorder %s57, %s59
    %p63 = scmp.eq.s32.totalorder %s11, 0
    %p64 = por %p62, %p63
    %p65 = scmp.ne.s32.totalorder %s57, %s59
    %p66 = scmp.eq.s32.totalorder %s16, 3
    %p67 = por %p65, %p66
    %p68 = scmp.ne.s32.totalorder %s59, %s60
    %p69 = scmp.eq.s32.totalorder %s16, 0
    %p70 = por %p68, %p69
    %p71 = scmp.ne.s32.totalorder %s59, %s60
    %p72 = scmp.eq.s32.totalorder %s17, 3
    %p73 = por %p71, %p72
    %p75 = scmp.ne.s32.totalorder %s60, %s74
    %p76 = scmp.eq.s32.totalorder %s17, 0
    %p77 = por %p75, %p76
    %s79 = sadd.s32 %s78, 1
    %p82 = scmp.eq.s32.totalorder %s11, 3
    %p83 = scmp.ne.s32.totalorder %s78, %s80
    %p84 = scmp.eq.s32.totalorder %s11, 0
    %p85 = por %p83, %p84
    %p86 = scmp.ne.s32.totalorder %s78, %s80
    %p87 = scmp.eq.s32.totalorder %s16, 3
    %p88 = por %p86, %p87
    %p89 = scmp.ne.s32.totalorder %s80, %s81
    %p90 = scmp.eq.s32.totalorder %s16, 0
    %p91 = por %p89, %p90
    %p92 = scmp.ne.s32.totalorder %s80, %s81
    %p93 = scmp.eq.s32.totalorder %s17, 3
    %p94 = por %p92, %p93
    %p96 = scmp.ne.s32.totalorder %s81, %s95
    %p97 = scmp.eq.s32.totalorder %s17, 0
    %p98 = por %p96, %p97
    %s100 = sadd.s32 %s99, 1
    %p103 = scmp.eq.s32.totalorder %s11, 3
    %p104 = scmp.ne.s32.totalorder %s99, %s101
    %p105 = scmp.eq.s32.totalorder %s11, 0
    %p106 = por %p104, %p105
    %p107 = scmp.ne.s32.totalorder %s99, %s101
    %p108 = scmp.eq.s32.totalorder %s16, 3
    %p109 = por %p107, %p108
    %p110 = scmp.ne.s32.totalorder %s101, %s102
    %p111 = scmp.eq.s32.totalorder %s16, 0
    %p112 = por %p110, %p111
    %p113 = scmp.ne.s32.totalorder %s101, %s102
    %p114 = scmp.eq.s32.totalorder %s17, 3
    %p115 = por %p113, %p114
    %p117 = scmp.ne.s32.totalorder %s102, %s116
    %p118 = scmp.eq.s32.totalorder %s17, 0
    %p119 = por %p117, %p118
    %s121 = sadd.s32 %s120, 1
    %p124 = scmp.eq.s32.totalorder %s11, 3
    %p125 = scmp.ne.s32.totalorder %s120, %s122
    %p126 = scmp.eq.s32.totalorder %s11, 0
    %p127 = por %p125, %p126
    %p128 = scmp.ne.s32.totalorder %s120, %s122
    %p129 = scmp.eq.s32.totalorder %s16, 3
    %p130 = por %p128, %p129
    %p131 = scmp.ne.s32.totalorder %s122, %s123
    %p132 = scmp.eq.s32.totalorder %s16, 0
    %p133 = por %p131, %p132
    %p134 = scmp.ne.s32.totalorder %s122, %s123
    %p135 = scmp.eq.s32.totalorder %s17, 3
    %p136 = por %p134, %p135
    %p138 = scmp.ne.s32.totalorder %s123, %s137
    %p139 = scmp.eq.s32.totalorder %s17, 0
    %p140 = por %p138, %p139
    %s141 = ssub.s32 %s18, %s30
    %s142 = ssub.s32 %s19, %s26
    %s143 = sor.u32 %s141, %s142
    %p144 = scmp.eq.s32.totalorder %s143, 0
    %s146 = sadd.s32 %s145, 1
    %s147 = scalar_select %p144, %s145, %s146
    %p150 = pneg %p144
    %p151 = scmp.eq.s32.totalorder %s11, 3
    %p152 = por %p150, %p151
    %p153 = scmp.ne.s32.totalorder %s145, %s148
    %p154 = scmp.eq.s32.totalorder %s11, 0
    %p155 = por %p153, %p154
    %p156 = scmp.ne.s32.totalorder %s145, %s148
    %p157 = scmp.eq.s32.totalorder %s16, 3
    %p158 = por %p156, %p157
    %p159 = scmp.ne.s32.totalorder %s148, %s149
    %p160 = scmp.eq.s32.totalorder %s16, 0
    %p161 = por %p159, %p160
    %p162 = scmp.ne.s32.totalorder %s148, %s149
    %p163 = scmp.eq.s32.totalorder %s17, 3
    %p164 = por %p162, %p163
    %p166 = scmp.ne.s32.totalorder %s149, %s165
    %p167 = scmp.eq.s32.totalorder %s17, 0
    %p168 = por %p166, %p167
    %p169 = scmp.le.s32.totalorder 1, %s11
    %p170 = scmp.lt.s32.totalorder %s11, 5
    %p171 = pnand %p169, %p170
    %p172 = pneg %p171
    // Predicated region
    $region9: #{tpu_custom_call.1} parent=5 // pred_check
      _
    $region10: #{tpu_custom_call.1} parent=5 // pred_check_branch
      %174 = sbr.rel (%p171) target = $region12
    $region11: #{tpu_custom_call.1} parent=5 // pred_region
      %s175 = ssub.s32 %s11, 1
      // Predicated region
      $region13: #{tpu_custom_call.1} parent=11 // pred_check
        %p176 = pneg %p70
      $region14: #{tpu_custom_call.1} parent=11 // pred_check_branch
        %178 = sbr.rel (%p176) target = $region16
      $region15: #{tpu_custom_call.1} parent=11 // pred_region
        _
      $region16: #{tpu_custom_call.1} parent=11 // pred_fallthru
        _
      // Predicated region
      $region17: #{tpu_custom_call.1} parent=11 // pred_check
        %p179 = pneg %p91
      $region18: #{tpu_custom_call.1} parent=11 // pred_check_branch
        %181 = sbr.rel (%p179) target = $region20
      $region19: #{tpu_custom_call.1} parent=11 // pred_region
        _
      $region20: #{tpu_custom_call.1} parent=11 // pred_fallthru
        _
      // Predicated region
      $region21: #{tpu_custom_call.1} parent=11 // pred_check
        %p182 = pneg %p112
      $region22: #{tpu_custom_call.1} parent=11 // pred_check_branch
        %184 = sbr.rel (%p182) target = $region24
      $region23: #{tpu_custom_call.1} parent=11 // pred_region
        _
      $region24: #{tpu_custom_call.1} parent=11 // pred_fallthru
        _
      // Predicated region
      $region25: #{tpu_custom_call.1} parent=11 // pred_check
        %p185 = pneg %p133
      $region26: #{tpu_custom_call.1} parent=11 // pred_check_branch
        %187 = sbr.rel (%p185) target = $region28
      $region27: #{tpu_custom_call.1} parent=11 // pred_region
        _
      $region28: #{tpu_custom_call.1} parent=11 // pred_fallthru
        _
    $region12: #{tpu_custom_call.1} parent=5 // pred_fallthru
      _
    %p188 = scmp.lt.s32.totalorder %s11, 4
    // Predicated region
    $region29: #{tpu_custom_call.1} parent=5 // pred_check
      %p189 = pneg %p188
    $region30: #{tpu_custom_call.1} parent=5 // pred_check_branch
      %191 = sbr.rel (%p189) target = $region32
    $region31: #{tpu_custom_call.1} parent=5 // pred_region
      // Predicated region
      $region33: #{tpu_custom_call.1} parent=31 // pred_check
        %p192 = pneg %p43
      $region34: #{tpu_custom_call.1} parent=31 // pred_check_branch
        %194 = sbr.rel (%p192) target = $region36
      $region35: #{tpu_custom_call.1} parent=31 // pred_region
        %p195 = scmp.lt.s32.totalorder %s18, 1
        %s196 = scalar_select %p195, %s18, 1
        %s197 = smul.addr %s196, 32
        %s198 = smul.addr %s197, 8
        %s199 = scalar_lea.vmem %s0, %s198
      $region36: #{tpu_custom_call.1} parent=31 // pred_fallthru
        _
    $region32: #{tpu_custom_call.1} parent=5 // pred_fallthru
      _
    %p200 = scmp.le.s32.totalorder 1, %s11
    %p201 = scmp.lt.s32.totalorder %s11, 5
    %p202 = pnand %p200, %p201
    %p203 = pneg %p202
    // Predicated region
    $region37: #{tpu_custom_call.1} parent=5 // pred_check
      _
    $region38: #{tpu_custom_call.1} parent=5 // pred_check_branch
      %205 = sbr.rel (%p202) target = $region40
    $region39: #{tpu_custom_call.1} parent=5 // pred_region
      %s206 = ssub.s32 %s11, 1
      %p207 = scmp.lt.s32.totalorder %s20, 1
      %s208 = scalar_select %p207, %s20, 1
      %s209 = smul.addr %s208, 32
      %s210 = smul.addr %s209, 8
      %s211 = scalar_lea.vmem %s0, %s210
      %p212 = pneg %p49
      %p213 = pneg %p46
      %p214 = pneg %p70
      %p215 = pneg %p67
      %p216 = pneg %p91
      %p217 = pneg %p88
      %p218 = pneg %p112
      %p219 = pneg %p109
      %p220 = pneg %p133
      %p221 = pneg %p130
      %p222 = pneg %p161
      %p223 = pneg %p158
      %s224 = smul.u32 8, %s21
      %p225 = scmp.lt.s32.totalorder %s20, 1
      %s226 = scalar_select %p225, %s20, 1
      %p227 = scmp.lt.s32.totalorder %s224, 15
      %s228 = scalar_select %p227, %s224, 15
      %s229 = smul.addr %s228, 2
      %s230 = smul.addr %s226, 32
      %s231 = sadd.s32 %s229, %s230
      %s232 = smul.addr %s231, 8
      %s233 = scalar_lea.vmem %s5, %s232
      %p234 = scmp.lt.s32.totalorder %s20, 1
      %s235 = scalar_select %p234, %s20, 1
      %s236 = smul.addr %s235, 32
      %s237 = smul.addr %s236, 8
      %s238 = scalar_lea.vmem %s0, %s237
      %s239 = smul.u32 8, %s21
      %p240 = scmp.lt.s32.totalorder %s20, 1
      %s241 = scalar_select %p240, %s20, 1
      %p242 = scmp.lt.s32.totalorder %s239, 15
      %s243 = scalar_select %p242, %s239, 15
      %s244 = smul.addr %s243, 2
      %s245 = smul.addr %s241, 32
      %s246 = sadd.s32 %s244, %s245
      %s247 = smul.addr %s246, 8
      %s248 = scalar_lea.vmem %s5, %s247
      %s249 = smul.u32 8, %s21
      %s250 = smul.u32 %s21, 8
      %vm251 = vcmask 25600
      %252 = vst.msk [vmem:[#allocation2] sm:$0x3] %vm251, 0.0
      %253 = vst.msk [vmem:[#allocation2 + $0x18] sm:$0x3] %vm251, 0.0
      %254 = vst.msk [vmem:[#allocation2 + $0x30] sm:$0x3] %vm251, 0.0
      %255 = vst.msk [vmem:[#allocation2 + $0x48] sm:$0x3] %vm251, 0.0
      %256 = vst.msk [vmem:[#allocation2 + $0x60] sm:$0x3] %vm251, 0.0
      %257 = vst.msk [vmem:[#allocation2 + $0x78] sm:$0x3] %vm251, 0.0
      %258 = vst.msk [vmem:[#allocation2 + $0x90] sm:$0x3] %vm251, 0.0
      %259 = vst.msk [vmem:[#allocation2 + $0xa8] sm:$0x3] %vm251, 0.0
      %260 = vst.msk [vmem:[#allocation2 + $0xc0] sm:$0x3] %vm251, 0.0
      %261 = vst.msk [vmem:[#allocation2 + $0xd8] sm:$0x3] %vm251, 0.0
      %262 = vst.msk [vmem:[#allocation2 + $0xf0] sm:$0x3] %vm251, 0.0
      %263 = vst.msk [vmem:[#allocation2 + $0x108] sm:$0x3] %vm251, 0.0
      %264 = vst.msk [vmem:[#allocation2 + $0x12] sm:$0x3] %vm251, 0.0
      %265 = vst.msk [vmem:[#allocation2 + $0x2a] sm:$0x3] %vm251, 0.0
      %266 = vst.msk [vmem:[#allocation2 + $0x42] sm:$0x3] %vm251, 0.0
      %267 = vst.msk [vmem:[#allocation2 + $0x5a] sm:$0x3] %vm251, 0.0
      %268 = vst.msk [vmem:[#allocation2 + $0x72] sm:$0x3] %vm251, 0.0
      %269 = vst.msk [vmem:[#allocation2 + $0x8a] sm:$0x3] %vm251, 0.0
      %270 = vst.msk [vmem:[#allocation2 + $0xa2] sm:$0x3] %vm251, 0.0
      %271 = vst.msk [vmem:[#allocation2 + $0xba] sm:$0x3] %vm251, 0.0
      %272 = vst.msk [vmem:[#allocation2 + $0xd2] sm:$0x3] %vm251, 0.0
      %273 = vst.msk [vmem:[#allocation2 + $0xea] sm:$0x3] %vm251, 0.0
      %274 = vst.msk [vmem:[#allocation2 + $0x102] sm:$0x3] %vm251, 0.0
      %275 = vst.msk [vmem:[#allocation2 + $0x11a] sm:$0x3] %vm251, 0.0
      %p276 = scmp.eq.s32.totalorder %s21, 0
      // Predicated region
      $region41: #{tpu_custom_call.1} parent=39 // pred_check
        %p277 = pneg %p276
      $region42: #{tpu_custom_call.1} parent=39 // pred_check_branch
        %279 = sbr.rel (%p277) target = $region44
      $region43: #{tpu_custom_call.1} parent=39 // pred_region
        %vm280 = vcmask 31744
        %281 = vst.msk [vmem:[#allocation2] sm:$0xff] %vm280, 0.0
        %282 = vst.msk [vmem:[#allocation2 + $0x8] sm:$0xff] %vm280, 0.0
        %vm283 = vcmask 27648
        %284 = vst.msk [vmem:[#allocation2 + $0x10] sm:$0xf] %vm283, 0.0
        %285 = vst.msk [vmem:[#allocation2 + $0x18] sm:$0xff] %vm280, 0.0
        %286 = vst.msk [vmem:[#allocation2 + $0x20] sm:$0xff] %vm280, 0.0
        %287 = vst.msk [vmem:[#allocation2 + $0x28] sm:$0xf] %vm283, 0.0
        %v288 = vld [vmem:[%s238] sm:$0xff]
        %v289 = vld [vmem:[%s238 + $0x8] sm:$0xff]
        %v290 = vld [vmem:[%s238 + $0x10] sm:$0xff]
        %v291 = vld [vmem:[%s238 + $0x18] sm:$0xff]
        %v292 = vld [vmem:[%s238 + $0x20] sm:$0xff]
        %v293 = vld [vmem:[%s238 + $0x28] sm:$0xff]
        %v294 = vld [vmem:[%s238 + $0x30] sm:$0xff]
        %v295 = vld [vmem:[%s238 + $0x38] sm:$0xff]
        %v296 = vld [vmem:[%s238 + $0x40] sm:$0xff]
        %v297 = vld [vmem:[%s238 + $0x48] sm:$0xff]
        %v298 = vld [vmem:[%s238 + $0x50] sm:$0xff]
        %v299 = vld [vmem:[%s238 + $0x58] sm:$0xff]
        %v300 = vld [vmem:[%s238 + $0x60] sm:$0xff]
        %v301 = vld [vmem:[%s238 + $0x68] sm:$0xff]
        %v302 = vld [vmem:[%s238 + $0x70] sm:$0xff]
        %v303 = vld [vmem:[%s238 + $0x78] sm:$0xff]
        %v304 = vld [vmem:[%s238 + $0x80] sm:$0xff]
        %v305 = vld [vmem:[%s238 + $0x88] sm:$0xff]
        %v306 = vld [vmem:[%s238 + $0x90] sm:$0xff]
        %v307 = vld [vmem:[%s238 + $0x98] sm:$0xff]
        %s308 = scalar_lea.vmem [#allocation2], 48
        %309 = vst.msk [vmem:[%s308 + $0x2] sm:$0xff] %vm280, %v288
        %310 = vst.msk [vmem:[%s308 + $0xa] sm:$0xff] %vm280, %v289
        %311 = vst.msk [vmem:[%s308 + $0x1a] sm:$0xff] %vm280, %v290
        %312 = vst.msk [vmem:[%s308 + $0x22] sm:$0xff] %vm280, %v291
        %313 = vst.msk [vmem:[%s308 + $0x32] sm:$0xff] %vm280, %v292
        %314 = vst.msk [vmem:[%s308 + $0x3a] sm:$0xff] %vm280, %v293
        %315 = vst.msk [vmem:[%s308 + $0x4a] sm:$0xff] %vm280, %v294
        %316 = vst.msk [vmem:[%s308 + $0x52] sm:$0xff] %vm280, %v295
        %317 = vst.msk [vmem:[%s308 + $0x62] sm:$0xff] %vm280, %v296
        %318 = vst.msk [vmem:[%s308 + $0x6a] sm:$0xff] %vm280, %v297
        %319 = vst.msk [vmem:[%s308 + $0x7a] sm:$0xff] %vm280, %v298
        %320 = vst.msk [vmem:[%s308 + $0x82] sm:$0xff] %vm280, %v299
        %321 = vst.msk [vmem:[%s308 + $0x92] sm:$0xff] %vm280, %v300
        %322 = vst.msk [vmem:[%s308 + $0x9a] sm:$0xff] %vm280, %v301
        %323 = vst.msk [vmem:[%s308 + $0xaa] sm:$0xff] %vm280, %v302
        %324 = vst.msk [vmem:[%s308 + $0xb2] sm:$0xff] %vm280, %v303
        %325 = vst.msk [vmem:[%s308 + $0xc2] sm:$0xff] %vm280, %v304
        %326 = vst.msk [vmem:[%s308 + $0xca] sm:$0xff] %vm280, %v305
        %327 = vst.msk [vmem:[%s308 + $0xda] sm:$0xff] %vm280, %v306
        %328 = vst.msk [vmem:[%s308 + $0xe2] sm:$0xff] %vm280, %v307
      $region44: #{tpu_custom_call.1} parent=39 // pred_fallthru
        _
      %p329 = scmp.eq.s32.totalorder %s21, 1
      // Predicated region
      $region45: #{tpu_custom_call.1} parent=39 // pred_check
        %p330 = pneg %p329
      $region46: #{tpu_custom_call.1} parent=39 // pred_check_branch
        %332 = sbr.rel (%p330) target = $region48
      $region47: #{tpu_custom_call.1} parent=39 // pred_region
        %s333 = scalar_lea.vmem [#allocation2], 240
        %vm334 = vcmask 31744
        %335 = vst.msk [vmem:[%s333] sm:$0xff] %vm334, 0.0
        %336 = vst.msk [vmem:[%s333 + $0x8] sm:$0xff] %vm334, 0.0
        %vm337 = vcmask 27648
        %338 = vst.msk [vmem:[%s333 + $0x10] sm:$0xf] %vm337, 0.0
        %339 = vst.msk [vmem:[%s333 + $0x18] sm:$0xff] %vm334, 0.0
        %340 = vst.msk [vmem:[%s333 + $0x20] sm:$0xff] %vm334, 0.0
        %341 = vst.msk [vmem:[%s333 + $0x28] sm:$0xf] %vm337, 0.0
        %s342 = ssub.s32 %s250, 2
        %s343 = smul.u32 %s342, 16
        %s344 = scalar_lea.vmem %s238, %s343
        %v345 = vld [vmem:[%s344] sm:$0xff]
        %v346 = vld [vmem:[%s344 + $0x8] sm:$0xff]
        %v347 = vld [vmem:[%s344 + $0x10] sm:$0xff]
        %v348 = vld [vmem:[%s344 + $0x18] sm:$0xff]
        %v349 = vld [vmem:[%s344 + $0x20] sm:$0xff]
        %v350 = vld [vmem:[%s344 + $0x28] sm:$0xff]
        %v351 = vld [vmem:[%s344 + $0x30] sm:$0xff]
        %v352 = vld [vmem:[%s344 + $0x38] sm:$0xff]
        %v353 = vld [vmem:[%s344 + $0x40] sm:$0xff]
        %v354 = vld [vmem:[%s344 + $0x48] sm:$0xff]
        %v355 = vld [vmem:[%s344 + $0x50] sm:$0xff]
        %v356 = vld [vmem:[%s344 + $0x58] sm:$0xff]
        %v357 = vld [vmem:[%s344 + $0x60] sm:$0xff]
        %v358 = vld [vmem:[%s344 + $0x68] sm:$0xff]
        %v359 = vld [vmem:[%s344 + $0x70] sm:$0xff]
        %v360 = vld [vmem:[%s344 + $0x78] sm:$0xff]
        %v361 = vld [vmem:[%s344 + $0x80] sm:$0xff]
        %v362 = vld [vmem:[%s344 + $0x88] sm:$0xff]
        %v363 = vld [vmem:[%s344 + $0x90] sm:$0xff]
        %v364 = vld [vmem:[%s344 + $0x98] sm:$0xff]
        %365 = vst.msk [vmem:[#allocation2 + $0x2] sm:$0xff] %vm334, %v345
        %366 = vst.msk [vmem:[#allocation2 + $0xa] sm:$0xff] %vm334, %v346
        %367 = vst.msk [vmem:[#allocation2 + $0x1a] sm:$0xff] %vm334, %v347
        %368 = vst.msk [vmem:[#allocation2 + $0x22] sm:$0xff] %vm334, %v348
        %369 = vst.msk [vmem:[#allocation2 + $0x32] sm:$0xff] %vm334, %v349
        %370 = vst.msk [vmem:[#allocation2 + $0x3a] sm:$0xff] %vm334, %v350
        %371 = vst.msk [vmem:[#allocation2 + $0x4a] sm:$0xff] %vm334, %v351
        %372 = vst.msk [vmem:[#allocation2 + $0x52] sm:$0xff] %vm334, %v352
        %373 = vst.msk [vmem:[#allocation2 + $0x62] sm:$0xff] %vm334, %v353
        %374 = vst.msk [vmem:[#allocation2 + $0x6a] sm:$0xff] %vm334, %v354
        %375 = vst.msk [vmem:[#allocation2 + $0x7a] sm:$0xff] %vm334, %v355
        %376 = vst.msk [vmem:[#allocation2 + $0x82] sm:$0xff] %vm334, %v356
        %377 = vst.msk [vmem:[#allocation2 + $0x92] sm:$0xff] %vm334, %v357
        %378 = vst.msk [vmem:[#allocation2 + $0x9a] sm:$0xff] %vm334, %v358
        %379 = vst.msk [vmem:[#allocation2 + $0xaa] sm:$0xff] %vm334, %v359
        %380 = vst.msk [vmem:[#allocation2 + $0xb2] sm:$0xff] %vm334, %v360
        %381 = vst.msk [vmem:[#allocation2 + $0xc2] sm:$0xff] %vm334, %v361
        %382 = vst.msk [vmem:[#allocation2 + $0xca] sm:$0xff] %vm334, %v362
        %383 = vst.msk [vmem:[#allocation2 + $0xda] sm:$0xff] %vm334, %v363
        %384 = vst.msk [vmem:[#allocation2 + $0xe2] sm:$0xff] %vm334, %v364
      $region48: #{tpu_custom_call.1} parent=39 // pred_fallthru
        _
      %v385 = vld [vmem:[#allocation2] sm:$0xff]
      %v386 = vld [vmem:[#allocation2 + $0x8] sm:$0xff]
      %v387 = vld [vmem:[#allocation2 + $0x10] sm:$0x3]
      %v388 = vld [vmem:[#allocation2 + $0x18] sm:$0xff]
      %v389 = vld [vmem:[#allocation2 + $0x20] sm:$0xff]
      %v390 = vld [vmem:[#allocation2 + $0x28] sm:$0x3]
      %v391 = vld [vmem:[#allocation2 + $0x30] sm:$0xff]
      %v392 = vld [vmem:[#allocation2 + $0x38] sm:$0xff]
      %v393 = vld [vmem:[#allocation2 + $0x40] sm:$0x3]
      %v394 = vld [vmem:[#allocation2 + $0x48] sm:$0xff]
      %v395 = vld [vmem:[#allocation2 + $0x50] sm:$0xff]
      %v396 = vld [vmem:[#allocation2 + $0x58] sm:$0x3]
      %v397 = vld [vmem:[#allocation2 + $0x60] sm:$0xff]
      %v398 = vld [vmem:[#allocation2 + $0x68] sm:$0xff]
      %v399 = vld [vmem:[#allocation2 + $0x70] sm:$0x3]
      %v400 = vld [vmem:[#allocation2 + $0x78] sm:$0xff]
      %v401 = vld [vmem:[#allocation2 + $0x80] sm:$0xff]
      %v402 = vld [vmem:[#allocation2 + $0x88] sm:$0x3]
      %v403 = vld [vmem:[#allocation2 + $0x90] sm:$0xff]
      %v404 = vld [vmem:[#allocation2 + $0x98] sm:$0xff]
      %v405 = vld [vmem:[#allocation2 + $0xa0] sm:$0x3]
      %v406 = vld [vmem:[#allocation2 + $0xa8] sm:$0xff]
      %v407 = vld [vmem:[#allocation2 + $0xb0] sm:$0xff]
      %v408 = vld [vmem:[#allocation2 + $0xb8] sm:$0x3]
      %v409 = vld [vmem:[#allocation2 + $0xc0] sm:$0xff]
      %v410 = vld [vmem:[#allocation2 + $0xc8] sm:$0xff]
      %v411 = vld [vmem:[#allocation2 + $0xd0] sm:$0x3]
      %v412 = vld [vmem:[#allocation2 + $0xd8] sm:$0xff]
      %v413 = vld [vmem:[#allocation2 + $0xe0] sm:$0xff]
      %v414 = vld [vmem:[#allocation2 + $0xe8] sm:$0x3]
      %v415 = vld [vmem:[#allocation2 + $0x1] sm:$0xff]
      %v416 = vld [vmem:[#allocation2 + $0x9] sm:$0xff]
      %v417 = vld [vmem:[#allocation2 + $0x11] sm:$0x3]
      %v418 = vld [vmem:[#allocation2 + $0x19] sm:$0xff]
      %v419 = vld [vmem:[#allocation2 + $0x21] sm:$0xff]
      %v420 = vld [vmem:[#allocation2 + $0x29] sm:$0x3]
      %v421 = vld [vmem:[#allocation2 + $0x31] sm:$0xff]
      %v422 = vld [vmem:[#allocation2 + $0x39] sm:$0xff]
      %v423 = vld [vmem:[#allocation2 + $0x41] sm:$0x3]
      %v424 = vld [vmem:[#allocation2 + $0x49] sm:$0xff]
      %v425 = vld [vmem:[#allocation2 + $0x51] sm:$0xff]
      %v426 = vld [vmem:[#allocation2 + $0x59] sm:$0x3]
      %v427 = vld [vmem:[#allocation2 + $0x61] sm:$0xff]
      %v428 = vld [vmem:[#allocation2 + $0x69] sm:$0xff]
      %v429 = vld [vmem:[#allocation2 + $0x71] sm:$0x3]
      %v430 = vld [vmem:[#allocation2 + $0x79] sm:$0xff]
      %v431 = vld [vmem:[#allocation2 + $0x81] sm:$0xff]
      %v432 = vld [vmem:[#allocation2 + $0x89] sm:$0x3]
      %v433 = vld [vmem:[#allocation2 + $0x91] sm:$0xff]
      %v434 = vld [vmem:[#allocation2 + $0x99] sm:$0xff]
      %v435 = vld [vmem:[#allocation2 + $0xa1] sm:$0x3]
      %v436 = vld [vmem:[#allocation2 + $0xa9] sm:$0xff]
      %v437 = vld [vmem:[#allocation2 + $0xb1] sm:$0xff]
      %v438 = vld [vmem:[#allocation2 + $0xb9] sm:$0x3]
      %v439 = vld [vmem:[#allocation2 + $0xc1] sm:$0xff]
      %v440 = vld [vmem:[#allocation2 + $0xc9] sm:$0xff]
      %v441 = vld [vmem:[#allocation2 + $0xd1] sm:$0x3]
      %v442 = vld [vmem:[#allocation2 + $0xd9] sm:$0xff]
      %v443 = vld [vmem:[#allocation2 + $0xe1] sm:$0xff]
      %v444 = vld [vmem:[#allocation2 + $0xe9] sm:$0x3]
      %v445 = vld [vmem:[#allocation2 + $0x2] sm:$0xff]
      %v446 = vld [vmem:[#allocation2 + $0xa] sm:$0xff]
      %v447 = vld [vmem:[#allocation2 + $0x12] sm:$0x3]
      %v448 = vld [vmem:[#allocation2 + $0x1a] sm:$0xff]
      %v449 = vld [vmem:[#allocation2 + $0x22] sm:$0xff]
      %v450 = vld [vmem:[#allocation2 + $0x2a] sm:$0x3]
      %v451 = vld [vmem:[#allocation2 + $0x32] sm:$0xff]
      %v452 = vld [vmem:[#allocation2 + $0x3a] sm:$0xff]
      %v453 = vld [vmem:[#allocation2 + $0x42] sm:$0x3]
      %v454 = vld [vmem:[#allocation2 + $0x4a] sm:$0xff]
      %v455 = vld [vmem:[#allocation2 + $0x52] sm:$0xff]
      %v456 = vld [vmem:[#allocation2 + $0x5a] sm:$0x3]
      %v457 = vld [vmem:[#allocation2 + $0x62] sm:$0xff]
      %v458 = vld [vmem:[#allocation2 + $0x6a] sm:$0xff]
      %v459 = vld [vmem:[#allocation2 + $0x72] sm:$0x3]
      %v460 = vld [vmem:[#allocation2 + $0x7a] sm:$0xff]
      %v461 = vld [vmem:[#allocation2 + $0x82] sm:$0xff]
      %v462 = vld [vmem:[#allocation2 + $0x8a] sm:$0x3]
      %v463 = vld [vmem:[#allocation2 + $0x92] sm:$0xff]
      %v464 = vld [vmem:[#allocation2 + $0x9a] sm:$0xff]
      %v465 = vld [vmem:[#allocation2 + $0xa2] sm:$0x3]
      %v466 = vld [vmem:[#allocation2 + $0xaa] sm:$0xff]
      %v467 = vld [vmem:[#allocation2 + $0xb2] sm:$0xff]
      %v468 = vld [vmem:[#allocation2 + $0xba] sm:$0x3]
      %v469 = vld [vmem:[#allocation2 + $0xc2] sm:$0xff]
      %v470 = vld [vmem:[#allocation2 + $0xca] sm:$0xff]
      %v471 = vld [vmem:[#allocation2 + $0xd2] sm:$0x3]
      %v472 = vld [vmem:[#allocation2 + $0xda] sm:$0xff]
      %v473 = vld [vmem:[#allocation2 + $0xe2] sm:$0xff]
      %v474 = vld [vmem:[#allocation2 + $0xea] sm:$0x3]
      %s475 = scalar_lea.vmem [#allocation2], 24
      %v476 = vld [vmem:[%s475] sm:$0xff]
      %v477 = vld [vmem:[%s475 + $0x8] sm:$0xff]
      %v478 = vld [vmem:[%s475 + $0x10] sm:$0x3]
      %v479 = vld [vmem:[%s475 + $0x18] sm:$0xff]
      %v480 = vld [vmem:[%s475 + $0x20] sm:$0xff]
      %v481 = vld [vmem:[%s475 + $0x28] sm:$0x3]
      %v482 = vld [vmem:[%s475 + $0x30] sm:$0xff]
      %v483 = vld [vmem:[%s475 + $0x38] sm:$0xff]
      %v484 = vld [vmem:[%s475 + $0x40] sm:$0x3]
      %v485 = vld [vmem:[%s475 + $0x48] sm:$0xff]
      %v486 = vld [vmem:[%s475 + $0x50] sm:$0xff]
      %v487 = vld [vmem:[%s475 + $0x58] sm:$0x3]
      %v488 = vld [vmem:[%s475 + $0x60] sm:$0xff]
      %v489 = vld [vmem:[%s475 + $0x68] sm:$0xff]
      %v490 = vld [vmem:[%s475 + $0x70] sm:$0x3]
      %v491 = vld [vmem:[%s475 + $0x78] sm:$0xff]
      %v492 = vld [vmem:[%s475 + $0x80] sm:$0xff]
      %v493 = vld [vmem:[%s475 + $0x88] sm:$0x3]
      %v494 = vld [vmem:[%s475 + $0x90] sm:$0xff]
      %v495 = vld [vmem:[%s475 + $0x98] sm:$0xff]
      %v496 = vld [vmem:[%s475 + $0xa0] sm:$0x3]
      %v497 = vld [vmem:[%s475 + $0xa8] sm:$0xff]
      %v498 = vld [vmem:[%s475 + $0xb0] sm:$0xff]
      %v499 = vld [vmem:[%s475 + $0xb8] sm:$0x3]
      %v500 = vld [vmem:[%s475 + $0xc0] sm:$0xff]
      %v501 = vld [vmem:[%s475 + $0xc8] sm:$0xff]
      %v502 = vld [vmem:[%s475 + $0xd0] sm:$0x3]
      %v503 = vld [vmem:[%s475 + $0xd8] sm:$0xff]
      %v504 = vld [vmem:[%s475 + $0xe0] sm:$0xff]
      %v505 = vld [vmem:[%s475 + $0xe8] sm:$0x3]
      %v506 = vld [vmem:[%s475 + $0x1] sm:$0xff]
      %v507 = vld [vmem:[%s475 + $0x9] sm:$0xff]
      %v508 = vld [vmem:[%s475 + $0x11] sm:$0x3]
      %v509 = vld [vmem:[%s475 + $0x19] sm:$0xff]
      %v510 = vld [vmem:[%s475 + $0x21] sm:$0xff]
      %v511 = vld [vmem:[%s475 + $0x29] sm:$0x3]
      %v512 = vld [vmem:[%s475 + $0x31] sm:$0xff]
      %v513 = vld [vmem:[%s475 + $0x39] sm:$0xff]
      %v514 = vld [vmem:[%s475 + $0x41] sm:$0x3]
      %v515 = vld [vmem:[%s475 + $0x49] sm:$0xff]
      %v516 = vld [vmem:[%s475 + $0x51] sm:$0xff]
      %v517 = vld [vmem:[%s475 + $0x59] sm:$0x3]
      %v518 = vld [vmem:[%s475 + $0x61] sm:$0xff]
      %v519 = vld [vmem:[%s475 + $0x69] sm:$0xff]
      %v520 = vld [vmem:[%s475 + $0x71] sm:$0x3]
      %v521 = vld [vmem:[%s475 + $0x79] sm:$0xff]
      %v522 = vld [vmem:[%s475 + $0x81] sm:$0xff]
      %v523 = vld [vmem:[%s475 + $0x89] sm:$0x3]
      %v524 = vld [vmem:[%s475 + $0x91] sm:$0xff]
      %v525 = vld [vmem:[%s475 + $0x99] sm:$0xff]
      %v526 = vld [vmem:[%s475 + $0xa1] sm:$0x3]
      %v527 = vld [vmem:[%s475 + $0xa9] sm:$0xff]
      %v528 = vld [vmem:[%s475 + $0xb1] sm:$0xff]
      %v529 = vld [vmem:[%s475 + $0xb9] sm:$0x3]
      %v530 = vld [vmem:[%s475 + $0xc1] sm:$0xff]
      %v531 = vld [vmem:[%s475 + $0xc9] sm:$0xff]
      %v532 = vld [vmem:[%s475 + $0xd1] sm:$0x3]
      %v533 = vld [vmem:[%s475 + $0xd9] sm:$0xff]
      %v534 = vld [vmem:[%s475 + $0xe1] sm:$0xff]
      %v535 = vld [vmem:[%s475 + $0xe9] sm:$0x3]
      %v536 = vld [vmem:[%s475 + $0x2] sm:$0xff]
      %v537 = vld [vmem:[%s475 + $0xa] sm:$0xff]
      %v538 = vld [vmem:[%s475 + $0x12] sm:$0x3]
      %v539 = vld [vmem:[%s475 + $0x1a] sm:$0xff]
      %v540 = vld [vmem:[%s475 + $0x22] sm:$0xff]
      %v541 = vld [vmem:[%s475 + $0x2a] sm:$0x3]
      %v542 = vld [vmem:[%s475 + $0x32] sm:$0xff]
      %v543 = vld [vmem:[%s475 + $0x3a] sm:$0xff]
      %v544 = vld [vmem:[%s475 + $0x42] sm:$0x3]
      %v545 = vld [vmem:[%s475 + $0x4a] sm:$0xff]
      %v546 = vld [vmem:[%s475 + $0x52] sm:$0xff]
      %v547 = vld [vmem:[%s475 + $0x5a] sm:$0x3]
      %v548 = vld [vmem:[%s475 + $0x62] sm:$0xff]
      %v549 = vld [vmem:[%s475 + $0x6a] sm:$0xff]
      %v550 = vld [vmem:[%s475 + $0x72] sm:$0x3]
      %v551 = vld [vmem:[%s475 + $0x7a] sm:$0xff]
      %v552 = vld [vmem:[%s475 + $0x82] sm:$0xff]
      %v553 = vld [vmem:[%s475 + $0x8a] sm:$0x3]
      %v554 = vld [vmem:[%s475 + $0x92] sm:$0xff]
      %v555 = vld [vmem:[%s475 + $0x9a] sm:$0xff]
      %v556 = vld [vmem:[%s475 + $0xa2] sm:$0x3]
      %v557 = vld [vmem:[%s475 + $0xaa] sm:$0xff]
      %v558 = vld [vmem:[%s475 + $0xb2] sm:$0xff]
      %v559 = vld [vmem:[%s475 + $0xba] sm:$0x3]
      %v560 = vld [vmem:[%s475 + $0xc2] sm:$0xff]
      %v561 = vld [vmem:[%s475 + $0xca] sm:$0xff]
      %v562 = vld [vmem:[%s475 + $0xd2] sm:$0x3]
      %v563 = vld [vmem:[%s475 + $0xda] sm:$0xff]
      %v564 = vld [vmem:[%s475 + $0xe2] sm:$0xff]
      %v565 = vld [vmem:[%s475 + $0xea] sm:$0x3]
      %s566 = scalar_lea.vmem [#allocation2], 48
      %v567 = vld [vmem:[%s566] sm:$0xff]
      %v568 = vld [vmem:[%s566 + $0x8] sm:$0xff]
      %v569 = vld [vmem:[%s566 + $0x10] sm:$0x3]
      %v570 = vld [vmem:[%s566 + $0x18] sm:$0xff]
      %v571 = vld [vmem:[%s566 + $0x20] sm:$0xff]
      %v572 = vld [vmem:[%s566 + $0x28] sm:$0x3]
      %v573 = vld [vmem:[%s566 + $0x30] sm:$0xff]
      %v574 = vld [vmem:[%s566 + $0x38] sm:$0xff]
      %v575 = vld [vmem:[%s566 + $0x40] sm:$0x3]
      %v576 = vld [vmem:[%s566 + $0x48] sm:$0xff]
      %v577 = vld [vmem:[%s566 + $0x50] sm:$0xff]
      %v578 = vld [vmem:[%s566 + $0x58] sm:$0x3]
      %v579 = vld [vmem:[%s566 + $0x60] sm:$0xff]
      %v580 = vld [vmem:[%s566 + $0x68] sm:$0xff]
      %v581 = vld [vmem:[%s566 + $0x70] sm:$0x3]
      %v582 = vld [vmem:[%s566 + $0x78] sm:$0xff]
      %v583 = vld [vmem:[%s566 + $0x80] sm:$0xff]
      %v584 = vld [vmem:[%s566 + $0x88] sm:$0x3]
      %v585 = vld [vmem:[%s566 + $0x90] sm:$0xff]
      %v586 = vld [vmem:[%s566 + $0x98] sm:$0xff]
      %v587 = vld [vmem:[%s566 + $0xa0] sm:$0x3]
      %v588 = vld [vmem:[%s566 + $0xa8] sm:$0xff]
      %v589 = vld [vmem:[%s566 + $0xb0] sm:$0xff]
      %v590 = vld [vmem:[%s566 + $0xb8] sm:$0x3]
      %v591 = vld [vmem:[%s566 + $0xc0] sm:$0xff]
      %v592 = vld [vmem:[%s566 + $0xc8] sm:$0xff]
      %v593 = vld [vmem:[%s566 + $0xd0] sm:$0x3]
      %v594 = vld [vmem:[%s566 + $0xd8] sm:$0xff]
      %v595 = vld [vmem:[%s566 + $0xe0] sm:$0xff]
      %v596 = vld [vmem:[%s566 + $0xe8] sm:$0x3]
      %v597 = vld [vmem:[%s566 + $0x1] sm:$0xff]
      %v598 = vld [vmem:[%s566 + $0x9] sm:$0xff]
      %v599 = vld [vmem:[%s566 + $0x11] sm:$0x3]
      %v600 = vld [vmem:[%s566 + $0x19] sm:$0xff]
      %v601 = vld [vmem:[%s566 + $0x21] sm:$0xff]
      %v602 = vld [vmem:[%s566 + $0x29] sm:$0x3]
      %v603 = vld [vmem:[%s566 + $0x31] sm:$0xff]
      %v604 = vld [vmem:[%s566 + $0x39] sm:$0xff]
      %v605 = vld [vmem:[%s566 + $0x41] sm:$0x3]
      %v606 = vld [vmem:[%s566 + $0x49] sm:$0xff]
      %v607 = vld [vmem:[%s566 + $0x51] sm:$0xff]
      %v608 = vld [vmem:[%s566 + $0x59] sm:$0x3]
      %v609 = vld [vmem:[%s566 + $0x61] sm:$0xff]
      %v610 = vld [vmem:[%s566 + $0x69] sm:$0xff]
      %v611 = vld [vmem:[%s566 + $0x71] sm:$0x3]
      %v612 = vld [vmem:[%s566 + $0x79] sm:$0xff]
      %v613 = vld [vmem:[%s566 + $0x81] sm:$0xff]
      %v614 = vld [vmem:[%s566 + $0x89] sm:$0x3]
      %v615 = vld [vmem:[%s566 + $0x91] sm:$0xff]
      %v616 = vld [vmem:[%s566 + $0x99] sm:$0xff]
      %v617 = vld [vmem:[%s566 + $0xa1] sm:$0x3]
      %v618 = vld [vmem:[%s566 + $0xa9] sm:$0xff]
      %v619 = vld [vmem:[%s566 + $0xb1] sm:$0xff]
      %v620 = vld [vmem:[%s566 + $0xb9] sm:$0x3]
      %v621 = vld [vmem:[%s566 + $0xc1] sm:$0xff]
      %v622 = vld [vmem:[%s566 + $0xc9] sm:$0xff]
      %v623 = vld [vmem:[%s566 + $0xd1] sm:$0x3]
      %v624 = vld [vmem:[%s566 + $0xd9] sm:$0xff]
      %v625 = vld [vmem:[%s566 + $0xe1] sm:$0xff]
      %v626 = vld [vmem:[%s566 + $0xe9] sm:$0x3]
      %v627 = vld [vmem:[%s566 + $0x2] sm:$0xff]
      %v628 = vld [vmem:[%s566 + $0xa] sm:$0xff]
      %v629 = vld [vmem:[%s566 + $0x12] sm:$0x3]
      %v630 = vld [vmem:[%s566 + $0x1a] sm:$0xff]
      %v631 = vld [vmem:[%s566 + $0x22] sm:$0xff]
      %v632 = vld [vmem:[%s566 + $0x2a] sm:$0x3]
      %v633 = vld [vmem:[%s566 + $0x32] sm:$0xff]
      %v634 = vld [vmem:[%s566 + $0x3a] sm:$0xff]
      %v635 = vld [vmem:[%s566 + $0x42] sm:$0x3]
      %v636 = vld [vmem:[%s566 + $0x4a] sm:$0xff]
      %v637 = vld [vmem:[%s566 + $0x52] sm:$0xff]
      %v638 = vld [vmem:[%s566 + $0x5a] sm:$0x3]
      %v639 = vld [vmem:[%s566 + $0x62] sm:$0xff]
      %v640 = vld [vmem:[%s566 + $0x6a] sm:$0xff]
      %v641 = vld [vmem:[%s566 + $0x72] sm:$0x3]
      %v642 = vld [vmem:[%s566 + $0x7a] sm:$0xff]
      %v643 = vld [vmem:[%s566 + $0x82] sm:$0xff]
      %v644 = vld [vmem:[%s566 + $0x8a] sm:$0x3]
      %v645 = vld [vmem:[%s566 + $0x92] sm:$0xff]
      %v646 = vld [vmem:[%s566 + $0x9a] sm:$0xff]
      %v647 = vld [vmem:[%s566 + $0xa2] sm:$0x3]
      %v648 = vld [vmem:[%s566 + $0xaa] sm:$0xff]
      %v649 = vld [vmem:[%s566 + $0xb2] sm:$0xff]
      %v650 = vld [vmem:[%s566 + $0xba] sm:$0x3]
      %v651 = vld [vmem:[%s566 + $0xc2] sm:$0xff]
      %v652 = vld [vmem:[%s566 + $0xca] sm:$0xff]
      %v653 = vld [vmem:[%s566 + $0xd2] sm:$0x3]
      %v654 = vld [vmem:[%s566 + $0xda] sm:$0xff]
      %v655 = vld [vmem:[%s566 + $0xe2] sm:$0xff]
      %v656 = vld [vmem:[%s566 + $0xea] sm:$0x3]
      %687 = vrot.lane.b32.xlu0 %v415, 4
      %v688 = vpop.permute.xlu0 %687
      %689 = vrot.lane.b32.xlu0 %v416, 4
      %v690 = vpop.permute.xlu0 %689
      %691 = vrot.lane.b32.xlu0 %v417, 4
      %v692 = vpop.permute.xlu0 %691
      %693 = vrot.lane.b32.xlu0 %v418, 4
      %v694 = vpop.permute.xlu0 %693
      %695 = vrot.lane.b32.xlu0 %v419, 4
      %v696 = vpop.permute.xlu0 %695
      %697 = vrot.lane.b32.xlu0 %v420, 4
      %v698 = vpop.permute.xlu0 %697
      %699 = vrot.lane.b32.xlu0 %v421, 4
      %v700 = vpop.permute.xlu0 %699
      %701 = vrot.lane.b32.xlu0 %v422, 4
      %v702 = vpop.permute.xlu0 %701
      %703 = vrot.lane.b32.xlu0 %v423, 4
      %v704 = vpop.permute.xlu0 %703
      %705 = vrot.lane.b32.xlu0 %v424, 4
      %v706 = vpop.permute.xlu0 %705
      %707 = vrot.lane.b32.xlu0 %v425, 4
      %v708 = vpop.permute.xlu0 %707
      %709 = vrot.lane.b32.xlu0 %v426, 4
      %v710 = vpop.permute.xlu0 %709
      %711 = vrot.lane.b32.xlu0 %v427, 4
      %v712 = vpop.permute.xlu0 %711
      %713 = vrot.lane.b32.xlu0 %v428, 4
      %v714 = vpop.permute.xlu0 %713
      %715 = vrot.lane.b32.xlu0 %v429, 4
      %v716 = vpop.permute.xlu0 %715
      %717 = vrot.lane.b32.xlu0 %v430, 4
      %v718 = vpop.permute.xlu0 %717
      %719 = vrot.lane.b32.xlu0 %v431, 4
      %v720 = vpop.permute.xlu0 %719
      %721 = vrot.lane.b32.xlu0 %v432, 4
      %v722 = vpop.permute.xlu0 %721
      %723 = vrot.lane.b32.xlu0 %v433, 4
      %v724 = vpop.permute.xlu0 %723
      %725 = vrot.lane.b32.xlu0 %v434, 4
      %v726 = vpop.permute.xlu0 %725
      %727 = vrot.lane.b32.xlu0 %v435, 4
      %v728 = vpop.permute.xlu0 %727
      %729 = vrot.lane.b32.xlu0 %v436, 4
      %v730 = vpop.permute.xlu0 %729
      %731 = vrot.lane.b32.xlu0 %v437, 4
      %v732 = vpop.permute.xlu0 %731
      %733 = vrot.lane.b32.xlu0 %v438, 4
      %v734 = vpop.permute.xlu0 %733
      %735 = vrot.lane.b32.xlu0 %v439, 4
      %v736 = vpop.permute.xlu0 %735
      %737 = vrot.lane.b32.xlu0 %v440, 4
      %v738 = vpop.permute.xlu0 %737
      %739 = vrot.lane.b32.xlu0 %v441, 4
      %v740 = vpop.permute.xlu0 %739
      %741 = vrot.lane.b32.xlu0 %v442, 4
      %v742 = vpop.permute.xlu0 %741
      %743 = vrot.lane.b32.xlu0 %v443, 4
      %v744 = vpop.permute.xlu0 %743
      %745 = vrot.lane.b32.xlu0 %v444, 4
      %v746 = vpop.permute.xlu0 %745
      %807 = vrot.lane.b32.xlu0 %v445, 8
      %v808 = vpop.permute.xlu0 %807
      %809 = vrot.lane.b32.xlu0 %v446, 8
      %v810 = vpop.permute.xlu0 %809
      %811 = vrot.lane.b32.xlu0 %v447, 8
      %v812 = vpop.permute.xlu0 %811
      %813 = vrot.lane.b32.xlu0 %v448, 8
      %v814 = vpop.permute.xlu0 %813
      %815 = vrot.lane.b32.xlu0 %v449, 8
      %v816 = vpop.permute.xlu0 %815
      %817 = vrot.lane.b32.xlu0 %v450, 8
      %v818 = vpop.permute.xlu0 %817
      %819 = vrot.lane.b32.xlu0 %v451, 8
      %v820 = vpop.permute.xlu0 %819
      %821 = vrot.lane.b32.xlu0 %v452, 8
      %v822 = vpop.permute.xlu0 %821
      %823 = vrot.lane.b32.xlu0 %v453, 8
      %v824 = vpop.permute.xlu0 %823
      %825 = vrot.lane.b32.xlu0 %v454, 8
      %v826 = vpop.permute.xlu0 %825
      %827 = vrot.lane.b32.xlu0 %v455, 8
      %v828 = vpop.permute.xlu0 %827
      %829 = vrot.lane.b32.xlu0 %v456, 8
      %v830 = vpop.permute.xlu0 %829
      %831 = vrot.lane.b32.xlu0 %v457, 8
      %v832 = vpop.permute.xlu0 %831
      %833 = vrot.lane.b32.xlu0 %v458, 8
      %v834 = vpop.permute.xlu0 %833
      %835 = vrot.lane.b32.xlu0 %v459, 8
      %v836 = vpop.permute.xlu0 %835
      %837 = vrot.lane.b32.xlu0 %v460, 8
      %v838 = vpop.permute.xlu0 %837
      %839 = vrot.lane.b32.xlu0 %v461, 8
      %v840 = vpop.permute.xlu0 %839
      %841 = vrot.lane.b32.xlu0 %v462, 8
      %v842 = vpop.permute.xlu0 %841
      %843 = vrot.lane.b32.xlu0 %v463, 8
      %v844 = vpop.permute.xlu0 %843
      %845 = vrot.lane.b32.xlu0 %v464, 8
      %v846 = vpop.permute.xlu0 %845
      %847 = vrot.lane.b32.xlu0 %v465, 8
      %v848 = vpop.permute.xlu0 %847
      %849 = vrot.lane.b32.xlu0 %v466, 8
      %v850 = vpop.permute.xlu0 %849
      %851 = vrot.lane.b32.xlu0 %v467, 8
      %v852 = vpop.permute.xlu0 %851
      %853 = vrot.lane.b32.xlu0 %v468, 8
      %v854 = vpop.permute.xlu0 %853
      %855 = vrot.lane.b32.xlu0 %v469, 8
      %v856 = vpop.permute.xlu0 %855
      %857 = vrot.lane.b32.xlu0 %v470, 8
      %v858 = vpop.permute.xlu0 %857
      %859 = vrot.lane.b32.xlu0 %v471, 8
      %v860 = vpop.permute.xlu0 %859
      %861 = vrot.lane.b32.xlu0 %v472, 8
      %v862 = vpop.permute.xlu0 %861
      %863 = vrot.lane.b32.xlu0 %v473, 8
      %v864 = vpop.permute.xlu0 %863
      %865 = vrot.lane.b32.xlu0 %v474, 8
      %v866 = vpop.permute.xlu0 %865
      %927 = vrot.lane.b32.xlu0 %v476, 12
      %v928 = vpop.permute.xlu0 %927
      %929 = vrot.lane.b32.xlu0 %v477, 12
      %v930 = vpop.permute.xlu0 %929
      %931 = vrot.lane.b32.xlu0 %v478, 12
      %v932 = vpop.permute.xlu0 %931
      %933 = vrot.lane.b32.xlu0 %v479, 12
      %v934 = vpop.permute.xlu0 %933
      %935 = vrot.lane.b32.xlu0 %v480, 12
      %v936 = vpop.permute.xlu0 %935
      %937 = vrot.lane.b32.xlu0 %v481, 12
      %v938 = vpop.permute.xlu0 %937
      %939 = vrot.lane.b32.xlu0 %v482, 12
      %v940 = vpop.permute.xlu0 %939
      %941 = vrot.lane.b32.xlu0 %v483, 12
      %v942 = vpop.permute.xlu0 %941
      %943 = vrot.lane.b32.xlu0 %v484, 12
      %v944 = vpop.permute.xlu0 %943
      %945 = vrot.lane.b32.xlu0 %v485, 12
      %v946 = vpop.permute.xlu0 %945
      %947 = vrot.lane.b32.xlu0 %v486, 12
      %v948 = vpop.permute.xlu0 %947
      %949 = vrot.lane.b32.xlu0 %v487, 12
      %v950 = vpop.permute.xlu0 %949
      %951 = vrot.lane.b32.xlu0 %v488, 12
      %v952 = vpop.permute.xlu0 %951
      %953 = vrot.lane.b32.xlu0 %v489, 12
      %v954 = vpop.permute.xlu0 %953
      %955 = vrot.lane.b32.xlu0 %v490, 12
      %v956 = vpop.permute.xlu0 %955
      %957 = vrot.lane.b32.xlu0 %v491, 12
      %v958 = vpop.permute.xlu0 %957
      %959 = vrot.lane.b32.xlu0 %v492, 12
      %v960 = vpop.permute.xlu0 %959
      %961 = vrot.lane.b32.xlu0 %v493, 12
      %v962 = vpop.permute.xlu0 %961
      %963 = vrot.lane.b32.xlu0 %v494, 12
      %v964 = vpop.permute.xlu0 %963
      %965 = vrot.lane.b32.xlu0 %v495, 12
      %v966 = vpop.permute.xlu0 %965
      %967 = vrot.lane.b32.xlu0 %v496, 12
      %v968 = vpop.permute.xlu0 %967
      %969 = vrot.lane.b32.xlu0 %v497, 12
      %v970 = vpop.permute.xlu0 %969
      %971 = vrot.lane.b32.xlu0 %v498, 12
      %v972 = vpop.permute.xlu0 %971
      %973 = vrot.lane.b32.xlu0 %v499, 12
      %v974 = vpop.permute.xlu0 %973
      %975 = vrot.lane.b32.xlu0 %v500, 12
      %v976 = vpop.permute.xlu0 %975
      %977 = vrot.lane.b32.xlu0 %v501, 12
      %v978 = vpop.permute.xlu0 %977
      %979 = vrot.lane.b32.xlu0 %v502, 12
      %v980 = vpop.permute.xlu0 %979
      %981 = vrot.lane.b32.xlu0 %v503, 12
      %v982 = vpop.permute.xlu0 %981
      %983 = vrot.lane.b32.xlu0 %v504, 12
      %v984 = vpop.permute.xlu0 %983
      %985 = vrot.lane.b32.xlu0 %v505, 12
      %v986 = vpop.permute.xlu0 %985
      %1047 = vrot.lane.b32.xlu0 %v506, 16
      %v1048 = vpop.permute.xlu0 %1047
      %1049 = vrot.lane.b32.xlu0 %v507, 16
      %v1050 = vpop.permute.xlu0 %1049
      %1051 = vrot.lane.b32.xlu0 %v508, 16
      %v1052 = vpop.permute.xlu0 %1051
      %1053 = vrot.lane.b32.xlu0 %v509, 16
      %v1054 = vpop.permute.xlu0 %1053
      %1055 = vrot.lane.b32.xlu0 %v510, 16
      %v1056 = vpop.permute.xlu0 %1055
      %1057 = vrot.lane.b32.xlu0 %v511, 16
      %v1058 = vpop.permute.xlu0 %1057
      %1059 = vrot.lane.b32.xlu0 %v512, 16
      %v1060 = vpop.permute.xlu0 %1059
      %1061 = vrot.lane.b32.xlu0 %v513, 16
      %v1062 = vpop.permute.xlu0 %1061
      %1063 = vrot.lane.b32.xlu0 %v514, 16
      %v1064 = vpop.permute.xlu0 %1063
      %1065 = vrot.lane.b32.xlu0 %v515, 16
      %v1066 = vpop.permute.xlu0 %1065
      %1067 = vrot.lane.b32.xlu0 %v516, 16
      %v1068 = vpop.permute.xlu0 %1067
      %1069 = vrot.lane.b32.xlu0 %v517, 16
      %v1070 = vpop.permute.xlu0 %1069
      %1071 = vrot.lane.b32.xlu0 %v518, 16
      %v1072 = vpop.permute.xlu0 %1071
      %1073 = vrot.lane.b32.xlu0 %v519, 16
      %v1074 = vpop.permute.xlu0 %1073
      %1075 = vrot.lane.b32.xlu0 %v520, 16
      %v1076 = vpop.permute.xlu0 %1075
      %1077 = vrot.lane.b32.xlu0 %v521, 16
      %v1078 = vpop.permute.xlu0 %1077
      %1079 = vrot.lane.b32.xlu0 %v522, 16
      %v1080 = vpop.permute.xlu0 %1079
      %1081 = vrot.lane.b32.xlu0 %v523, 16
      %v1082 = vpop.permute.xlu0 %1081
      %1083 = vrot.lane.b32.xlu0 %v524, 16
      %v1084 = vpop.permute.xlu0 %1083
      %1085 = vrot.lane.b32.xlu0 %v525, 16
      %v1086 = vpop.permute.xlu0 %1085
      %1087 = vrot.lane.b32.xlu0 %v526, 16
      %v1088 = vpop.permute.xlu0 %1087
      %1089 = vrot.lane.b32.xlu0 %v527, 16
      %v1090 = vpop.permute.xlu0 %1089
      %1091 = vrot.lane.b32.xlu0 %v528, 16
      %v1092 = vpop.permute.xlu0 %1091
      %1093 = vrot.lane.b32.xlu0 %v529, 16
      %v1094 = vpop.permute.xlu0 %1093
      %1095 = vrot.lane.b32.xlu0 %v530, 16
      %v1096 = vpop.permute.xlu0 %1095
      %1097 = vrot.lane.b32.xlu0 %v531, 16
      %v1098 = vpop.permute.xlu0 %1097
      %1099 = vrot.lane.b32.xlu0 %v532, 16
      %v1100 = vpop.permute.xlu0 %1099
      %1101 = vrot.lane.b32.xlu0 %v533, 16
      %v1102 = vpop.permute.xlu0 %1101
      %1103 = vrot.lane.b32.xlu0 %v534, 16
      %v1104 = vpop.permute.xlu0 %1103
      %1105 = vrot.lane.b32.xlu0 %v535, 16
      %v1106 = vpop.permute.xlu0 %1105
      %1167 = vrot.lane.b32.xlu0 %v536, 20
      %v1168 = vpop.permute.xlu0 %1167
      %1169 = vrot.lane.b32.xlu0 %v537, 20
      %v1170 = vpop.permute.xlu0 %1169
      %1171 = vrot.lane.b32.xlu0 %v538, 20
      %v1172 = vpop.permute.xlu0 %1171
      %1173 = vrot.lane.b32.xlu0 %v539, 20
      %v1174 = vpop.permute.xlu0 %1173
      %1175 = vrot.lane.b32.xlu0 %v540, 20
      %v1176 = vpop.permute.xlu0 %1175
      %1177 = vrot.lane.b32.xlu0 %v541, 20
      %v1178 = vpop.permute.xlu0 %1177
      %1179 = vrot.lane.b32.xlu0 %v542, 20
      %v1180 = vpop.permute.xlu0 %1179
      %1181 = vrot.lane.b32.xlu0 %v543, 20
      %v1182 = vpop.permute.xlu0 %1181
      %1183 = vrot.lane.b32.xlu0 %v544, 20
      %v1184 = vpop.permute.xlu0 %1183
      %1185 = vrot.lane.b32.xlu0 %v545, 20
      %v1186 = vpop.permute.xlu0 %1185
      %1187 = vrot.lane.b32.xlu0 %v546, 20
      %v1188 = vpop.permute.xlu0 %1187
      %1189 = vrot.lane.b32.xlu0 %v547, 20
      %v1190 = vpop.permute.xlu0 %1189
      %1191 = vrot.lane.b32.xlu0 %v548, 20
      %v1192 = vpop.permute.xlu0 %1191
      %1193 = vrot.lane.b32.xlu0 %v549, 20
      %v1194 = vpop.permute.xlu0 %1193
      %1195 = vrot.lane.b32.xlu0 %v550, 20
      %v1196 = vpop.permute.xlu0 %1195
      %1197 = vrot.lane.b32.xlu0 %v551, 20
      %v1198 = vpop.permute.xlu0 %1197
      %1199 = vrot.lane.b32.xlu0 %v552, 20
      %v1200 = vpop.permute.xlu0 %1199
      %1201 = vrot.lane.b32.xlu0 %v553, 20
      %v1202 = vpop.permute.xlu0 %1201
      %1203 = vrot.lane.b32.xlu0 %v554, 20
      %v1204 = vpop.permute.xlu0 %1203
      %1205 = vrot.lane.b32.xlu0 %v555, 20
      %v1206 = vpop.permute.xlu0 %1205
      %1207 = vrot.lane.b32.xlu0 %v556, 20
      %v1208 = vpop.permute.xlu0 %1207
      %1209 = vrot.lane.b32.xlu0 %v557, 20
      %v1210 = vpop.permute.xlu0 %1209
      %1211 = vrot.lane.b32.xlu0 %v558, 20
      %v1212 = vpop.permute.xlu0 %1211
      %1213 = vrot.lane.b32.xlu0 %v559, 20
      %v1214 = vpop.permute.xlu0 %1213
      %1215 = vrot.lane.b32.xlu0 %v560, 20
      %v1216 = vpop.permute.xlu0 %1215
      %1217 = vrot.lane.b32.xlu0 %v561, 20
      %v1218 = vpop.permute.xlu0 %1217
      %1219 = vrot.lane.b32.xlu0 %v562, 20
      %v1220 = vpop.permute.xlu0 %1219
      %1221 = vrot.lane.b32.xlu0 %v563, 20
      %v1222 = vpop.permute.xlu0 %1221
      %1223 = vrot.lane.b32.xlu0 %v564, 20
      %v1224 = vpop.permute.xlu0 %1223
      %1225 = vrot.lane.b32.xlu0 %v565, 20
      %v1226 = vpop.permute.xlu0 %1225
      %1287 = vrot.lane.b32.xlu0 %v567, 24
      %v1288 = vpop.permute.xlu0 %1287
      %1289 = vrot.lane.b32.xlu0 %v568, 24
      %v1290 = vpop.permute.xlu0 %1289
      %1291 = vrot.lane.b32.xlu0 %v569, 24
      %v1292 = vpop.permute.xlu0 %1291
      %1293 = vrot.lane.b32.xlu0 %v570, 24
      %v1294 = vpop.permute.xlu0 %1293
      %1295 = vrot.lane.b32.xlu0 %v571, 24
      %v1296 = vpop.permute.xlu0 %1295
      %1297 = vrot.lane.b32.xlu0 %v572, 24
      %v1298 = vpop.permute.xlu0 %1297
      %1299 = vrot.lane.b32.xlu0 %v573, 24
      %v1300 = vpop.permute.xlu0 %1299
      %1301 = vrot.lane.b32.xlu0 %v574, 24
      %v1302 = vpop.permute.xlu0 %1301
      %1303 = vrot.lane.b32.xlu0 %v575, 24
      %v1304 = vpop.permute.xlu0 %1303
      %1305 = vrot.lane.b32.xlu0 %v576, 24
      %v1306 = vpop.permute.xlu0 %1305
      %1307 = vrot.lane.b32.xlu0 %v577, 24
      %v1308 = vpop.permute.xlu0 %1307
      %1309 = vrot.lane.b32.xlu0 %v578, 24
      %v1310 = vpop.permute.xlu0 %1309
      %1311 = vrot.lane.b32.xlu0 %v579, 24
      %v1312 = vpop.permute.xlu0 %1311
      %1313 = vrot.lane.b32.xlu0 %v580, 24
      %v1314 = vpop.permute.xlu0 %1313
      %1315 = vrot.lane.b32.xlu0 %v581, 24
      %v1316 = vpop.permute.xlu0 %1315
      %1317 = vrot.lane.b32.xlu0 %v582, 24
      %v1318 = vpop.permute.xlu0 %1317
      %1319 = vrot.lane.b32.xlu0 %v583, 24
      %v1320 = vpop.permute.xlu0 %1319
      %1321 = vrot.lane.b32.xlu0 %v584, 24
      %v1322 = vpop.permute.xlu0 %1321
      %1323 = vrot.lane.b32.xlu0 %v585, 24
      %v1324 = vpop.permute.xlu0 %1323
      %1325 = vrot.lane.b32.xlu0 %v586, 24
      %v1326 = vpop.permute.xlu0 %1325
      %1327 = vrot.lane.b32.xlu0 %v587, 24
      %v1328 = vpop.permute.xlu0 %1327
      %1329 = vrot.lane.b32.xlu0 %v588, 24
      %v1330 = vpop.permute.xlu0 %1329
      %1331 = vrot.lane.b32.xlu0 %v589, 24
      %v1332 = vpop.permute.xlu0 %1331
      %1333 = vrot.lane.b32.xlu0 %v590, 24
      %v1334 = vpop.permute.xlu0 %1333
      %1335 = vrot.lane.b32.xlu0 %v591, 24
      %v1336 = vpop.permute.xlu0 %1335
      %1337 = vrot.lane.b32.xlu0 %v592, 24
      %v1338 = vpop.permute.xlu0 %1337
      %1339 = vrot.lane.b32.xlu0 %v593, 24
      %v1340 = vpop.permute.xlu0 %1339
      %1341 = vrot.lane.b32.xlu0 %v594, 24
      %v1342 = vpop.permute.xlu0 %1341
      %1343 = vrot.lane.b32.xlu0 %v595, 24
      %v1344 = vpop.permute.xlu0 %1343
      %1345 = vrot.lane.b32.xlu0 %v596, 24
      %v1346 = vpop.permute.xlu0 %1345
      %1407 = vrot.lane.b32.xlu0 %v597, 28
      %v1408 = vpop.permute.xlu0 %1407
      %1409 = vrot.lane.b32.xlu0 %v598, 28
      %v1410 = vpop.permute.xlu0 %1409
      %1411 = vrot.lane.b32.xlu0 %v599, 28
      %v1412 = vpop.permute.xlu0 %1411
      %1413 = vrot.lane.b32.xlu0 %v600, 28
      %v1414 = vpop.permute.xlu0 %1413
      %1415 = vrot.lane.b32.xlu0 %v601, 28
      %v1416 = vpop.permute.xlu0 %1415
      %1417 = vrot.lane.b32.xlu0 %v602, 28
      %v1418 = vpop.permute.xlu0 %1417
      %1419 = vrot.lane.b32.xlu0 %v603, 28
      %v1420 = vpop.permute.xlu0 %1419
      %1421 = vrot.lane.b32.xlu0 %v604, 28
      %v1422 = vpop.permute.xlu0 %1421
      %1423 = vrot.lane.b32.xlu0 %v605, 28
      %v1424 = vpop.permute.xlu0 %1423
      %1425 = vrot.lane.b32.xlu0 %v606, 28
      %v1426 = vpop.permute.xlu0 %1425
      %1427 = vrot.lane.b32.xlu0 %v607, 28
      %v1428 = vpop.permute.xlu0 %1427
      %1429 = vrot.lane.b32.xlu0 %v608, 28
      %v1430 = vpop.permute.xlu0 %1429
      %1431 = vrot.lane.b32.xlu0 %v609, 28
      %v1432 = vpop.permute.xlu0 %1431
      %1433 = vrot.lane.b32.xlu0 %v610, 28
      %v1434 = vpop.permute.xlu0 %1433
      %1435 = vrot.lane.b32.xlu0 %v611, 28
      %v1436 = vpop.permute.xlu0 %1435
      %1437 = vrot.lane.b32.xlu0 %v612, 28
      %v1438 = vpop.permute.xlu0 %1437
      %1439 = vrot.lane.b32.xlu0 %v613, 28
      %v1440 = vpop.permute.xlu0 %1439
      %1441 = vrot.lane.b32.xlu0 %v614, 28
      %v1442 = vpop.permute.xlu0 %1441
      %1443 = vrot.lane.b32.xlu0 %v615, 28
      %v1444 = vpop.permute.xlu0 %1443
      %1445 = vrot.lane.b32.xlu0 %v616, 28
      %v1446 = vpop.permute.xlu0 %1445
      %1447 = vrot.lane.b32.xlu0 %v617, 28
      %v1448 = vpop.permute.xlu0 %1447
      %1449 = vrot.lane.b32.xlu0 %v618, 28
      %v1450 = vpop.permute.xlu0 %1449
      %1451 = vrot.lane.b32.xlu0 %v619, 28
      %v1452 = vpop.permute.xlu0 %1451
      %1453 = vrot.lane.b32.xlu0 %v620, 28
      %v1454 = vpop.permute.xlu0 %1453
      %1455 = vrot.lane.b32.xlu0 %v621, 28
      %v1456 = vpop.permute.xlu0 %1455
      %1457 = vrot.lane.b32.xlu0 %v622, 28
      %v1458 = vpop.permute.xlu0 %1457
      %1459 = vrot.lane.b32.xlu0 %v623, 28
      %v1460 = vpop.permute.xlu0 %1459
      %1461 = vrot.lane.b32.xlu0 %v624, 28
      %v1462 = vpop.permute.xlu0 %1461
      %1463 = vrot.lane.b32.xlu0 %v625, 28
      %v1464 = vpop.permute.xlu0 %1463
      %1465 = vrot.lane.b32.xlu0 %v626, 28
      %v1466 = vpop.permute.xlu0 %1465
      %1527 = vrot.lane.b32.xlu0 %v627, 32
      %v1528 = vpop.permute.xlu0 %1527
      %1529 = vrot.lane.b32.xlu0 %v628, 32
      %v1530 = vpop.permute.xlu0 %1529
      %1531 = vrot.lane.b32.xlu0 %v629, 32
      %v1532 = vpop.permute.xlu0 %1531
      %1533 = vrot.lane.b32.xlu0 %v630, 32
      %v1534 = vpop.permute.xlu0 %1533
      %1535 = vrot.lane.b32.xlu0 %v631, 32
      %v1536 = vpop.permute.xlu0 %1535
      %1537 = vrot.lane.b32.xlu0 %v632, 32
      %v1538 = vpop.permute.xlu0 %1537
      %1539 = vrot.lane.b32.xlu0 %v633, 32
      %v1540 = vpop.permute.xlu0 %1539
      %1541 = vrot.lane.b32.xlu0 %v634, 32
      %v1542 = vpop.permute.xlu0 %1541
      %1543 = vrot.lane.b32.xlu0 %v635, 32
      %v1544 = vpop.permute.xlu0 %1543
      %1545 = vrot.lane.b32.xlu0 %v636, 32
      %v1546 = vpop.permute.xlu0 %1545
      %1547 = vrot.lane.b32.xlu0 %v637, 32
      %v1548 = vpop.permute.xlu0 %1547
      %1549 = vrot.lane.b32.xlu0 %v638, 32
      %v1550 = vpop.permute.xlu0 %1549
      %1551 = vrot.lane.b32.xlu0 %v639, 32
      %v1552 = vpop.permute.xlu0 %1551
      %1553 = vrot.lane.b32.xlu0 %v640, 32
      %v1554 = vpop.permute.xlu0 %1553
      %1555 = vrot.lane.b32.xlu0 %v641, 32
      %v1556 = vpop.permute.xlu0 %1555
      %1557 = vrot.lane.b32.xlu0 %v642, 32
      %v1558 = vpop.permute.xlu0 %1557
      %1559 = vrot.lane.b32.xlu0 %v643, 32
      %v1560 = vpop.permute.xlu0 %1559
      %1561 = vrot.lane.b32.xlu0 %v644, 32
      %v1562 = vpop.permute.xlu0 %1561
      %1563 = vrot.lane.b32.xlu0 %v645, 32
      %v1564 = vpop.permute.xlu0 %1563
      %1565 = vrot.lane.b32.xlu0 %v646, 32
      %v1566 = vpop.permute.xlu0 %1565
      %1567 = vrot.lane.b32.xlu0 %v647, 32
      %v1568 = vpop.permute.xlu0 %1567
      %1569 = vrot.lane.b32.xlu0 %v648, 32
      %v1570 = vpop.permute.xlu0 %1569
      %1571 = vrot.lane.b32.xlu0 %v649, 32
      %v1572 = vpop.permute.xlu0 %1571
      %1573 = vrot.lane.b32.xlu0 %v650, 32
      %v1574 = vpop.permute.xlu0 %1573
      %1575 = vrot.lane.b32.xlu0 %v651, 32
      %v1576 = vpop.permute.xlu0 %1575
      %1577 = vrot.lane.b32.xlu0 %v652, 32
      %v1578 = vpop.permute.xlu0 %1577
      %1579 = vrot.lane.b32.xlu0 %v653, 32
      %v1580 = vpop.permute.xlu0 %1579
      %1581 = vrot.lane.b32.xlu0 %v654, 32
      %v1582 = vpop.permute.xlu0 %1581
      %1583 = vrot.lane.b32.xlu0 %v655, 32
      %v1584 = vpop.permute.xlu0 %1583
      %1585 = vrot.lane.b32.xlu0 %v656, 32
      %v1586 = vpop.permute.xlu0 %1585
      %vm1617 = vcmask 31744
      %v1618 = vsel %vm1617, %v385, %v688
      %v1619 = vsel %vm1617, %v386, %v690
      %v1620 = vsel %vm1617, %v387, %v692
      %v1621 = vsel %vm1617, %v388, %v694
      %v1622 = vsel %vm1617, %v389, %v696
      %v1623 = vsel %vm1617, %v390, %v698
      %v1624 = vsel %vm1617, %v391, %v700
      %v1625 = vsel %vm1617, %v392, %v702
      %v1626 = vsel %vm1617, %v393, %v704
      %v1627 = vsel %vm1617, %v394, %v706
      %v1628 = vsel %vm1617, %v395, %v708
      %v1629 = vsel %vm1617, %v396, %v710
      %v1630 = vsel %vm1617, %v397, %v712
      %v1631 = vsel %vm1617, %v398, %v714
      %v1632 = vsel %vm1617, %v399, %v716
      %v1633 = vsel %vm1617, %v400, %v718
      %v1634 = vsel %vm1617, %v401, %v720
      %v1635 = vsel %vm1617, %v402, %v722
      %v1636 = vsel %vm1617, %v403, %v724
      %v1637 = vsel %vm1617, %v404, %v726
      %v1638 = vsel %vm1617, %v405, %v728
      %v1639 = vsel %vm1617, %v406, %v730
      %v1640 = vsel %vm1617, %v407, %v732
      %v1641 = vsel %vm1617, %v408, %v734
      %v1642 = vsel %vm1617, %v409, %v736
      %v1643 = vsel %vm1617, %v410, %v738
      %v1644 = vsel %vm1617, %v411, %v740
      %v1645 = vsel %vm1617, %v412, %v742
      %v1646 = vsel %vm1617, %v413, %v744
      %v1647 = vsel %vm1617, %v414, %v746
      %vm1648 = vcmask 64512
      %v1649 = vsel %vm1648, %v1618, %v808
      %v1650 = vsel %vm1648, %v1619, %v810
      %v1651 = vsel %vm1648, %v1620, %v812
      %v1652 = vsel %vm1648, %v1621, %v814
      %v1653 = vsel %vm1648, %v1622, %v816
      %v1654 = vsel %vm1648, %v1623, %v818
      %v1655 = vsel %vm1648, %v1624, %v820
      %v1656 = vsel %vm1648, %v1625, %v822
      %v1657 = vsel %vm1648, %v1626, %v824
      %v1658 = vsel %vm1648, %v1627, %v826
      %v1659 = vsel %vm1648, %v1628, %v828
      %v1660 = vsel %vm1648, %v1629, %v830
      %v1661 = vsel %vm1648, %v1630, %v832
      %v1662 = vsel %vm1648, %v1631, %v834
      %v1663 = vsel %vm1648, %v1632, %v836
      %v1664 = vsel %vm1648, %v1633, %v838
      %v1665 = vsel %vm1648, %v1634, %v840
      %v1666 = vsel %vm1648, %v1635, %v842
      %v1667 = vsel %vm1648, %v1636, %v844
      %v1668 = vsel %vm1648, %v1637, %v846
      %v1669 = vsel %vm1648, %v1638, %v848
      %v1670 = vsel %vm1648, %v1639, %v850
      %v1671 = vsel %vm1648, %v1640, %v852
      %v1672 = vsel %vm1648, %v1641, %v854
      %v1673 = vsel %vm1648, %v1642, %v856
      %v1674 = vsel %vm1648, %v1643, %v858
      %v1675 = vsel %vm1648, %v1644, %v860
      %v1676 = vsel %vm1648, %v1645, %v862
      %v1677 = vsel %vm1648, %v1646, %v864
      %v1678 = vsel %vm1648, %v1647, %v866
      %vm1679 = vcmask 97280
      %v1680 = vsel %vm1679, %v1649, %v928
      %v1681 = vsel %vm1679, %v1650, %v930
      %v1682 = vsel %vm1679, %v1651, %v932
      %v1683 = vsel %vm1679, %v1652, %v934
      %v1684 = vsel %vm1679, %v1653, %v936
      %v1685 = vsel %vm1679, %v1654, %v938
      %v1686 = vsel %vm1679, %v1655, %v940
      %v1687 = vsel %vm1679, %v1656, %v942
      %v1688 = vsel %vm1679, %v1657, %v944
      %v1689 = vsel %vm1679, %v1658, %v946
      %v1690 = vsel %vm1679, %v1659, %v948
      %v1691 = vsel %vm1679, %v1660, %v950
      %v1692 = vsel %vm1679, %v1661, %v952
      %v1693 = vsel %vm1679, %v1662, %v954
      %v1694 = vsel %vm1679, %v1663, %v956
      %v1695 = vsel %vm1679, %v1664, %v958
      %v1696 = vsel %vm1679, %v1665, %v960
      %v1697 = vsel %vm1679, %v1666, %v962
      %v1698 = vsel %vm1679, %v1667, %v964
      %v1699 = vsel %vm1679, %v1668, %v966
      %v1700 = vsel %vm1679, %v1669, %v968
      %v1701 = vsel %vm1679, %v1670, %v970
      %v1702 = vsel %vm1679, %v1671, %v972
      %v1703 = vsel %vm1679, %v1672, %v974
      %v1704 = vsel %vm1679, %v1673, %v976
      %v1705 = vsel %vm1679, %v1674, %v978
      %v1706 = vsel %vm1679, %v1675, %v980
      %v1707 = vsel %vm1679, %v1676, %v982
      %v1708 = vsel %vm1679, %v1677, %v984
      %v1709 = vsel %vm1679, %v1678, %v986
      %vm1710 = vcmask 130048
      %v1711 = vsel %vm1710, %v1680, %v1048
      %v1712 = vsel %vm1710, %v1681, %v1050
      %v1713 = vsel %vm1710, %v1682, %v1052
      %v1714 = vsel %vm1710, %v1683, %v1054
      %v1715 = vsel %vm1710, %v1684, %v1056
      %v1716 = vsel %vm1710, %v1685, %v1058
      %v1717 = vsel %vm1710, %v1686, %v1060
      %v1718 = vsel %vm1710, %v1687, %v1062
      %v1719 = vsel %vm1710, %v1688, %v1064
      %v1720 = vsel %vm1710, %v1689, %v1066
      %v1721 = vsel %vm1710, %v1690, %v1068
      %v1722 = vsel %vm1710, %v1691, %v1070
      %v1723 = vsel %vm1710, %v1692, %v1072
      %v1724 = vsel %vm1710, %v1693, %v1074
      %v1725 = vsel %vm1710, %v1694, %v1076
      %v1726 = vsel %vm1710, %v1695, %v1078
      %v1727 = vsel %vm1710, %v1696, %v1080
      %v1728 = vsel %vm1710, %v1697, %v1082
      %v1729 = vsel %vm1710, %v1698, %v1084
      %v1730 = vsel %vm1710, %v1699, %v1086
      %v1731 = vsel %vm1710, %v1700, %v1088
      %v1732 = vsel %vm1710, %v1701, %v1090
      %v1733 = vsel %vm1710, %v1702, %v1092
      %v1734 = vsel %vm1710, %v1703, %v1094
      %v1735 = vsel %vm1710, %v1704, %v1096
      %v1736 = vsel %vm1710, %v1705, %v1098
      %v1737 = vsel %vm1710, %v1706, %v1100
      %v1738 = vsel %vm1710, %v1707, %v1102
      %v1739 = vsel %vm1710, %v1708, %v1104
      %v1740 = vsel %vm1710, %v1709, %v1106
      %vm1741 = vcmask 162816
      %v1742 = vsel %vm1741, %v1711, %v1168
      %v1743 = vsel %vm1741, %v1712, %v1170
      %v1744 = vsel %vm1741, %v1713, %v1172
      %v1745 = vsel %vm1741, %v1714, %v1174
      %v1746 = vsel %vm1741, %v1715, %v1176
      %v1747 = vsel %vm1741, %v1716, %v1178
      %v1748 = vsel %vm1741, %v1717, %v1180
      %v1749 = vsel %vm1741, %v1718, %v1182
      %v1750 = vsel %vm1741, %v1719, %v1184
      %v1751 = vsel %vm1741, %v1720, %v1186
      %v1752 = vsel %vm1741, %v1721, %v1188
      %v1753 = vsel %vm1741, %v1722, %v1190
      %v1754 = vsel %vm1741, %v1723, %v1192
      %v1755 = vsel %vm1741, %v1724, %v1194
      %v1756 = vsel %vm1741, %v1725, %v1196
      %v1757 = vsel %vm1741, %v1726, %v1198
      %v1758 = vsel %vm1741, %v1727, %v1200
      %v1759 = vsel %vm1741, %v1728, %v1202
      %v1760 = vsel %vm1741, %v1729, %v1204
      %v1761 = vsel %vm1741, %v1730, %v1206
      %v1762 = vsel %vm1741, %v1731, %v1208
      %v1763 = vsel %vm1741, %v1732, %v1210
      %v1764 = vsel %vm1741, %v1733, %v1212
      %v1765 = vsel %vm1741, %v1734, %v1214
      %v1766 = vsel %vm1741, %v1735, %v1216
      %v1767 = vsel %vm1741, %v1736, %v1218
      %v1768 = vsel %vm1741, %v1737, %v1220
      %v1769 = vsel %vm1741, %v1738, %v1222
      %v1770 = vsel %vm1741, %v1739, %v1224
      %v1771 = vsel %vm1741, %v1740, %v1226
      %vm1772 = vcmask 195584
      %v1773 = vsel %vm1772, %v1742, %v1288
      %v1774 = vsel %vm1772, %v1743, %v1290
      %v1775 = vsel %vm1772, %v1744, %v1292
      %v1776 = vsel %vm1772, %v1745, %v1294
      %v1777 = vsel %vm1772, %v1746, %v1296
      %v1778 = vsel %vm1772, %v1747, %v1298
      %v1779 = vsel %vm1772, %v1748, %v1300
      %v1780 = vsel %vm1772, %v1749, %v1302
      %v1781 = vsel %vm1772, %v1750, %v1304
      %v1782 = vsel %vm1772, %v1751, %v1306
      %v1783 = vsel %vm1772, %v1752, %v1308
      %v1784 = vsel %vm1772, %v1753, %v1310
      %v1785 = vsel %vm1772, %v1754, %v1312
      %v1786 = vsel %vm1772, %v1755, %v1314
      %v1787 = vsel %vm1772, %v1756, %v1316
      %v1788 = vsel %vm1772, %v1757, %v1318
      %v1789 = vsel %vm1772, %v1758, %v1320
      %v1790 = vsel %vm1772, %v1759, %v1322
      %v1791 = vsel %vm1772, %v1760, %v1324
      %v1792 = vsel %vm1772, %v1761, %v1326
      %v1793 = vsel %vm1772, %v1762, %v1328
      %v1794 = vsel %vm1772, %v1763, %v1330
      %v1795 = vsel %vm1772, %v1764, %v1332
      %v1796 = vsel %vm1772, %v1765, %v1334
      %v1797 = vsel %vm1772, %v1766, %v1336
      %v1798 = vsel %vm1772, %v1767, %v1338
      %v1799 = vsel %vm1772, %v1768, %v1340
      %v1800 = vsel %vm1772, %v1769, %v1342
      %v1801 = vsel %vm1772, %v1770, %v1344
      %v1802 = vsel %vm1772, %v1771, %v1346
      %vm1803 = vcmask 228352
      %v1804 = vsel %vm1803, %v1773, %v1408
      %v1805 = vsel %vm1803, %v1774, %v1410
      %v1806 = vsel %vm1803, %v1775, %v1412
      %v1807 = vsel %vm1803, %v1776, %v1414
      %v1808 = vsel %vm1803, %v1777, %v1416
      %v1809 = vsel %vm1803, %v1778, %v1418
      %v1810 = vsel %vm1803, %v1779, %v1420
      %v1811 = vsel %vm1803, %v1780, %v1422
      %v1812 = vsel %vm1803, %v1781, %v1424
      %v1813 = vsel %vm1803, %v1782, %v1426
      %v1814 = vsel %vm1803, %v1783, %v1428
      %v1815 = vsel %vm1803, %v1784, %v1430
      %v1816 = vsel %vm1803, %v1785, %v1432
      %v1817 = vsel %vm1803, %v1786, %v1434
      %v1818 = vsel %vm1803, %v1787, %v1436
      %v1819 = vsel %vm1803, %v1788, %v1438
      %v1820 = vsel %vm1803, %v1789, %v1440
      %v1821 = vsel %vm1803, %v1790, %v1442
      %v1822 = vsel %vm1803, %v1791, %v1444
      %v1823 = vsel %vm1803, %v1792, %v1446
      %v1824 = vsel %vm1803, %v1793, %v1448
      %v1825 = vsel %vm1803, %v1794, %v1450
      %v1826 = vsel %vm1803, %v1795, %v1452
      %v1827 = vsel %vm1803, %v1796, %v1454
      %v1828 = vsel %vm1803, %v1797, %v1456
      %v1829 = vsel %vm1803, %v1798, %v1458
      %v1830 = vsel %vm1803, %v1799, %v1460
      %v1831 = vsel %vm1803, %v1800, %v1462
      %v1832 = vsel %vm1803, %v1801, %v1464
      %v1833 = vsel %vm1803, %v1802, %v1466
      %vm1834 = vcmask 261120
      %v1835 = vsel %vm1834, %v1804, %v1528
      %v1836 = vsel %vm1834, %v1805, %v1530
      %v1837 = vsel %vm1834, %v1806, %v1532
      %v1838 = vsel %vm1834, %v1807, %v1534
      %v1839 = vsel %vm1834, %v1808, %v1536
      %v1840 = vsel %vm1834, %v1809, %v1538
      %v1841 = vsel %vm1834, %v1810, %v1540
      %v1842 = vsel %vm1834, %v1811, %v1542
      %v1843 = vsel %vm1834, %v1812, %v1544
      %v1844 = vsel %vm1834, %v1813, %v1546
      %v1845 = vsel %vm1834, %v1814, %v1548
      %v1846 = vsel %vm1834, %v1815, %v1550
      %v1847 = vsel %vm1834, %v1816, %v1552
      %v1848 = vsel %vm1834, %v1817, %v1554
      %v1849 = vsel %vm1834, %v1818, %v1556
      %v1850 = vsel %vm1834, %v1819, %v1558
      %v1851 = vsel %vm1834, %v1820, %v1560
      %v1852 = vsel %vm1834, %v1821, %v1562
      %v1853 = vsel %vm1834, %v1822, %v1564
      %v1854 = vsel %vm1834, %v1823, %v1566
      %v1855 = vsel %vm1834, %v1824, %v1568
      %v1856 = vsel %vm1834, %v1825, %v1570
      %v1857 = vsel %vm1834, %v1826, %v1572
      %v1858 = vsel %vm1834, %v1827, %v1574
      %v1859 = vsel %vm1834, %v1828, %v1576
      %v1860 = vsel %vm1834, %v1829, %v1578
      %v1861 = vsel %vm1834, %v1830, %v1580
      %v1862 = vsel %vm1834, %v1831, %v1582
      %v1863 = vsel %vm1834, %v1832, %v1584
      %v1864 = vsel %vm1834, %v1833, %v1586
      %v1895 = vcombine.high %v1835, %v1835
      %v1897 = vunpack.c.l.s4 1983009808
      %v1898 = vunpack.c.0.s8 %v1897
      %v1899 = vlaneseq
      %v1900 = vshrl.u32 %v1899, 7
      %v1901 = vsub.s32 %v1898, %v1900
      %v1902 = vrot.slane %v1835, %v1901
      %v1904 = vunpack.c.l.s4 1983009808
      %v1905 = vunpack.c.0.s8 %v1904
      %v1906 = vlaneseq
      %v1907 = vshrl.u32 %v1906, 7
      %v1908 = vsub.s32 %v1905, %v1907
      %v1909 = vrot.slane %v1895, %v1908
      %v1910 = vcombine.high %v1902, %v1902
      %v1911 = vcombine.high %v1909, %v1909
      %v1912 = vcombine.high %v1836, %v1836
      %v1914 = vunpack.c.l.s4 1983009808
      %v1915 = vunpack.c.0.s8 %v1914
      %v1916 = vlaneseq
      %v1917 = vshrl.u32 %v1916, 7
      %v1918 = vsub.s32 %v1915, %v1917
      %v1919 = vrot.slane %v1836, %v1918
      %v1921 = vunpack.c.l.s4 1983009808
      %v1922 = vunpack.c.0.s8 %v1921
      %v1923 = vlaneseq
      %v1924 = vshrl.u32 %v1923, 7
      %v1925 = vsub.s32 %v1922, %v1924
      %v1926 = vrot.slane %v1912, %v1925
      %v1927 = vcombine.high %v1919, %v1919
      %v1928 = vcombine.high %v1926, %v1926
      %v1930 = vunpack.c.l.s4 1983009808
      %v1931 = vunpack.c.0.s8 %v1930
      %v1932 = vlaneseq
      %v1933 = vshrl.u32 %v1932, 7
      %v1934 = vsub.s32 %v1931, %v1933
      %v1935 = vrot.slane %v1837, %v1934
      %v1936 = vcombine.high %v1838, %v1838
      %v1938 = vunpack.c.l.s4 1983009808
      %v1939 = vunpack.c.0.s8 %v1938
      %v1940 = vlaneseq
      %v1941 = vshrl.u32 %v1940, 7
      %v1942 = vsub.s32 %v1939, %v1941
      %v1943 = vrot.slane %v1838, %v1942
      %v1945 = vunpack.c.l.s4 1983009808
      %v1946 = vunpack.c.0.s8 %v1945
      %v1947 = vlaneseq
      %v1948 = vshrl.u32 %v1947, 7
      %v1949 = vsub.s32 %v1946, %v1948
      %v1950 = vrot.slane %v1936, %v1949
      %v1951 = vcombine.high %v1943, %v1943
      %v1952 = vcombine.high %v1950, %v1950
      %v1953 = vcombine.high %v1839, %v1839
      %v1955 = vunpack.c.l.s4 1983009808
      %v1956 = vunpack.c.0.s8 %v1955
      %v1957 = vlaneseq
      %v1958 = vshrl.u32 %v1957, 7
      %v1959 = vsub.s32 %v1956, %v1958
      %v1960 = vrot.slane %v1839, %v1959
      %v1962 = vunpack.c.l.s4 1983009808
      %v1963 = vunpack.c.0.s8 %v1962
      %v1964 = vlaneseq
      %v1965 = vshrl.u32 %v1964, 7
      %v1966 = vsub.s32 %v1963, %v1965
      %v1967 = vrot.slane %v1953, %v1966
      %v1968 = vcombine.high %v1960, %v1960
      %v1969 = vcombine.high %v1967, %v1967
      %v1971 = vunpack.c.l.s4 1983009808
      %v1972 = vunpack.c.0.s8 %v1971
      %v1973 = vlaneseq
      %v1974 = vshrl.u32 %v1973, 7
      %v1975 = vsub.s32 %v1972, %v1974
      %v1976 = vrot.slane %v1840, %v1975
      %v1977 = vcombine.high %v1841, %v1841
      %v1979 = vunpack.c.l.s4 1983009808
      %v1980 = vunpack.c.0.s8 %v1979
      %v1981 = vlaneseq
      %v1982 = vshrl.u32 %v1981, 7
      %v1983 = vsub.s32 %v1980, %v1982
      %v1984 = vrot.slane %v1841, %v1983
      %v1986 = vunpack.c.l.s4 1983009808
      %v1987 = vunpack.c.0.s8 %v1986
      %v1988 = vlaneseq
      %v1989 = vshrl.u32 %v1988, 7
      %v1990 = vsub.s32 %v1987, %v1989
      %v1991 = vrot.slane %v1977, %v1990
      %v1992 = vcombine.high %v1984, %v1984
      %v1993 = vcombine.high %v1991, %v1991
      %v1994 = vcombine.high %v1842, %v1842
      %v1996 = vunpack.c.l.s4 1983009808
      %v1997 = vunpack.c.0.s8 %v1996
      %v1998 = vlaneseq
      %v1999 = vshrl.u32 %v1998, 7
      %v2000 = vsub.s32 %v1997, %v1999
      %v2001 = vrot.slane %v1842, %v2000
      %v2003 = vunpack.c.l.s4 1983009808
      %v2004 = vunpack.c.0.s8 %v2003
      %v2005 = vlaneseq
      %v2006 = vshrl.u32 %v2005, 7
      %v2007 = vsub.s32 %v2004, %v2006
      %v2008 = vrot.slane %v1994, %v2007
      %v2009 = vcombine.high %v2001, %v2001
      %v2010 = vcombine.high %v2008, %v2008
      %v2012 = vunpack.c.l.s4 1983009808
      %v2013 = vunpack.c.0.s8 %v2012
      %v2014 = vlaneseq
      %v2015 = vshrl.u32 %v2014, 7
      %v2016 = vsub.s32 %v2013, %v2015
      %v2017 = vrot.slane %v1843, %v2016
      %v2018 = vcombine.high %v1844, %v1844
      %v2020 = vunpack.c.l.s4 1983009808
      %v2021 = vunpack.c.0.s8 %v2020
      %v2022 = vlaneseq
      %v2023 = vshrl.u32 %v2022, 7
      %v2024 = vsub.s32 %v2021, %v2023
      %v2025 = vrot.slane %v1844, %v2024
      %v2027 = vunpack.c.l.s4 1983009808
      %v2028 = vunpack.c.0.s8 %v2027
      %v2029 = vlaneseq
      %v2030 = vshrl.u32 %v2029, 7
      %v2031 = vsub.s32 %v2028, %v2030
      %v2032 = vrot.slane %v2018, %v2031
      %v2033 = vcombine.high %v2025, %v2025
      %v2034 = vcombine.high %v2032, %v2032
      %v2035 = vcombine.high %v1845, %v1845
      %v2037 = vunpack.c.l.s4 1983009808
      %v2038 = vunpack.c.0.s8 %v2037
      %v2039 = vlaneseq
      %v2040 = vshrl.u32 %v2039, 7
      %v2041 = vsub.s32 %v2038, %v2040
      %v2042 = vrot.slane %v1845, %v2041
      %v2044 = vunpack.c.l.s4 1983009808
      %v2045 = vunpack.c.0.s8 %v2044
      %v2046 = vlaneseq
      %v2047 = vshrl.u32 %v2046, 7
      %v2048 = vsub.s32 %v2045, %v2047
      %v2049 = vrot.slane %v2035, %v2048
      %v2050 = vcombine.high %v2042, %v2042
      %v2051 = vcombine.high %v2049, %v2049
      %v2053 = vunpack.c.l.s4 1983009808
      %v2054 = vunpack.c.0.s8 %v2053
      %v2055 = vlaneseq
      %v2056 = vshrl.u32 %v2055, 7
      %v2057 = vsub.s32 %v2054, %v2056
      %v2058 = vrot.slane %v1846, %v2057
      %v2059 = vcombine.high %v1847, %v1847
      %v2061 = vunpack.c.l.s4 1983009808
      %v2062 = vunpack.c.0.s8 %v2061
      %v2063 = vlaneseq
      %v2064 = vshrl.u32 %v2063, 7
      %v2065 = vsub.s32 %v2062, %v2064
      %v2066 = vrot.slane %v1847, %v2065
      %v2068 = vunpack.c.l.s4 1983009808
      %v2069 = vunpack.c.0.s8 %v2068
      %v2070 = vlaneseq
      %v2071 = vshrl.u32 %v2070, 7
      %v2072 = vsub.s32 %v2069, %v2071
      %v2073 = vrot.slane %v2059, %v2072
      %v2074 = vcombine.high %v2066, %v2066
      %v2075 = vcombine.high %v2073, %v2073
      %v2076 = vcombine.high %v1848, %v1848
      %v2078 = vunpack.c.l.s4 1983009808
      %v2079 = vunpack.c.0.s8 %v2078
      %v2080 = vlaneseq
      %v2081 = vshrl.u32 %v2080, 7
      %v2082 = vsub.s32 %v2079, %v2081
      %v2083 = vrot.slane %v1848, %v2082
      %v2085 = vunpack.c.l.s4 1983009808
      %v2086 = vunpack.c.0.s8 %v2085
      %v2087 = vlaneseq
      %v2088 = vshrl.u32 %v2087, 7
      %v2089 = vsub.s32 %v2086, %v2088
      %v2090 = vrot.slane %v2076, %v2089
      %v2091 = vcombine.high %v2083, %v2083
      %v2092 = vcombine.high %v2090, %v2090
      %v2094 = vunpack.c.l.s4 1983009808
      %v2095 = vunpack.c.0.s8 %v2094
      %v2096 = vlaneseq
      %v2097 = vshrl.u32 %v2096, 7
      %v2098 = vsub.s32 %v2095, %v2097
      %v2099 = vrot.slane %v1849, %v2098
      %v2100 = vcombine.high %v1850, %v1850
      %v2102 = vunpack.c.l.s4 1983009808
      %v2103 = vunpack.c.0.s8 %v2102
      %v2104 = vlaneseq
      %v2105 = vshrl.u32 %v2104, 7
      %v2106 = vsub.s32 %v2103, %v2105
      %v2107 = vrot.slane %v1850, %v2106
      %v2109 = vunpack.c.l.s4 1983009808
      %v2110 = vunpack.c.0.s8 %v2109
      %v2111 = vlaneseq
      %v2112 = vshrl.u32 %v2111, 7
      %v2113 = vsub.s32 %v2110, %v2112
      %v2114 = vrot.slane %v2100, %v2113
      %v2115 = vcombine.high %v2107, %v2107
      %v2116 = vcombine.high %v2114, %v2114
      %v2117 = vcombine.high %v1851, %v1851
      %v2119 = vunpack.c.l.s4 1983009808
      %v2120 = vunpack.c.0.s8 %v2119
      %v2121 = vlaneseq
      %v2122 = vshrl.u32 %v2121, 7
      %v2123 = vsub.s32 %v2120, %v2122
      %v2124 = vrot.slane %v1851, %v2123
      %v2126 = vunpack.c.l.s4 1983009808
      %v2127 = vunpack.c.0.s8 %v2126
      %v2128 = vlaneseq
      %v2129 = vshrl.u32 %v2128, 7
      %v2130 = vsub.s32 %v2127, %v2129
      %v2131 = vrot.slane %v2117, %v2130
      %v2132 = vcombine.high %v2124, %v2124
      %v2133 = vcombine.high %v2131, %v2131
      %v2135 = vunpack.c.l.s4 1983009808
      %v2136 = vunpack.c.0.s8 %v2135
      %v2137 = vlaneseq
      %v2138 = vshrl.u32 %v2137, 7
      %v2139 = vsub.s32 %v2136, %v2138
      %v2140 = vrot.slane %v1852, %v2139
      %v2141 = vcombine.high %v1853, %v1853
      %v2143 = vunpack.c.l.s4 1983009808
      %v2144 = vunpack.c.0.s8 %v2143
      %v2145 = vlaneseq
      %v2146 = vshrl.u32 %v2145, 7
      %v2147 = vsub.s32 %v2144, %v2146
      %v2148 = vrot.slane %v1853, %v2147
      %v2150 = vunpack.c.l.s4 1983009808
      %v2151 = vunpack.c.0.s8 %v2150
      %v2152 = vlaneseq
      %v2153 = vshrl.u32 %v2152, 7
      %v2154 = vsub.s32 %v2151, %v2153
      %v2155 = vrot.slane %v2141, %v2154
      %v2156 = vcombine.high %v2148, %v2148
      %v2157 = vcombine.high %v2155, %v2155
      %v2158 = vcombine.high %v1854, %v1854
      %v2160 = vunpack.c.l.s4 1983009808
      %v2161 = vunpack.c.0.s8 %v2160
      %v2162 = vlaneseq
      %v2163 = vshrl.u32 %v2162, 7
      %v2164 = vsub.s32 %v2161, %v2163
      %v2165 = vrot.slane %v1854, %v2164
      %v2167 = vunpack.c.l.s4 1983009808
      %v2168 = vunpack.c.0.s8 %v2167
      %v2169 = vlaneseq
      %v2170 = vshrl.u32 %v2169, 7
      %v2171 = vsub.s32 %v2168, %v2170
      %v2172 = vrot.slane %v2158, %v2171
      %v2173 = vcombine.high %v2165, %v2165
      %v2174 = vcombine.high %v2172, %v2172
      %v2176 = vunpack.c.l.s4 1983009808
      %v2177 = vunpack.c.0.s8 %v2176
      %v2178 = vlaneseq
      %v2179 = vshrl.u32 %v2178, 7
      %v2180 = vsub.s32 %v2177, %v2179
      %v2181 = vrot.slane %v1855, %v2180
      %v2182 = vcombine.high %v1856, %v1856
      %v2184 = vunpack.c.l.s4 1983009808
      %v2185 = vunpack.c.0.s8 %v2184
      %v2186 = vlaneseq
      %v2187 = vshrl.u32 %v2186, 7
      %v2188 = vsub.s32 %v2185, %v2187
      %v2189 = vrot.slane %v1856, %v2188
      %v2191 = vunpack.c.l.s4 1983009808
      %v2192 = vunpack.c.0.s8 %v2191
      %v2193 = vlaneseq
      %v2194 = vshrl.u32 %v2193, 7
      %v2195 = vsub.s32 %v2192, %v2194
      %v2196 = vrot.slane %v2182, %v2195
      %v2197 = vcombine.high %v2189, %v2189
      %v2198 = vcombine.high %v2196, %v2196
      %v2199 = vcombine.high %v1857, %v1857
      %v2201 = vunpack.c.l.s4 1983009808
      %v2202 = vunpack.c.0.s8 %v2201
      %v2203 = vlaneseq
      %v2204 = vshrl.u32 %v2203, 7
      %v2205 = vsub.s32 %v2202, %v2204
      %v2206 = vrot.slane %v1857, %v2205
      %v2208 = vunpack.c.l.s4 1983009808
      %v2209 = vunpack.c.0.s8 %v2208
      %v2210 = vlaneseq
      %v2211 = vshrl.u32 %v2210, 7
      %v2212 = vsub.s32 %v2209, %v2211
      %v2213 = vrot.slane %v2199, %v2212
      %v2214 = vcombine.high %v2206, %v2206
      %v2215 = vcombine.high %v2213, %v2213
      %v2217 = vunpack.c.l.s4 1983009808
      %v2218 = vunpack.c.0.s8 %v2217
      %v2219 = vlaneseq
      %v2220 = vshrl.u32 %v2219, 7
      %v2221 = vsub.s32 %v2218, %v2220
      %v2222 = vrot.slane %v1858, %v2221
      %v2223 = vcombine.high %v1859, %v1859
      %v2225 = vunpack.c.l.s4 1983009808
      %v2226 = vunpack.c.0.s8 %v2225
      %v2227 = vlaneseq
      %v2228 = vshrl.u32 %v2227, 7
      %v2229 = vsub.s32 %v2226, %v2228
      %v2230 = vrot.slane %v1859, %v2229
      %v2232 = vunpack.c.l.s4 1983009808
      %v2233 = vunpack.c.0.s8 %v2232
      %v2234 = vlaneseq
      %v2235 = vshrl.u32 %v2234, 7
      %v2236 = vsub.s32 %v2233, %v2235
      %v2237 = vrot.slane %v2223, %v2236
      %v2238 = vcombine.high %v2230, %v2230
      %v2239 = vcombine.high %v2237, %v2237
      %v2240 = vcombine.high %v1860, %v1860
      %v2242 = vunpack.c.l.s4 1983009808
      %v2243 = vunpack.c.0.s8 %v2242
      %v2244 = vlaneseq
      %v2245 = vshrl.u32 %v2244, 7
      %v2246 = vsub.s32 %v2243, %v2245
      %v2247 = vrot.slane %v1860, %v2246
      %v2249 = vunpack.c.l.s4 1983009808
      %v2250 = vunpack.c.0.s8 %v2249
      %v2251 = vlaneseq
      %v2252 = vshrl.u32 %v2251, 7
      %v2253 = vsub.s32 %v2250, %v2252
      %v2254 = vrot.slane %v2240, %v2253
      %v2255 = vcombine.high %v2247, %v2247
      %v2256 = vcombine.high %v2254, %v2254
      %v2258 = vunpack.c.l.s4 1983009808
      %v2259 = vunpack.c.0.s8 %v2258
      %v2260 = vlaneseq
      %v2261 = vshrl.u32 %v2260, 7
      %v2262 = vsub.s32 %v2259, %v2261
      %v2263 = vrot.slane %v1861, %v2262
      %v2264 = vcombine.high %v1862, %v1862
      %v2266 = vunpack.c.l.s4 1983009808
      %v2267 = vunpack.c.0.s8 %v2266
      %v2268 = vlaneseq
      %v2269 = vshrl.u32 %v2268, 7
      %v2270 = vsub.s32 %v2267, %v2269
      %v2271 = vrot.slane %v1862, %v2270
      %v2273 = vunpack.c.l.s4 1983009808
      %v2274 = vunpack.c.0.s8 %v2273
      %v2275 = vlaneseq
      %v2276 = vshrl.u32 %v2275, 7
      %v2277 = vsub.s32 %v2274, %v2276
      %v2278 = vrot.slane %v2264, %v2277
      %v2279 = vcombine.high %v2271, %v2271
      %v2280 = vcombine.high %v2278, %v2278
      %v2281 = vcombine.high %v1863, %v1863
      %v2283 = vunpack.c.l.s4 1983009808
      %v2284 = vunpack.c.0.s8 %v2283
      %v2285 = vlaneseq
      %v2286 = vshrl.u32 %v2285, 7
      %v2287 = vsub.s32 %v2284, %v2286
      %v2288 = vrot.slane %v1863, %v2287
      %v2290 = vunpack.c.l.s4 1983009808
      %v2291 = vunpack.c.0.s8 %v2290
      %v2292 = vlaneseq
      %v2293 = vshrl.u32 %v2292, 7
      %v2294 = vsub.s32 %v2291, %v2293
      %v2295 = vrot.slane %v2281, %v2294
      %v2296 = vcombine.high %v2288, %v2288
      %v2297 = vcombine.high %v2295, %v2295
      %v2299 = vunpack.c.l.s4 1983009808
      %v2300 = vunpack.c.0.s8 %v2299
      %v2301 = vlaneseq
      %v2302 = vshrl.u32 %v2301, 7
      %v2303 = vsub.s32 %v2300, %v2302
      %v2304 = vrot.slane %v1864, %v2303
      %v2305 = vld [vmem:[%s1] sm:$0xff]
      %v2306 = vld [vmem:[%s1 + $0x8] sm:$0xff]
      %v2307 = vld [vmem:[%s1 + $0x10] sm:$0xff]
      %v2308 = vld [vmem:[%s1 + $0x18] sm:$0xff]
      %v2309 = vld [vmem:[%s1 + $0x20] sm:$0xf]
      %v2310 = vld [vmem:[%s2] sm:$0x1]
      %v2312 = vlaneseq
      %v2313 = vshrl.u32 %v2312, 7
      %v2314 = vsub.s32 0, %v2313
      %v2315 = vrot.slane %v2310, %v2314
      %v2317 = vcombine.low %v1902, %v1910
      %v2318 = vcombine.low %v1909, %v1911
      %v2320 = vunpack.c.l.s4 1983009808
      %v2321 = vunpack.c.0.s8 %v2320
      %v2322 = vlaneseq
      %v2323 = vshrl.u32 %v2322, 7
      %v2324 = vsub.s32 %v2321, %v2323
      %v2325 = vrot.slane %v2317, %v2324
      %v2327 = vunpack.c.l.s4 1983009808
      %v2328 = vunpack.c.0.s8 %v2327
      %v2329 = vlaneseq
      %v2330 = vshrl.u32 %v2329, 7
      %v2331 = vsub.s32 %v2328, %v2330
      %v2332 = vrot.slane %v2318, %v2331
      %v2333 = vcombine.low %v2325, %v2332
      %v2334 = vcombine.low %v1919, %v1927
      %v2335 = vcombine.low %v1926, %v1928
      %v2337 = vunpack.c.l.s4 1983009808
      %v2338 = vunpack.c.0.s8 %v2337
      %v2339 = vlaneseq
      %v2340 = vshrl.u32 %v2339, 7
      %v2341 = vsub.s32 %v2338, %v2340
      %v2342 = vrot.slane %v2334, %v2341
      %v2344 = vunpack.c.l.s4 1983009808
      %v2345 = vunpack.c.0.s8 %v2344
      %v2346 = vlaneseq
      %v2347 = vshrl.u32 %v2346, 7
      %v2348 = vsub.s32 %v2345, %v2347
      %v2349 = vrot.slane %v2335, %v2348
      %v2350 = vcombine.low %v2342, %v2349
      %v2351 = vcombine.low %v1935, %v1943
      %v2352 = vcombine.low %v1951, %v1950
      %v2354 = vunpack.c.l.s4 1983009808
      %v2355 = vunpack.c.0.s8 %v2354
      %v2356 = vlaneseq
      %v2357 = vshrl.u32 %v2356, 7
      %v2358 = vsub.s32 %v2355, %v2357
      %v2359 = vrot.slane %v2351, %v2358
      %v2361 = vunpack.c.l.s4 1983009808
      %v2362 = vunpack.c.0.s8 %v2361
      %v2363 = vlaneseq
      %v2364 = vshrl.u32 %v2363, 7
      %v2365 = vsub.s32 %v2362, %v2364
      %v2366 = vrot.slane %v2352, %v2365
      %v2367 = vcombine.low %v2359, %v2366
      %v2368 = vcombine.low %v1952, %v1960
      %v2369 = vcombine.low %v1968, %v1967
      %v2371 = vunpack.c.l.s4 1983009808
      %v2372 = vunpack.c.0.s8 %v2371
      %v2373 = vlaneseq
      %v2374 = vshrl.u32 %v2373, 7
      %v2375 = vsub.s32 %v2372, %v2374
      %v2376 = vrot.slane %v2368, %v2375
      %v2378 = vunpack.c.l.s4 1983009808
      %v2379 = vunpack.c.0.s8 %v2378
      %v2380 = vlaneseq
      %v2381 = vshrl.u32 %v2380, 7
      %v2382 = vsub.s32 %v2379, %v2381
      %v2383 = vrot.slane %v2369, %v2382
      %v2384 = vcombine.low %v2376, %v2383
      %v2385 = vcombine.low %v1969, %v1976
      %v2386 = vcombine.low %v1984, %v1992
      %v2388 = vunpack.c.l.s4 1983009808
      %v2389 = vunpack.c.0.s8 %v2388
      %v2390 = vlaneseq
      %v2391 = vshrl.u32 %v2390, 7
      %v2392 = vsub.s32 %v2389, %v2391
      %v2393 = vrot.slane %v2385, %v2392
      %v2395 = vunpack.c.l.s4 1983009808
      %v2396 = vunpack.c.0.s8 %v2395
      %v2397 = vlaneseq
      %v2398 = vshrl.u32 %v2397, 7
      %v2399 = vsub.s32 %v2396, %v2398
      %v2400 = vrot.slane %v2386, %v2399
      %v2401 = vcombine.low %v2393, %v2400
      %v2402 = vcombine.low %v1991, %v1993
      %v2403 = vcombine.low %v2001, %v2009
      %v2405 = vunpack.c.l.s4 1983009808
      %v2406 = vunpack.c.0.s8 %v2405
      %v2407 = vlaneseq
      %v2408 = vshrl.u32 %v2407, 7
      %v2409 = vsub.s32 %v2406, %v2408
      %v2410 = vrot.slane %v2402, %v2409
      %v2412 = vunpack.c.l.s4 1983009808
      %v2413 = vunpack.c.0.s8 %v2412
      %v2414 = vlaneseq
      %v2415 = vshrl.u32 %v2414, 7
      %v2416 = vsub.s32 %v2413, %v2415
      %v2417 = vrot.slane %v2403, %v2416
      %v2418 = vcombine.low %v2410, %v2417
      %v2419 = vcombine.low %v2008, %v2010
      %v2420 = vcombine.low %v2017, %v2025
      %v2422 = vunpack.c.l.s4 1983009808
      %v2423 = vunpack.c.0.s8 %v2422
      %v2424 = vlaneseq
      %v2425 = vshrl.u32 %v2424, 7
      %v2426 = vsub.s32 %v2423, %v2425
      %v2427 = vrot.slane %v2419, %v2426
      %v2429 = vunpack.c.l.s4 1983009808
      %v2430 = vunpack.c.0.s8 %v2429
      %v2431 = vlaneseq
      %v2432 = vshrl.u32 %v2431, 7
      %v2433 = vsub.s32 %v2430, %v2432
      %v2434 = vrot.slane %v2420, %v2433
      %v2435 = vcombine.low %v2427, %v2434
      %v2436 = vcombine.low %v2033, %v2032
      %v2437 = vcombine.low %v2034, %v2042
      %v2439 = vunpack.c.l.s4 1983009808
      %v2440 = vunpack.c.0.s8 %v2439
      %v2441 = vlaneseq
      %v2442 = vshrl.u32 %v2441, 7
      %v2443 = vsub.s32 %v2440, %v2442
      %v2444 = vrot.slane %v2436, %v2443
      %v2446 = vunpack.c.l.s4 1983009808
      %v2447 = vunpack.c.0.s8 %v2446
      %v2448 = vlaneseq
      %v2449 = vshrl.u32 %v2448, 7
      %v2450 = vsub.s32 %v2447, %v2449
      %v2451 = vrot.slane %v2437, %v2450
      %v2452 = vcombine.low %v2444, %v2451
      %v2453 = vcombine.low %v2050, %v2049
      %v2454 = vcombine.low %v2051, %v2058
      %v2456 = vunpack.c.l.s4 1983009808
      %v2457 = vunpack.c.0.s8 %v2456
      %v2458 = vlaneseq
      %v2459 = vshrl.u32 %v2458, 7
      %v2460 = vsub.s32 %v2457, %v2459
      %v2461 = vrot.slane %v2453, %v2460
      %v2463 = vunpack.c.l.s4 1983009808
      %v2464 = vunpack.c.0.s8 %v2463
      %v2465 = vlaneseq
      %v2466 = vshrl.u32 %v2465, 7
      %v2467 = vsub.s32 %v2464, %v2466
      %v2468 = vrot.slane %v2454, %v2467
      %v2469 = vcombine.low %v2461, %v2468
      %v2470 = vcombine.low %v2066, %v2074
      %v2471 = vcombine.low %v2073, %v2075
      %v2473 = vunpack.c.l.s4 1983009808
      %v2474 = vunpack.c.0.s8 %v2473
      %v2475 = vlaneseq
      %v2476 = vshrl.u32 %v2475, 7
      %v2477 = vsub.s32 %v2474, %v2476
      %v2478 = vrot.slane %v2470, %v2477
      %v2480 = vunpack.c.l.s4 1983009808
      %v2481 = vunpack.c.0.s8 %v2480
      %v2482 = vlaneseq
      %v2483 = vshrl.u32 %v2482, 7
      %v2484 = vsub.s32 %v2481, %v2483
      %v2485 = vrot.slane %v2471, %v2484
      %v2486 = vcombine.low %v2478, %v2485
      %v2487 = vcombine.low %v2083, %v2091
      %v2488 = vcombine.low %v2090, %v2092
      %v2490 = vunpack.c.l.s4 1983009808
      %v2491 = vunpack.c.0.s8 %v2490
      %v2492 = vlaneseq
      %v2493 = vshrl.u32 %v2492, 7
      %v2494 = vsub.s32 %v2491, %v2493
      %v2495 = vrot.slane %v2487, %v2494
      %v2497 = vunpack.c.l.s4 1983009808
      %v2498 = vunpack.c.0.s8 %v2497
      %v2499 = vlaneseq
      %v2500 = vshrl.u32 %v2499, 7
      %v2501 = vsub.s32 %v2498, %v2500
      %v2502 = vrot.slane %v2488, %v2501
      %v2503 = vcombine.low %v2495, %v2502
      %v2504 = vcombine.low %v2099, %v2107
      %v2505 = vcombine.low %v2115, %v2114
      %v2507 = vunpack.c.l.s4 1983009808
      %v2508 = vunpack.c.0.s8 %v2507
      %v2509 = vlaneseq
      %v2510 = vshrl.u32 %v2509, 7
      %v2511 = vsub.s32 %v2508, %v2510
      %v2512 = vrot.slane %v2504, %v2511
      %v2514 = vunpack.c.l.s4 1983009808
      %v2515 = vunpack.c.0.s8 %v2514
      %v2516 = vlaneseq
      %v2517 = vshrl.u32 %v2516, 7
      %v2518 = vsub.s32 %v2515, %v2517
      %v2519 = vrot.slane %v2505, %v2518
      %v2520 = vcombine.low %v2512, %v2519
      %v2521 = vcombine.low %v2116, %v2124
      %v2522 = vcombine.low %v2132, %v2131
      %v2524 = vunpack.c.l.s4 1983009808
      %v2525 = vunpack.c.0.s8 %v2524
      %v2526 = vlaneseq
      %v2527 = vshrl.u32 %v2526, 7
      %v2528 = vsub.s32 %v2525, %v2527
      %v2529 = vrot.slane %v2521, %v2528
      %v2531 = vunpack.c.l.s4 1983009808
      %v2532 = vunpack.c.0.s8 %v2531
      %v2533 = vlaneseq
      %v2534 = vshrl.u32 %v2533, 7
      %v2535 = vsub.s32 %v2532, %v2534
      %v2536 = vrot.slane %v2522, %v2535
      %v2537 = vcombine.low %v2529, %v2536
      %v2538 = vcombine.low %v2133, %v2140
      %v2539 = vcombine.low %v2148, %v2156
      %v2541 = vunpack.c.l.s4 1983009808
      %v2542 = vunpack.c.0.s8 %v2541
      %v2543 = vlaneseq
      %v2544 = vshrl.u32 %v2543, 7
      %v2545 = vsub.s32 %v2542, %v2544
      %v2546 = vrot.slane %v2538, %v2545
      %v2548 = vunpack.c.l.s4 1983009808
      %v2549 = vunpack.c.0.s8 %v2548
      %v2550 = vlaneseq
      %v2551 = vshrl.u32 %v2550, 7
      %v2552 = vsub.s32 %v2549, %v2551
      %v2553 = vrot.slane %v2539, %v2552
      %v2554 = vcombine.low %v2546, %v2553
      %v2555 = vcombine.low %v2155, %v2157
      %v2556 = vcombine.low %v2165, %v2173
      %v2558 = vunpack.c.l.s4 1983009808
      %v2559 = vunpack.c.0.s8 %v2558
      %v2560 = vlaneseq
      %v2561 = vshrl.u32 %v2560, 7
      %v2562 = vsub.s32 %v2559, %v2561
      %v2563 = vrot.slane %v2555, %v2562
      %v2565 = vunpack.c.l.s4 1983009808
      %v2566 = vunpack.c.0.s8 %v2565
      %v2567 = vlaneseq
      %v2568 = vshrl.u32 %v2567, 7
      %v2569 = vsub.s32 %v2566, %v2568
      %v2570 = vrot.slane %v2556, %v2569
      %v2571 = vcombine.low %v2563, %v2570
      %v2572 = vcombine.low %v2172, %v2174
      %v2573 = vcombine.low %v2181, %v2189
      %v2575 = vunpack.c.l.s4 1983009808
      %v2576 = vunpack.c.0.s8 %v2575
      %v2577 = vlaneseq
      %v2578 = vshrl.u32 %v2577, 7
      %v2579 = vsub.s32 %v2576, %v2578
      %v2580 = vrot.slane %v2572, %v2579
      %v2582 = vunpack.c.l.s4 1983009808
      %v2583 = vunpack.c.0.s8 %v2582
      %v2584 = vlaneseq
      %v2585 = vshrl.u32 %v2584, 7
      %v2586 = vsub.s32 %v2583, %v2585
      %v2587 = vrot.slane %v2573, %v2586
      %v2588 = vcombine.low %v2580, %v2587
      %v2589 = vcombine.low %v2197, %v2196
      %v2590 = vcombine.low %v2198, %v2206
      %v2592 = vunpack.c.l.s4 1983009808
      %v2593 = vunpack.c.0.s8 %v2592
      %v2594 = vlaneseq
      %v2595 = vshrl.u32 %v2594, 7
      %v2596 = vsub.s32 %v2593, %v2595
      %v2597 = vrot.slane %v2589, %v2596
      %v2599 = vunpack.c.l.s4 1983009808
      %v2600 = vunpack.c.0.s8 %v2599
      %v2601 = vlaneseq
      %v2602 = vshrl.u32 %v2601, 7
      %v2603 = vsub.s32 %v2600, %v2602
      %v2604 = vrot.slane %v2590, %v2603
      %v2605 = vcombine.low %v2597, %v2604
      %v2606 = vcombine.low %v2214, %v2213
      %v2607 = vcombine.low %v2215, %v2222
      %v2609 = vunpack.c.l.s4 1983009808
      %v2610 = vunpack.c.0.s8 %v2609
      %v2611 = vlaneseq
      %v2612 = vshrl.u32 %v2611, 7
      %v2613 = vsub.s32 %v2610, %v2612
      %v2614 = vrot.slane %v2606, %v2613
      %v2616 = vunpack.c.l.s4 1983009808
      %v2617 = vunpack.c.0.s8 %v2616
      %v2618 = vlaneseq
      %v2619 = vshrl.u32 %v2618, 7
      %v2620 = vsub.s32 %v2617, %v2619
      %v2621 = vrot.slane %v2607, %v2620
      %v2622 = vcombine.low %v2614, %v2621
      %v2623 = vcombine.low %v2230, %v2238
      %v2624 = vcombine.low %v2237, %v2239
      %v2626 = vunpack.c.l.s4 1983009808
      %v2627 = vunpack.c.0.s8 %v2626
      %v2628 = vlaneseq
      %v2629 = vshrl.u32 %v2628, 7
      %v2630 = vsub.s32 %v2627, %v2629
      %v2631 = vrot.slane %v2623, %v2630
      %v2633 = vunpack.c.l.s4 1983009808
      %v2634 = vunpack.c.0.s8 %v2633
      %v2635 = vlaneseq
      %v2636 = vshrl.u32 %v2635, 7
      %v2637 = vsub.s32 %v2634, %v2636
      %v2638 = vrot.slane %v2624, %v2637
      %v2639 = vcombine.low %v2631, %v2638
      %v2640 = vcombine.low %v2247, %v2255
      %v2641 = vcombine.low %v2254, %v2256
      %v2643 = vunpack.c.l.s4 1983009808
      %v2644 = vunpack.c.0.s8 %v2643
      %v2645 = vlaneseq
      %v2646 = vshrl.u32 %v2645, 7
      %v2647 = vsub.s32 %v2644, %v2646
      %v2648 = vrot.slane %v2640, %v2647
      %v2650 = vunpack.c.l.s4 1983009808
      %v2651 = vunpack.c.0.s8 %v2650
      %v2652 = vlaneseq
      %v2653 = vshrl.u32 %v2652, 7
      %v2654 = vsub.s32 %v2651, %v2653
      %v2655 = vrot.slane %v2641, %v2654
      %v2656 = vcombine.low %v2648, %v2655
      %v2657 = vcombine.low %v2263, %v2271
      %v2658 = vcombine.low %v2279, %v2278
      %v2660 = vunpack.c.l.s4 1983009808
      %v2661 = vunpack.c.0.s8 %v2660
      %v2662 = vlaneseq
      %v2663 = vshrl.u32 %v2662, 7
      %v2664 = vsub.s32 %v2661, %v2663
      %v2665 = vrot.slane %v2657, %v2664
      %v2667 = vunpack.c.l.s4 1983009808
      %v2668 = vunpack.c.0.s8 %v2667
      %v2669 = vlaneseq
      %v2670 = vshrl.u32 %v2669, 7
      %v2671 = vsub.s32 %v2668, %v2670
      %v2672 = vrot.slane %v2658, %v2671
      %v2673 = vcombine.low %v2665, %v2672
      %v2674 = vcombine.low %v2280, %v2288
      %v2675 = vcombine.low %v2296, %v2295
      %v2677 = vunpack.c.l.s4 1983009808
      %v2678 = vunpack.c.0.s8 %v2677
      %v2679 = vlaneseq
      %v2680 = vshrl.u32 %v2679, 7
      %v2681 = vsub.s32 %v2678, %v2680
      %v2682 = vrot.slane %v2674, %v2681
      %v2684 = vunpack.c.l.s4 1983009808
      %v2685 = vunpack.c.0.s8 %v2684
      %v2686 = vlaneseq
      %v2687 = vshrl.u32 %v2686, 7
      %v2688 = vsub.s32 %v2685, %v2687
      %v2689 = vrot.slane %v2675, %v2688
      %v2690 = vcombine.low %v2682, %v2689
      %v2691 = vcombine.low %v2297, %v2304
      %v2693 = vunpack.c.l.s4 1983009808
      %v2694 = vunpack.c.0.s8 %v2693
      %v2695 = vlaneseq
      %v2696 = vshrl.u32 %v2695, 7
      %v2697 = vsub.s32 %v2694, %v2696
      %v2698 = vrot.slane %v2691, %v2697
      %vm2699 = vcmask 293888
      %v2700 = vsel %vm2699, %v2333, 0
      %v2702 = vsel %vm2699, %v2350, 0
      %v2704 = vsel %vm2699, %v2367, 0
      %v2706 = vsel %vm2699, %v2384, 0
      %v2708 = vsel %vm2699, %v2401, 0
      %v2710 = vsel %vm2699, %v2418, 0
      %v2712 = vsel %vm2699, %v2435, 0
      %v2714 = vsel %vm2699, %v2452, 0
      %v2716 = vsel %vm2699, %v2469, 0
      %v2718 = vsel %vm2699, %v2486, 0
      %v2720 = vsel %vm2699, %v2503, 0
      %v2722 = vsel %vm2699, %v2520, 0
      %v2724 = vsel %vm2699, %v2537, 0
      %v2726 = vsel %vm2699, %v2554, 0
      %v2728 = vsel %vm2699, %v2571, 0
      %v2730 = vsel %vm2699, %v2588, 0
      %v2732 = vsel %vm2699, %v2605, 0
      %v2734 = vsel %vm2699, %v2622, 0
      %v2736 = vsel %vm2699, %v2639, 0
      %v2738 = vsel %vm2699, %v2656, 0
      %v2740 = vsel %vm2699, %v2673, 0
      %v2742 = vsel %vm2699, %v2690, 0
      %v2744 = vsel %vm2699, %v2698, 0
      %vm2746 = vcmask 1043456
      %v2748 = vsel %vm2746, %v2309, 0
      %2750 = vmatprep.subr.mxu0 0.0
      %2751 = vmatpush1.msra.mxu0 0.0
      %2752 = vmatprep.subr.mxu0 0.0
      %2753 = vmatpush1.msra.mxu0 0.0
      %2754 = vmatprep.subr.mxu0 0.0
      %2755 = vmatpush1.msra.mxu0 0.0
      %2756 = vmatprep.subr.mxu0 0.0
      %2757 = vmatpush1.msra.mxu0 0.0
      %2758 = vmatprep.subr.mxu0 0.0
      %2759 = vmatpush1.msra.mxu0 0.0
      %2760 = vmatprep.subr.mxu0 0.0
      %2761 = vmatpush1.msra.mxu0 0.0
      %2762 = vmatprep.subr.mxu0 0.0
      %2763 = vmatpush1.msra.mxu0 0.0
      %2764 = vmatprep.subr.mxu0 0.0
      %2765 = vmatpush1.msra.mxu0 0.0
      %2766 = vmatprep.subr.mxu0 0.0
      %2767 = vmatpush1.msra.mxu0 0.0
      %2768 = vmatprep.subr.mxu0 0.0
      %2769 = vmatpush1.msra.mxu0 0.0
      %2770 = vmatprep.subr.mxu0 0.0
      %2771 = vmatpush1.msra.mxu0 0.0
      %2772 = vmatprep.subr.mxu0 0.0
      %2773 = vmatpush1.msra.mxu0 %v2748
      %2774 = vmatprep.subr.mxu0 0.0
      %2775 = vmatpush1.msra.mxu0 %v2308
      %2776 = vmatprep.subr.mxu0 0.0
      %2777 = vmatpush1.msra.mxu0 %v2307
      %2778 = vmatprep.subr.mxu0 0.0
      %2779 = vmatpush1.msra.mxu0 %v2306
      %2780 = vmatprep.subr.mxu0 0.0
      %2781 = vmatpush1.msra.mxu0 %v2305
      %2782 = vmatprep.subr.mxu0 0.0
      %2783 = vmatpush2.msra.mxu0 0.0
      %2784 = vmatprep.subr.mxu0 0.0
      %2785 = vmatpush2.msra.mxu0 0.0
      %2786 = vmatprep.subr.mxu0 0.0
      %2787 = vmatpush2.msra.mxu0 0.0
      %2788 = vmatprep.subr.mxu0 0.0
      %2789 = vmatpush2.msra.mxu0 0.0
      %2790 = vmatprep.subr.mxu0 0.0
      %2791 = vmatpush2.msra.mxu0 0.0
      %2792 = vmatprep.subr.mxu0 0.0
      %2793 = vmatpush2.msra.mxu0 0.0
      %2794 = vmatprep.subr.mxu0 0.0
      %2795 = vmatpush2.msra.mxu0 0.0
      %2796 = vmatprep.subr.mxu0 0.0
      %2797 = vmatpush2.msra.mxu0 0.0
      %2798 = vmatprep.subr.mxu0 0.0
      %2799 = vmatpush2.msra.mxu0 0.0
      %2800 = vmatprep.subr.mxu0 0.0
      %2801 = vmatpush2.msra.mxu0 0.0
      %2802 = vmatprep.subr.mxu0 0.0
      %2803 = vmatpush2.msra.mxu0 0.0
      %2804 = vmatprep.subr.mxu0 0.0
      %2805 = vmatpush2.msra.mxu0 0.0
      %2806 = vmatprep.subr.mxu0 0.0
      %2807 = vmatpush2.msra.mxu0 0.0
      %2808 = vmatprep.subr.mxu0 0.0
      %2809 = vmatpush2.msra.mxu0 0.0
      %2810 = vmatprep.subr.mxu0 0.0
      %2811 = vmatpush2.msra.mxu0 0.0
      %2812 = vmatprep.subr.mxu0 0.0
      %2813 = vmatpush2.msra.mxu0 0.0
      %2814 = vmatprep.mubr.f32.mxu0 0.0
      %2815 = vmatmul.mubr.f32.gmra.mxu0 %v2700
      %v2816 = vpop.f32.mrf.mxu0
      %v2817 = vadd.f32 %v2315, %v2816
      %v2818 = vpop.f32.mrf.mxu0
      %2819 = vmatprep.mubr.f32.mxu0 0.0
      %2820 = vmatmul.mubr.f32.gmra.mxu0 %v2702
      %v2821 = vpop.f32.mrf.mxu0
      %v2822 = vadd.f32 %v2315, %v2821
      %v2823 = vpop.f32.mrf.mxu0
      %2824 = vmatprep.mubr.f32.mxu0 0.0
      %2825 = vmatmul.mubr.f32.gmra.mxu0 %v2704
      %v2826 = vpop.f32.mrf.mxu0
      %v2827 = vadd.f32 %v2315, %v2826
      %v2828 = vpop.f32.mrf.mxu0
      %2829 = vmatprep.mubr.f32.mxu0 0.0
      %2830 = vmatmul.mubr.f32.gmra.mxu0 %v2706
      %v2831 = vpop.f32.mrf.mxu0
      %v2832 = vadd.f32 %v2315, %v2831
      %v2833 = vpop.f32.mrf.mxu0
      %2834 = vmatprep.mubr.f32.mxu0 0.0
      %2835 = vmatmul.mubr.f32.gmra.mxu0 %v2708
      %v2836 = vpop.f32.mrf.mxu0
      %v2837 = vadd.f32 %v2315, %v2836
      %v2838 = vpop.f32.mrf.mxu0
      %2839 = vmatprep.mubr.f32.mxu0 0.0
      %2840 = vmatmul.mubr.f32.gmra.mxu0 %v2710
      %v2841 = vpop.f32.mrf.mxu0
      %v2842 = vadd.f32 %v2315, %v2841
      %v2843 = vpop.f32.mrf.mxu0
      %2844 = vmatprep.mubr.f32.mxu0 0.0
      %2845 = vmatmul.mubr.f32.gmra.mxu0 %v2712
      %v2846 = vpop.f32.mrf.mxu0
      %v2847 = vadd.f32 %v2315, %v2846
      %v2848 = vpop.f32.mrf.mxu0
      %2849 = vmatprep.mubr.f32.mxu0 0.0
      %2850 = vmatmul.mubr.f32.gmra.mxu0 %v2714
      %v2851 = vpop.f32.mrf.mxu0
      %v2852 = vadd.f32 %v2315, %v2851
      %v2853 = vpop.f32.mrf.mxu0
      %2854 = vmatprep.mubr.f32.mxu0 0.0
      %2855 = vmatmul.mubr.f32.gmra.mxu0 %v2716
      %v2856 = vpop.f32.mrf.mxu0
      %v2857 = vadd.f32 %v2315, %v2856
      %v2858 = vpop.f32.mrf.mxu0
      %2859 = vmatprep.mubr.f32.mxu0 0.0
      %2860 = vmatmul.mubr.f32.gmra.mxu0 %v2718
      %v2861 = vpop.f32.mrf.mxu0
      %v2862 = vadd.f32 %v2315, %v2861
      %v2863 = vpop.f32.mrf.mxu0
      %2864 = vmatprep.mubr.f32.mxu0 0.0
      %2865 = vmatmul.mubr.f32.gmra.mxu0 %v2720
      %v2866 = vpop.f32.mrf.mxu0
      %v2867 = vadd.f32 %v2315, %v2866
      %v2868 = vpop.f32.mrf.mxu0
      %2869 = vmatprep.mubr.f32.mxu0 0.0
      %2870 = vmatmul.mubr.f32.gmra.mxu0 %v2722
      %v2871 = vpop.f32.mrf.mxu0
      %v2872 = vadd.f32 %v2315, %v2871
      %v2873 = vpop.f32.mrf.mxu0
      %2874 = vmatprep.mubr.f32.mxu0 0.0
      %2875 = vmatmul.mubr.f32.gmra.mxu0 %v2724
      %v2876 = vpop.f32.mrf.mxu0
      %v2877 = vadd.f32 %v2315, %v2876
      %v2878 = vpop.f32.mrf.mxu0
      %2879 = vmatprep.mubr.f32.mxu0 0.0
      %2880 = vmatmul.mubr.f32.gmra.mxu0 %v2726
      %v2881 = vpop.f32.mrf.mxu0
      %v2882 = vadd.f32 %v2315, %v2881
      %v2883 = vpop.f32.mrf.mxu0
      %2884 = vmatprep.mubr.f32.mxu0 0.0
      %2885 = vmatmul.mubr.f32.gmra.mxu0 %v2728
      %v2886 = vpop.f32.mrf.mxu0
      %v2887 = vadd.f32 %v2315, %v2886
      %v2888 = vpop.f32.mrf.mxu0
      %2889 = vmatprep.mubr.f32.mxu0 0.0
      %2890 = vmatmul.mubr.f32.gmra.mxu0 %v2730
      %v2891 = vpop.f32.mrf.mxu0
      %v2892 = vadd.f32 %v2315, %v2891
      %v2893 = vpop.f32.mrf.mxu0
      %2894 = vmatprep.mubr.f32.mxu0 0.0
      %2895 = vmatmul.mubr.f32.gmra.mxu0 %v2732
      %v2896 = vpop.f32.mrf.mxu0
      %v2897 = vadd.f32 %v2315, %v2896
      %v2898 = vpop.f32.mrf.mxu0
      %2899 = vmatprep.mubr.f32.mxu0 0.0
      %2900 = vmatmul.mubr.f32.gmra.mxu0 %v2734
      %v2901 = vpop.f32.mrf.mxu0
      %v2902 = vadd.f32 %v2315, %v2901
      %v2903 = vpop.f32.mrf.mxu0
      %2904 = vmatprep.mubr.f32.mxu0 0.0
      %2905 = vmatmul.mubr.f32.gmra.mxu0 %v2736
      %v2906 = vpop.f32.mrf.mxu0
      %v2907 = vadd.f32 %v2315, %v2906
      %v2908 = vpop.f32.mrf.mxu0
      %2909 = vmatprep.mubr.f32.mxu0 0.0
      %2910 = vmatmul.mubr.f32.gmra.mxu0 %v2738
      %v2911 = vpop.f32.mrf.mxu0
      %v2912 = vadd.f32 %v2315, %v2911
      %v2913 = vpop.f32.mrf.mxu0
      %2914 = vmatprep.mubr.f32.mxu0 0.0
      %2915 = vmatmul.mubr.f32.gmra.mxu0 %v2740
      %v2916 = vpop.f32.mrf.mxu0
      %v2917 = vadd.f32 %v2315, %v2916
      %v2918 = vpop.f32.mrf.mxu0
      %2919 = vmatprep.mubr.f32.mxu0 0.0
      %2920 = vmatmul.mubr.f32.gmra.mxu0 %v2742
      %v2921 = vpop.f32.mrf.mxu0
      %v2922 = vadd.f32 %v2315, %v2921
      %v2923 = vpop.f32.mrf.mxu0
      %2924 = vmatprep.mubr.f32.mxu0 0.0
      %2925 = vmatmul.mubr.f32.gmra.mxu0 %v2744
      %v2926 = vpop.f32.mrf.mxu0
      %v2927 = vadd.f32 %v2315, %v2926
      %v2928 = vpop.f32.mrf.mxu0
      %2929 = vdwg.mxu0
      %vm2930 = vcmp.ge.f32.partialorder %v2817, 0.0
      %vm2931 = vcmp.ge.f32.partialorder %v2822, 0.0
      %vm2932 = vcmp.ge.f32.partialorder %v2827, 0.0
      %vm2933 = vcmp.ge.f32.partialorder %v2832, 0.0
      %vm2934 = vcmp.ge.f32.partialorder %v2837, 0.0
      %vm2935 = vcmp.ge.f32.partialorder %v2842, 0.0
      %vm2936 = vcmp.ge.f32.partialorder %v2847, 0.0
      %vm2937 = vcmp.ge.f32.partialorder %v2852, 0.0
      %vm2938 = vcmp.ge.f32.partialorder %v2857, 0.0
      %vm2939 = vcmp.ge.f32.partialorder %v2862, 0.0
      %vm2940 = vcmp.ge.f32.partialorder %v2867, 0.0
      %vm2941 = vcmp.ge.f32.partialorder %v2872, 0.0
      %vm2942 = vcmp.ge.f32.partialorder %v2877, 0.0
      %vm2943 = vcmp.ge.f32.partialorder %v2882, 0.0
      %vm2944 = vcmp.ge.f32.partialorder %v2887, 0.0
      %vm2945 = vcmp.ge.f32.partialorder %v2892, 0.0
      %vm2946 = vcmp.ge.f32.partialorder %v2897, 0.0
      %vm2947 = vcmp.ge.f32.partialorder %v2902, 0.0
      %vm2948 = vcmp.ge.f32.partialorder %v2907, 0.0
      %vm2949 = vcmp.ge.f32.partialorder %v2912, 0.0
      %vm2950 = vcmp.ge.f32.partialorder %v2917, 0.0
      %vm2951 = vcmp.ge.f32.partialorder %v2922, 0.0
      %vm2952 = vcmp.ge.f32.partialorder %v2927, 0.0
      %v2953 = vmul.f32 %v2817, 0.01
      %v2954 = vmul.f32 %v2822, 0.01
      %v2955 = vmul.f32 %v2827, 0.01
      %v2956 = vmul.f32 %v2832, 0.01
      %v2957 = vmul.f32 %v2837, 0.01
      %v2958 = vmul.f32 %v2842, 0.01
      %v2959 = vmul.f32 %v2847, 0.01
      %v2960 = vmul.f32 %v2852, 0.01
      %v2961 = vmul.f32 %v2857, 0.01
      %v2962 = vmul.f32 %v2862, 0.01
      %v2963 = vmul.f32 %v2867, 0.01
      %v2964 = vmul.f32 %v2872, 0.01
      %v2965 = vmul.f32 %v2877, 0.01
      %v2966 = vmul.f32 %v2882, 0.01
      %v2967 = vmul.f32 %v2887, 0.01
      %v2968 = vmul.f32 %v2892, 0.01
      %v2969 = vmul.f32 %v2897, 0.01
      %v2970 = vmul.f32 %v2902, 0.01
      %v2971 = vmul.f32 %v2907, 0.01
      %v2972 = vmul.f32 %v2912, 0.01
      %v2973 = vmul.f32 %v2917, 0.01
      %v2974 = vmul.f32 %v2922, 0.01
      %v2975 = vmul.f32 %v2927, 0.01
      %v2976 = vsel %vm2930, %v2817, %v2953
      %v2977 = vsel %vm2931, %v2822, %v2954
      %v2978 = vsel %vm2932, %v2827, %v2955
      %v2979 = vsel %vm2933, %v2832, %v2956
      %v2980 = vsel %vm2934, %v2837, %v2957
      %v2981 = vsel %vm2935, %v2842, %v2958
      %v2982 = vsel %vm2936, %v2847, %v2959
      %v2983 = vsel %vm2937, %v2852, %v2960
      %v2984 = vsel %vm2938, %v2857, %v2961
      %v2985 = vsel %vm2939, %v2862, %v2962
      %v2986 = vsel %vm2940, %v2867, %v2963
      %v2987 = vsel %vm2941, %v2872, %v2964
      %v2988 = vsel %vm2942, %v2877, %v2965
      %v2989 = vsel %vm2943, %v2882, %v2966
      %v2990 = vsel %vm2944, %v2887, %v2967
      %v2991 = vsel %vm2945, %v2892, %v2968
      %v2992 = vsel %vm2946, %v2897, %v2969
      %v2993 = vsel %vm2947, %v2902, %v2970
      %v2994 = vsel %vm2948, %v2907, %v2971
      %v2995 = vsel %vm2949, %v2912, %v2972
      %v2996 = vsel %vm2950, %v2917, %v2973
      %v2997 = vsel %vm2951, %v2922, %v2974
      %v2998 = vsel %vm2952, %v2927, %v2975
      %v3022 = vcombine.high %v2976, %v2976
      %v3024 = vunpack.c.l.s4 1983009808
      %v3025 = vunpack.c.0.s8 %v3024
      %v3026 = vlaneseq
      %v3027 = vshrl.u32 %v3026, 7
      %v3028 = vsub.s32 %v3025, %v3027
      %v3029 = vrot.slane %v2976, %v3028
      %v3031 = vunpack.c.l.s4 1983009808
      %v3032 = vunpack.c.0.s8 %v3031
      %v3033 = vlaneseq
      %v3034 = vshrl.u32 %v3033, 7
      %v3035 = vsub.s32 %v3032, %v3034
      %v3036 = vrot.slane %v3022, %v3035
      %v3037 = vcombine.high %v3029, %v3029
      %v3038 = vcombine.high %v3036, %v3036
      %v3039 = vcombine.high %v2977, %v2977
      %v3041 = vunpack.c.l.s4 1983009808
      %v3042 = vunpack.c.0.s8 %v3041
      %v3043 = vlaneseq
      %v3044 = vshrl.u32 %v3043, 7
      %v3045 = vsub.s32 %v3042, %v3044
      %v3046 = vrot.slane %v2977, %v3045
      %v3048 = vunpack.c.l.s4 1983009808
      %v3049 = vunpack.c.0.s8 %v3048
      %v3050 = vlaneseq
      %v3051 = vshrl.u32 %v3050, 7
      %v3052 = vsub.s32 %v3049, %v3051
      %v3053 = vrot.slane %v3039, %v3052
      %v3054 = vcombine.high %v3046, %v3046
      %v3055 = vcombine.high %v3053, %v3053
      %v3056 = vcombine.high %v2978, %v2978
      %v3058 = vunpack.c.l.s4 1983009808
      %v3059 = vunpack.c.0.s8 %v3058
      %v3060 = vlaneseq
      %v3061 = vshrl.u32 %v3060, 7
      %v3062 = vsub.s32 %v3059, %v3061
      %v3063 = vrot.slane %v2978, %v3062
      %v3065 = vunpack.c.l.s4 1983009808
      %v3066 = vunpack.c.0.s8 %v3065
      %v3067 = vlaneseq
      %v3068 = vshrl.u32 %v3067, 7
      %v3069 = vsub.s32 %v3066, %v3068
      %v3070 = vrot.slane %v3056, %v3069
      %v3071 = vcombine.high %v3063, %v3063
      %v3072 = vcombine.high %v3070, %v3070
      %v3073 = vcombine.high %v2979, %v2979
      %v3075 = vunpack.c.l.s4 1983009808
      %v3076 = vunpack.c.0.s8 %v3075
      %v3077 = vlaneseq
      %v3078 = vshrl.u32 %v3077, 7
      %v3079 = vsub.s32 %v3076, %v3078
      %v3080 = vrot.slane %v2979, %v3079
      %v3082 = vunpack.c.l.s4 1983009808
      %v3083 = vunpack.c.0.s8 %v3082
      %v3084 = vlaneseq
      %v3085 = vshrl.u32 %v3084, 7
      %v3086 = vsub.s32 %v3083, %v3085
      %v3087 = vrot.slane %v3073, %v3086
      %v3088 = vcombine.high %v3080, %v3080
      %v3089 = vcombine.high %v3087, %v3087
      %v3090 = vcombine.high %v2980, %v2980
      %v3092 = vunpack.c.l.s4 1983009808
      %v3093 = vunpack.c.0.s8 %v3092
      %v3094 = vlaneseq
      %v3095 = vshrl.u32 %v3094, 7
      %v3096 = vsub.s32 %v3093, %v3095
      %v3097 = vrot.slane %v2980, %v3096
      %v3099 = vunpack.c.l.s4 1983009808
      %v3100 = vunpack.c.0.s8 %v3099
      %v3101 = vlaneseq
      %v3102 = vshrl.u32 %v3101, 7
      %v3103 = vsub.s32 %v3100, %v3102
      %v3104 = vrot.slane %v3090, %v3103
      %v3105 = vcombine.high %v3097, %v3097
      %v3106 = vcombine.high %v3104, %v3104
      %v3107 = vcombine.high %v2981, %v2981
      %v3109 = vunpack.c.l.s4 1983009808
      %v3110 = vunpack.c.0.s8 %v3109
      %v3111 = vlaneseq
      %v3112 = vshrl.u32 %v3111, 7
      %v3113 = vsub.s32 %v3110, %v3112
      %v3114 = vrot.slane %v2981, %v3113
      %v3116 = vunpack.c.l.s4 1983009808
      %v3117 = vunpack.c.0.s8 %v3116
      %v3118 = vlaneseq
      %v3119 = vshrl.u32 %v3118, 7
      %v3120 = vsub.s32 %v3117, %v3119
      %v3121 = vrot.slane %v3107, %v3120
      %v3122 = vcombine.high %v3114, %v3114
      %v3123 = vcombine.high %v3121, %v3121
      %v3124 = vcombine.high %v2982, %v2982
      %v3126 = vunpack.c.l.s4 1983009808
      %v3127 = vunpack.c.0.s8 %v3126
      %v3128 = vlaneseq
      %v3129 = vshrl.u32 %v3128, 7
      %v3130 = vsub.s32 %v3127, %v3129
      %v3131 = vrot.slane %v2982, %v3130
      %v3133 = vunpack.c.l.s4 1983009808
      %v3134 = vunpack.c.0.s8 %v3133
      %v3135 = vlaneseq
      %v3136 = vshrl.u32 %v3135, 7
      %v3137 = vsub.s32 %v3134, %v3136
      %v3138 = vrot.slane %v3124, %v3137
      %v3139 = vcombine.high %v3131, %v3131
      %v3140 = vcombine.high %v3138, %v3138
      %v3141 = vcombine.high %v2983, %v2983
      %v3143 = vunpack.c.l.s4 1983009808
      %v3144 = vunpack.c.0.s8 %v3143
      %v3145 = vlaneseq
      %v3146 = vshrl.u32 %v3145, 7
      %v3147 = vsub.s32 %v3144, %v3146
      %v3148 = vrot.slane %v2983, %v3147
      %v3150 = vunpack.c.l.s4 1983009808
      %v3151 = vunpack.c.0.s8 %v3150
      %v3152 = vlaneseq
      %v3153 = vshrl.u32 %v3152, 7
      %v3154 = vsub.s32 %v3151, %v3153
      %v3155 = vrot.slane %v3141, %v3154
      %v3156 = vcombine.high %v3148, %v3148
      %v3157 = vcombine.high %v3155, %v3155
      %v3158 = vcombine.high %v2984, %v2984
      %v3160 = vunpack.c.l.s4 1983009808
      %v3161 = vunpack.c.0.s8 %v3160
      %v3162 = vlaneseq
      %v3163 = vshrl.u32 %v3162, 7
      %v3164 = vsub.s32 %v3161, %v3163
      %v3165 = vrot.slane %v2984, %v3164
      %v3167 = vunpack.c.l.s4 1983009808
      %v3168 = vunpack.c.0.s8 %v3167
      %v3169 = vlaneseq
      %v3170 = vshrl.u32 %v3169, 7
      %v3171 = vsub.s32 %v3168, %v3170
      %v3172 = vrot.slane %v3158, %v3171
      %v3173 = vcombine.high %v3165, %v3165
      %v3174 = vcombine.high %v3172, %v3172
      %v3175 = vcombine.high %v2985, %v2985
      %v3177 = vunpack.c.l.s4 1983009808
      %v3178 = vunpack.c.0.s8 %v3177
      %v3179 = vlaneseq
      %v3180 = vshrl.u32 %v3179, 7
      %v3181 = vsub.s32 %v3178, %v3180
      %v3182 = vrot.slane %v2985, %v3181
      %v3184 = vunpack.c.l.s4 1983009808
      %v3185 = vunpack.c.0.s8 %v3184
      %v3186 = vlaneseq
      %v3187 = vshrl.u32 %v3186, 7
      %v3188 = vsub.s32 %v3185, %v3187
      %v3189 = vrot.slane %v3175, %v3188
      %v3190 = vcombine.high %v3182, %v3182
      %v3191 = vcombine.high %v3189, %v3189
      %v3192 = vcombine.high %v2986, %v2986
      %v3194 = vunpack.c.l.s4 1983009808
      %v3195 = vunpack.c.0.s8 %v3194
      %v3196 = vlaneseq
      %v3197 = vshrl.u32 %v3196, 7
      %v3198 = vsub.s32 %v3195, %v3197
      %v3199 = vrot.slane %v2986, %v3198
      %v3201 = vunpack.c.l.s4 1983009808
      %v3202 = vunpack.c.0.s8 %v3201
      %v3203 = vlaneseq
      %v3204 = vshrl.u32 %v3203, 7
      %v3205 = vsub.s32 %v3202, %v3204
      %v3206 = vrot.slane %v3192, %v3205
      %v3207 = vcombine.high %v3199, %v3199
      %v3208 = vcombine.high %v3206, %v3206
      %v3209 = vcombine.high %v2987, %v2987
      %v3211 = vunpack.c.l.s4 1983009808
      %v3212 = vunpack.c.0.s8 %v3211
      %v3213 = vlaneseq
      %v3214 = vshrl.u32 %v3213, 7
      %v3215 = vsub.s32 %v3212, %v3214
      %v3216 = vrot.slane %v2987, %v3215
      %v3218 = vunpack.c.l.s4 1983009808
      %v3219 = vunpack.c.0.s8 %v3218
      %v3220 = vlaneseq
      %v3221 = vshrl.u32 %v3220, 7
      %v3222 = vsub.s32 %v3219, %v3221
      %v3223 = vrot.slane %v3209, %v3222
      %v3224 = vcombine.high %v3216, %v3216
      %v3225 = vcombine.high %v3223, %v3223
      %v3226 = vcombine.high %v2988, %v2988
      %v3228 = vunpack.c.l.s4 1983009808
      %v3229 = vunpack.c.0.s8 %v3228
      %v3230 = vlaneseq
      %v3231 = vshrl.u32 %v3230, 7
      %v3232 = vsub.s32 %v3229, %v3231
      %v3233 = vrot.slane %v2988, %v3232
      %v3235 = vunpack.c.l.s4 1983009808
      %v3236 = vunpack.c.0.s8 %v3235
      %v3237 = vlaneseq
      %v3238 = vshrl.u32 %v3237, 7
      %v3239 = vsub.s32 %v3236, %v3238
      %v3240 = vrot.slane %v3226, %v3239
      %v3241 = vcombine.high %v3233, %v3233
      %v3242 = vcombine.high %v3240, %v3240
      %v3243 = vcombine.high %v2989, %v2989
      %v3245 = vunpack.c.l.s4 1983009808
      %v3246 = vunpack.c.0.s8 %v3245
      %v3247 = vlaneseq
      %v3248 = vshrl.u32 %v3247, 7
      %v3249 = vsub.s32 %v3246, %v3248
      %v3250 = vrot.slane %v2989, %v3249
      %v3252 = vunpack.c.l.s4 1983009808
      %v3253 = vunpack.c.0.s8 %v3252
      %v3254 = vlaneseq
      %v3255 = vshrl.u32 %v3254, 7
      %v3256 = vsub.s32 %v3253, %v3255
      %v3257 = vrot.slane %v3243, %v3256
      %v3258 = vcombine.high %v3250, %v3250
      %v3259 = vcombine.high %v3257, %v3257
      %v3260 = vcombine.high %v2990, %v2990
      %v3262 = vunpack.c.l.s4 1983009808
      %v3263 = vunpack.c.0.s8 %v3262
      %v3264 = vlaneseq
      %v3265 = vshrl.u32 %v3264, 7
      %v3266 = vsub.s32 %v3263, %v3265
      %v3267 = vrot.slane %v2990, %v3266
      %v3269 = vunpack.c.l.s4 1983009808
      %v3270 = vunpack.c.0.s8 %v3269
      %v3271 = vlaneseq
      %v3272 = vshrl.u32 %v3271, 7
      %v3273 = vsub.s32 %v3270, %v3272
      %v3274 = vrot.slane %v3260, %v3273
      %v3275 = vcombine.high %v3267, %v3267
      %v3276 = vcombine.high %v3274, %v3274
      %v3277 = vcombine.high %v2991, %v2991
      %v3279 = vunpack.c.l.s4 1983009808
      %v3280 = vunpack.c.0.s8 %v3279
      %v3281 = vlaneseq
      %v3282 = vshrl.u32 %v3281, 7
      %v3283 = vsub.s32 %v3280, %v3282
      %v3284 = vrot.slane %v2991, %v3283
      %v3286 = vunpack.c.l.s4 1983009808
      %v3287 = vunpack.c.0.s8 %v3286
      %v3288 = vlaneseq
      %v3289 = vshrl.u32 %v3288, 7
      %v3290 = vsub.s32 %v3287, %v3289
      %v3291 = vrot.slane %v3277, %v3290
      %v3292 = vcombine.high %v3284, %v3284
      %v3293 = vcombine.high %v3291, %v3291
      %v3294 = vcombine.high %v2992, %v2992
      %v3296 = vunpack.c.l.s4 1983009808
      %v3297 = vunpack.c.0.s8 %v3296
      %v3298 = vlaneseq
      %v3299 = vshrl.u32 %v3298, 7
      %v3300 = vsub.s32 %v3297, %v3299
      %v3301 = vrot.slane %v2992, %v3300
      %v3303 = vunpack.c.l.s4 1983009808
      %v3304 = vunpack.c.0.s8 %v3303
      %v3305 = vlaneseq
      %v3306 = vshrl.u32 %v3305, 7
      %v3307 = vsub.s32 %v3304, %v3306
      %v3308 = vrot.slane %v3294, %v3307
      %v3309 = vcombine.high %v3301, %v3301
      %v3310 = vcombine.high %v3308, %v3308
      %v3311 = vcombine.high %v2993, %v2993
      %v3313 = vunpack.c.l.s4 1983009808
      %v3314 = vunpack.c.0.s8 %v3313
      %v3315 = vlaneseq
      %v3316 = vshrl.u32 %v3315, 7
      %v3317 = vsub.s32 %v3314, %v3316
      %v3318 = vrot.slane %v2993, %v3317
      %v3320 = vunpack.c.l.s4 1983009808
      %v3321 = vunpack.c.0.s8 %v3320
      %v3322 = vlaneseq
      %v3323 = vshrl.u32 %v3322, 7
      %v3324 = vsub.s32 %v3321, %v3323
      %v3325 = vrot.slane %v3311, %v3324
      %v3326 = vcombine.high %v3318, %v3318
      %v3327 = vcombine.high %v3325, %v3325
      %v3328 = vcombine.high %v2994, %v2994
      %v3330 = vunpack.c.l.s4 1983009808
      %v3331 = vunpack.c.0.s8 %v3330
      %v3332 = vlaneseq
      %v3333 = vshrl.u32 %v3332, 7
      %v3334 = vsub.s32 %v3331, %v3333
      %v3335 = vrot.slane %v2994, %v3334
      %v3337 = vunpack.c.l.s4 1983009808
      %v3338 = vunpack.c.0.s8 %v3337
      %v3339 = vlaneseq
      %v3340 = vshrl.u32 %v3339, 7
      %v3341 = vsub.s32 %v3338, %v3340
      %v3342 = vrot.slane %v3328, %v3341
      %v3343 = vcombine.high %v3335, %v3335
      %v3344 = vcombine.high %v3342, %v3342
      %v3345 = vcombine.high %v2995, %v2995
      %v3347 = vunpack.c.l.s4 1983009808
      %v3348 = vunpack.c.0.s8 %v3347
      %v3349 = vlaneseq
      %v3350 = vshrl.u32 %v3349, 7
      %v3351 = vsub.s32 %v3348, %v3350
      %v3352 = vrot.slane %v2995, %v3351
      %v3354 = vunpack.c.l.s4 1983009808
      %v3355 = vunpack.c.0.s8 %v3354
      %v3356 = vlaneseq
      %v3357 = vshrl.u32 %v3356, 7
      %v3358 = vsub.s32 %v3355, %v3357
      %v3359 = vrot.slane %v3345, %v3358
      %v3360 = vcombine.high %v3352, %v3352
      %v3361 = vcombine.high %v3359, %v3359
      %v3362 = vcombine.high %v2996, %v2996
      %v3364 = vunpack.c.l.s4 1983009808
      %v3365 = vunpack.c.0.s8 %v3364
      %v3366 = vlaneseq
      %v3367 = vshrl.u32 %v3366, 7
      %v3368 = vsub.s32 %v3365, %v3367
      %v3369 = vrot.slane %v2996, %v3368
      %v3371 = vunpack.c.l.s4 1983009808
      %v3372 = vunpack.c.0.s8 %v3371
      %v3373 = vlaneseq
      %v3374 = vshrl.u32 %v3373, 7
      %v3375 = vsub.s32 %v3372, %v3374
      %v3376 = vrot.slane %v3362, %v3375
      %v3377 = vcombine.high %v3369, %v3369
      %v3378 = vcombine.high %v3376, %v3376
      %v3379 = vcombine.high %v2997, %v2997
      %v3381 = vunpack.c.l.s4 1983009808
      %v3382 = vunpack.c.0.s8 %v3381
      %v3383 = vlaneseq
      %v3384 = vshrl.u32 %v3383, 7
      %v3385 = vsub.s32 %v3382, %v3384
      %v3386 = vrot.slane %v2997, %v3385
      %v3388 = vunpack.c.l.s4 1983009808
      %v3389 = vunpack.c.0.s8 %v3388
      %v3390 = vlaneseq
      %v3391 = vshrl.u32 %v3390, 7
      %v3392 = vsub.s32 %v3389, %v3391
      %v3393 = vrot.slane %v3379, %v3392
      %v3394 = vcombine.high %v3386, %v3386
      %v3395 = vcombine.high %v3393, %v3393
      %v3397 = vunpack.c.l.s4 1983009808
      %v3398 = vunpack.c.0.s8 %v3397
      %v3399 = vlaneseq
      %v3400 = vshrl.u32 %v3399, 7
      %v3401 = vsub.s32 %v3398, %v3400
      %v3402 = vrot.slane %v2998, %v3401
      %v3403 = vcombine.high %v3402, %v3402
      %v3404 = vlaneseq
      %v3405 = vshrl.u32 %v3404, 7
      %v3406 = vadd.s32 %v3405, 8
      %v3407 = vadd.s32 %v3405, 16
      %s3408 = ssub.s32 %s250, 1
      %v3409 = vstv %s3408
      %v3410 = vadd.s32 %v3409, 1
      %v3411 = vadd.s32 %v3409, 2
      %v3412 = vadd.s32 %v3409, 3
      %v3413 = vadd.s32 %v3409, 4
      %v3414 = vadd.s32 %v3409, 5
      %v3415 = vadd.s32 %v3409, 6
      %v3416 = vadd.s32 %v3409, 7
      %v3417 = vadd.s32 %v3409, 8
      %v3418 = vadd.s32 %v3409, 9
      %vm3419 = vcmp.ge.s32.totalorder %v3409, 0
      %vm3420 = vcmp.ge.s32.totalorder %v3410, 0
      %vm3421 = vcmp.ge.s32.totalorder %v3411, 0
      %vm3422 = vcmp.ge.s32.totalorder %v3412, 0
      %vm3423 = vcmp.ge.s32.totalorder %v3413, 0
      %vm3424 = vcmp.ge.s32.totalorder %v3414, 0
      %vm3425 = vcmp.ge.s32.totalorder %v3415, 0
      %vm3426 = vcmp.ge.s32.totalorder %v3416, 0
      %vm3427 = vcmp.ge.s32.totalorder %v3417, 0
      %vm3428 = vcmp.ge.s32.totalorder %v3418, 0
      %vm3429 = vcmp.lt.s32.totalorder %v3409, 16
      %vm3430 = vcmp.lt.s32.totalorder %v3410, 16
      %vm3431 = vcmp.lt.s32.totalorder %v3411, 16
      %vm3432 = vcmp.lt.s32.totalorder %v3412, 16
      %vm3433 = vcmp.lt.s32.totalorder %v3413, 16
      %vm3434 = vcmp.lt.s32.totalorder %v3414, 16
      %vm3435 = vcmp.lt.s32.totalorder %v3415, 16
      %vm3436 = vcmp.lt.s32.totalorder %v3416, 16
      %vm3437 = vcmp.lt.s32.totalorder %v3417, 16
      %vm3438 = vcmp.lt.s32.totalorder %v3418, 16
      %vm3439 = vmand %vm3419, %vm3429
      %vm3440 = vmand %vm3420, %vm3430
      %vm3441 = vmand %vm3421, %vm3431
      %vm3442 = vmand %vm3422, %vm3432
      %vm3443 = vmand %vm3423, %vm3433
      %vm3444 = vmand %vm3424, %vm3434
      %vm3445 = vmand %vm3425, %vm3435
      %vm3446 = vmand %vm3426, %vm3436
      %vm3447 = vmand %vm3427, %vm3437
      %vm3448 = vmand %vm3428, %vm3438
      %vm3449 = vcmp.ge.s32.totalorder %v3405, 1
      %vm3450 = vcmp.ge.s32.totalorder %v3406, 1
      %vm3451 = vcmp.ge.s32.totalorder %v3407, 1
      %vm3452 = vmand %vm3439, %vm3449
      %vm3453 = vmand %vm3439, %vm3450
      %vm3454 = vmand %vm3439, %vm3451
      %vm3455 = vmand %vm3440, %vm3449
      %vm3456 = vmand %vm3440, %vm3450
      %vm3457 = vmand %vm3440, %vm3451
      %vm3458 = vmand %vm3441, %vm3449
      %vm3459 = vmand %vm3441, %vm3450
      %vm3460 = vmand %vm3441, %vm3451
      %vm3461 = vmand %vm3442, %vm3449
      %vm3462 = vmand %vm3442, %vm3450
      %vm3463 = vmand %vm3442, %vm3451
      %vm3464 = vmand %vm3443, %vm3449
      %vm3465 = vmand %vm3443, %vm3450
      %vm3466 = vmand %vm3443, %vm3451
      %vm3467 = vmand %vm3444, %vm3449
      %vm3468 = vmand %vm3444, %vm3450
      %vm3469 = vmand %vm3444, %vm3451
      %vm3470 = vmand %vm3445, %vm3449
      %vm3471 = vmand %vm3445, %vm3450
      %vm3472 = vmand %vm3445, %vm3451
      %vm3473 = vmand %vm3446, %vm3449
      %vm3474 = vmand %vm3446, %vm3450
      %vm3475 = vmand %vm3446, %vm3451
      %vm3476 = vmand %vm3447, %vm3449
      %vm3477 = vmand %vm3447, %vm3450
      %vm3478 = vmand %vm3447, %vm3451
      %vm3479 = vmand %vm3448, %vm3449
      %vm3480 = vmand %vm3448, %vm3450
      %vm3481 = vmand %vm3448, %vm3451
      %vm3482 = vcmp.le.s32.totalorder %v3405, 16
      %vm3483 = vcmp.le.s32.totalorder %v3406, 16
      %vm3484 = vcmp.le.s32.totalorder %v3407, 16
      %vm3485 = vmand %vm3452, %vm3482
      %vm3486 = vmand %vm3453, %vm3483
      %vm3487 = vmand %vm3454, %vm3484
      %vm3488 = vmand %vm3455, %vm3482
      %vm3489 = vmand %vm3456, %vm3483
      %vm3490 = vmand %vm3457, %vm3484
      %vm3491 = vmand %vm3458, %vm3482
      %vm3492 = vmand %vm3459, %vm3483
      %vm3493 = vmand %vm3460, %vm3484
      %vm3494 = vmand %vm3461, %vm3482
      %vm3495 = vmand %vm3462, %vm3483
      %vm3496 = vmand %vm3463, %vm3484
      %vm3497 = vmand %vm3464, %vm3482
      %vm3498 = vmand %vm3465, %vm3483
      %vm3499 = vmand %vm3466, %vm3484
      %vm3500 = vmand %vm3467, %vm3482
      %vm3501 = vmand %vm3468, %vm3483
      %vm3502 = vmand %vm3469, %vm3484
      %vm3503 = vmand %vm3470, %vm3482
      %vm3504 = vmand %vm3471, %vm3483
      %vm3505 = vmand %vm3472, %vm3484
      %vm3506 = vmand %vm3473, %vm3482
      %vm3507 = vmand %vm3474, %vm3483
      %vm3508 = vmand %vm3475, %vm3484
      %vm3509 = vmand %vm3476, %vm3482
      %vm3510 = vmand %vm3477, %vm3483
      %vm3511 = vmand %vm3478, %vm3484
      %vm3512 = vmand %vm3479, %vm3482
      %vm3513 = vmand %vm3480, %vm3483
      %vm3514 = vmand %vm3481, %vm3484
      %v3515 = vsel %vm3485, 1, 0
      %v3516 = vsel %vm3486, 1, 0
      %v3517 = vsel %vm3487, 1, 0
      %v3518 = vsel %vm3488, 1, 0
      %v3519 = vsel %vm3489, 1, 0
      %v3520 = vsel %vm3490, 1, 0
      %v3521 = vsel %vm3491, 1, 0
      %v3522 = vsel %vm3492, 1, 0
      %v3523 = vsel %vm3493, 1, 0
      %v3524 = vsel %vm3494, 1, 0
      %v3525 = vsel %vm3495, 1, 0
      %v3526 = vsel %vm3496, 1, 0
      %v3527 = vsel %vm3497, 1, 0
      %v3528 = vsel %vm3498, 1, 0
      %v3529 = vsel %vm3499, 1, 0
      %v3530 = vsel %vm3500, 1, 0
      %v3531 = vsel %vm3501, 1, 0
      %v3532 = vsel %vm3502, 1, 0
      %v3533 = vsel %vm3503, 1, 0
      %v3534 = vsel %vm3504, 1, 0
      %v3535 = vsel %vm3505, 1, 0
      %v3536 = vsel %vm3506, 1, 0
      %v3537 = vsel %vm3507, 1, 0
      %v3538 = vsel %vm3508, 1, 0
      %v3539 = vsel %vm3509, 1, 0
      %v3540 = vsel %vm3510, 1, 0
      %v3541 = vsel %vm3511, 1, 0
      %v3542 = vsel %vm3512, 1, 0
      %v3543 = vsel %vm3513, 1, 0
      %v3544 = vsel %vm3514, 1, 0
      %vm3545 = vcmp.eq.s32.totalorder %v3515, 1
      %vm3546 = vcmp.eq.s32.totalorder %v3516, 1
      %vm3547 = vcmp.eq.s32.totalorder %v3517, 1
      %vm3548 = vcmp.eq.s32.totalorder %v3518, 1
      %vm3549 = vcmp.eq.s32.totalorder %v3519, 1
      %vm3550 = vcmp.eq.s32.totalorder %v3520, 1
      %vm3551 = vcmp.eq.s32.totalorder %v3521, 1
      %vm3552 = vcmp.eq.s32.totalorder %v3522, 1
      %vm3553 = vcmp.eq.s32.totalorder %v3523, 1
      %vm3554 = vcmp.eq.s32.totalorder %v3524, 1
      %vm3555 = vcmp.eq.s32.totalorder %v3525, 1
      %vm3556 = vcmp.eq.s32.totalorder %v3526, 1
      %vm3557 = vcmp.eq.s32.totalorder %v3527, 1
      %vm3558 = vcmp.eq.s32.totalorder %v3528, 1
      %vm3559 = vcmp.eq.s32.totalorder %v3529, 1
      %vm3560 = vcmp.eq.s32.totalorder %v3530, 1
      %vm3561 = vcmp.eq.s32.totalorder %v3531, 1
      %vm3562 = vcmp.eq.s32.totalorder %v3532, 1
      %vm3563 = vcmp.eq.s32.totalorder %v3533, 1
      %vm3564 = vcmp.eq.s32.totalorder %v3534, 1
      %vm3565 = vcmp.eq.s32.totalorder %v3535, 1
      %vm3566 = vcmp.eq.s32.totalorder %v3536, 1
      %vm3567 = vcmp.eq.s32.totalorder %v3537, 1
      %vm3568 = vcmp.eq.s32.totalorder %v3538, 1
      %vm3569 = vcmp.eq.s32.totalorder %v3539, 1
      %vm3570 = vcmp.eq.s32.totalorder %v3540, 1
      %vm3571 = vcmp.eq.s32.totalorder %v3541, 1
      %vm3572 = vcmp.eq.s32.totalorder %v3542, 1
      %vm3573 = vcmp.eq.s32.totalorder %v3543, 1
      %vm3574 = vcmp.eq.s32.totalorder %v3544, 1
      %v3575 = vcombine.low %v3029, %v3037
      %v3576 = vcombine.low %v3036, %v3038
      %v3578 = vunpack.c.l.s4 1983009808
      %v3579 = vunpack.c.0.s8 %v3578
      %v3580 = vlaneseq
      %v3581 = vshrl.u32 %v3580, 7
      %v3582 = vsub.s32 %v3579, %v3581
      %v3583 = vrot.slane %v3575, %v3582
      %v3585 = vunpack.c.l.s4 1983009808
      %v3586 = vunpack.c.0.s8 %v3585
      %v3587 = vlaneseq
      %v3588 = vshrl.u32 %v3587, 7
      %v3589 = vsub.s32 %v3586, %v3588
      %v3590 = vrot.slane %v3576, %v3589
      %v3591 = vcombine.low %v3583, %v3590
      %v3592 = vcombine.low %v3046, %v3054
      %v3593 = vcombine.low %v3053, %v3055
      %v3595 = vunpack.c.l.s4 1983009808
      %v3596 = vunpack.c.0.s8 %v3595
      %v3597 = vlaneseq
      %v3598 = vshrl.u32 %v3597, 7
      %v3599 = vsub.s32 %v3596, %v3598
      %v3600 = vrot.slane %v3592, %v3599
      %v3602 = vunpack.c.l.s4 1983009808
      %v3603 = vunpack.c.0.s8 %v3602
      %v3604 = vlaneseq
      %v3605 = vshrl.u32 %v3604, 7
      %v3606 = vsub.s32 %v3603, %v3605
      %v3607 = vrot.slane %v3593, %v3606
      %v3608 = vcombine.low %v3600, %v3607
      %v3610 = vunpack.c.l.s4 1983009808
      %v3611 = vunpack.c.0.s8 %v3610
      %v3612 = vlaneseq
      %v3613 = vshrl.u32 %v3612, 7
      %v3614 = vsub.s32 %v3611, %v3613
      %v3615 = vrot.slane %v3063, %v3614
      %v3616 = vcombine.low %v3071, %v3070
      %v3617 = vcombine.low %v3072, %v3080
      %v3619 = vunpack.c.l.s4 1983009808
      %v3620 = vunpack.c.0.s8 %v3619
      %v3621 = vlaneseq
      %v3622 = vshrl.u32 %v3621, 7
      %v3623 = vsub.s32 %v3620, %v3622
      %v3624 = vrot.slane %v3616, %v3623
      %v3626 = vunpack.c.l.s4 1983009808
      %v3627 = vunpack.c.0.s8 %v3626
      %v3628 = vlaneseq
      %v3629 = vshrl.u32 %v3628, 7
      %v3630 = vsub.s32 %v3627, %v3629
      %v3631 = vrot.slane %v3617, %v3630
      %v3632 = vcombine.low %v3624, %v3631
      %v3633 = vcombine.low %v3088, %v3087
      %v3634 = vcombine.low %v3089, %v3097
      %v3636 = vunpack.c.l.s4 1983009808
      %v3637 = vunpack.c.0.s8 %v3636
      %v3638 = vlaneseq
      %v3639 = vshrl.u32 %v3638, 7
      %v3640 = vsub.s32 %v3637, %v3639
      %v3641 = vrot.slane %v3633, %v3640
      %v3643 = vunpack.c.l.s4 1983009808
      %v3644 = vunpack.c.0.s8 %v3643
      %v3645 = vlaneseq
      %v3646 = vshrl.u32 %v3645, 7
      %v3647 = vsub.s32 %v3644, %v3646
      %v3648 = vrot.slane %v3634, %v3647
      %v3649 = vcombine.low %v3641, %v3648
      %v3651 = vunpack.c.l.s4 1983009808
      %v3652 = vunpack.c.0.s8 %v3651
      %v3653 = vlaneseq
      %v3654 = vshrl.u32 %v3653, 7
      %v3655 = vsub.s32 %v3652, %v3654
      %v3656 = vrot.slane %v3105, %v3655
      %v3657 = vcombine.low %v3104, %v3106
      %v3658 = vcombine.low %v3114, %v3122
      %v3660 = vunpack.c.l.s4 1983009808
      %v3661 = vunpack.c.0.s8 %v3660
      %v3662 = vlaneseq
      %v3663 = vshrl.u32 %v3662, 7
      %v3664 = vsub.s32 %v3661, %v3663
      %v3665 = vrot.slane %v3657, %v3664
      %v3667 = vunpack.c.l.s4 1983009808
      %v3668 = vunpack.c.0.s8 %v3667
      %v3669 = vlaneseq
      %v3670 = vshrl.u32 %v3669, 7
      %v3671 = vsub.s32 %v3668, %v3670
      %v3672 = vrot.slane %v3658, %v3671
      %v3673 = vcombine.low %v3665, %v3672
      %v3674 = vcombine.low %v3121, %v3123
      %v3675 = vcombine.low %v3131, %v3139
      %v3677 = vunpack.c.l.s4 1983009808
      %v3678 = vunpack.c.0.s8 %v3677
      %v3679 = vlaneseq
      %v3680 = vshrl.u32 %v3679, 7
      %v3681 = vsub.s32 %v3678, %v3680
      %v3682 = vrot.slane %v3674, %v3681
      %v3684 = vunpack.c.l.s4 1983009808
      %v3685 = vunpack.c.0.s8 %v3684
      %v3686 = vlaneseq
      %v3687 = vshrl.u32 %v3686, 7
      %v3688 = vsub.s32 %v3685, %v3687
      %v3689 = vrot.slane %v3675, %v3688
      %v3690 = vcombine.low %v3682, %v3689
      %v3692 = vunpack.c.l.s4 1983009808
      %v3693 = vunpack.c.0.s8 %v3692
      %v3694 = vlaneseq
      %v3695 = vshrl.u32 %v3694, 7
      %v3696 = vsub.s32 %v3693, %v3695
      %v3697 = vrot.slane %v3138, %v3696
      %v3698 = vcombine.low %v3140, %v3148
      %v3699 = vcombine.low %v3156, %v3155
      %v3701 = vunpack.c.l.s4 1983009808
      %v3702 = vunpack.c.0.s8 %v3701
      %v3703 = vlaneseq
      %v3704 = vshrl.u32 %v3703, 7
      %v3705 = vsub.s32 %v3702, %v3704
      %v3706 = vrot.slane %v3698, %v3705
      %v3708 = vunpack.c.l.s4 1983009808
      %v3709 = vunpack.c.0.s8 %v3708
      %v3710 = vlaneseq
      %v3711 = vshrl.u32 %v3710, 7
      %v3712 = vsub.s32 %v3709, %v3711
      %v3713 = vrot.slane %v3699, %v3712
      %v3714 = vcombine.low %v3706, %v3713
      %v3715 = vcombine.low %v3157, %v3165
      %v3716 = vcombine.low %v3173, %v3172
      %v3718 = vunpack.c.l.s4 1983009808
      %v3719 = vunpack.c.0.s8 %v3718
      %v3720 = vlaneseq
      %v3721 = vshrl.u32 %v3720, 7
      %v3722 = vsub.s32 %v3719, %v3721
      %v3723 = vrot.slane %v3715, %v3722
      %v3725 = vunpack.c.l.s4 1983009808
      %v3726 = vunpack.c.0.s8 %v3725
      %v3727 = vlaneseq
      %v3728 = vshrl.u32 %v3727, 7
      %v3729 = vsub.s32 %v3726, %v3728
      %v3730 = vrot.slane %v3716, %v3729
      %v3731 = vcombine.low %v3723, %v3730
      %v3733 = vunpack.c.l.s4 1983009808
      %v3734 = vunpack.c.0.s8 %v3733
      %v3735 = vlaneseq
      %v3736 = vshrl.u32 %v3735, 7
      %v3737 = vsub.s32 %v3734, %v3736
      %v3738 = vrot.slane %v3174, %v3737
      %v3739 = vcombine.low %v3182, %v3190
      %v3740 = vcombine.low %v3189, %v3191
      %v3742 = vunpack.c.l.s4 1983009808
      %v3743 = vunpack.c.0.s8 %v3742
      %v3744 = vlaneseq
      %v3745 = vshrl.u32 %v3744, 7
      %v3746 = vsub.s32 %v3743, %v3745
      %v3747 = vrot.slane %v3739, %v3746
      %v3749 = vunpack.c.l.s4 1983009808
      %v3750 = vunpack.c.0.s8 %v3749
      %v3751 = vlaneseq
      %v3752 = vshrl.u32 %v3751, 7
      %v3753 = vsub.s32 %v3750, %v3752
      %v3754 = vrot.slane %v3740, %v3753
      %v3755 = vcombine.low %v3747, %v3754
      %v3756 = vcombine.low %v3199, %v3207
      %v3757 = vcombine.low %v3206, %v3208
      %v3759 = vunpack.c.l.s4 1983009808
      %v3760 = vunpack.c.0.s8 %v3759
      %v3761 = vlaneseq
      %v3762 = vshrl.u32 %v3761, 7
      %v3763 = vsub.s32 %v3760, %v3762
      %v3764 = vrot.slane %v3756, %v3763
      %v3766 = vunpack.c.l.s4 1983009808
      %v3767 = vunpack.c.0.s8 %v3766
      %v3768 = vlaneseq
      %v3769 = vshrl.u32 %v3768, 7
      %v3770 = vsub.s32 %v3767, %v3769
      %v3771 = vrot.slane %v3757, %v3770
      %v3772 = vcombine.low %v3764, %v3771
      %v3774 = vunpack.c.l.s4 1983009808
      %v3775 = vunpack.c.0.s8 %v3774
      %v3776 = vlaneseq
      %v3777 = vshrl.u32 %v3776, 7
      %v3778 = vsub.s32 %v3775, %v3777
      %v3779 = vrot.slane %v3216, %v3778
      %v3780 = vcombine.low %v3224, %v3223
      %v3781 = vcombine.low %v3225, %v3233
      %v3783 = vunpack.c.l.s4 1983009808
      %v3784 = vunpack.c.0.s8 %v3783
      %v3785 = vlaneseq
      %v3786 = vshrl.u32 %v3785, 7
      %v3787 = vsub.s32 %v3784, %v3786
      %v3788 = vrot.slane %v3780, %v3787
      %v3790 = vunpack.c.l.s4 1983009808
      %v3791 = vunpack.c.0.s8 %v3790
      %v3792 = vlaneseq
      %v3793 = vshrl.u32 %v3792, 7
      %v3794 = vsub.s32 %v3791, %v3793
      %v3795 = vrot.slane %v3781, %v3794
      %v3796 = vcombine.low %v3788, %v3795
      %v3797 = vcombine.low %v3241, %v3240
      %v3798 = vcombine.low %v3242, %v3250
      %v3800 = vunpack.c.l.s4 1983009808
      %v3801 = vunpack.c.0.s8 %v3800
      %v3802 = vlaneseq
      %v3803 = vshrl.u32 %v3802, 7
      %v3804 = vsub.s32 %v3801, %v3803
      %v3805 = vrot.slane %v3797, %v3804
      %v3807 = vunpack.c.l.s4 1983009808
      %v3808 = vunpack.c.0.s8 %v3807
      %v3809 = vlaneseq
      %v3810 = vshrl.u32 %v3809, 7
      %v3811 = vsub.s32 %v3808, %v3810
      %v3812 = vrot.slane %v3798, %v3811
      %v3813 = vcombine.low %v3805, %v3812
      %v3815 = vunpack.c.l.s4 1983009808
      %v3816 = vunpack.c.0.s8 %v3815
      %v3817 = vlaneseq
      %v3818 = vshrl.u32 %v3817, 7
      %v3819 = vsub.s32 %v3816, %v3818
      %v3820 = vrot.slane %v3258, %v3819
      %v3821 = vcombine.low %v3257, %v3259
      %v3822 = vcombine.low %v3267, %v3275
      %v3824 = vunpack.c.l.s4 1983009808
      %v3825 = vunpack.c.0.s8 %v3824
      %v3826 = vlaneseq
      %v3827 = vshrl.u32 %v3826, 7
      %v3828 = vsub.s32 %v3825, %v3827
      %v3829 = vrot.slane %v3821, %v3828
      %v3831 = vunpack.c.l.s4 1983009808
      %v3832 = vunpack.c.0.s8 %v3831
      %v3833 = vlaneseq
      %v3834 = vshrl.u32 %v3833, 7
      %v3835 = vsub.s32 %v3832, %v3834
      %v3836 = vrot.slane %v3822, %v3835
      %v3837 = vcombine.low %v3829, %v3836
      %v3838 = vcombine.low %v3274, %v3276
      %v3839 = vcombine.low %v3284, %v3292
      %v3841 = vunpack.c.l.s4 1983009808
      %v3842 = vunpack.c.0.s8 %v3841
      %v3843 = vlaneseq
      %v3844 = vshrl.u32 %v3843, 7
      %v3845 = vsub.s32 %v3842, %v3844
      %v3846 = vrot.slane %v3838, %v3845
      %v3848 = vunpack.c.l.s4 1983009808
      %v3849 = vunpack.c.0.s8 %v3848
      %v3850 = vlaneseq
      %v3851 = vshrl.u32 %v3850, 7
      %v3852 = vsub.s32 %v3849, %v3851
      %v3853 = vrot.slane %v3839, %v3852
      %v3854 = vcombine.low %v3846, %v3853
      %v3856 = vunpack.c.l.s4 1983009808
      %v3857 = vunpack.c.0.s8 %v3856
      %v3858 = vlaneseq
      %v3859 = vshrl.u32 %v3858, 7
      %v3860 = vsub.s32 %v3857, %v3859
      %v3861 = vrot.slane %v3291, %v3860
      %v3862 = vcombine.low %v3293, %v3301
      %v3863 = vcombine.low %v3309, %v3308
      %v3865 = vunpack.c.l.s4 1983009808
      %v3866 = vunpack.c.0.s8 %v3865
      %v3867 = vlaneseq
      %v3868 = vshrl.u32 %v3867, 7
      %v3869 = vsub.s32 %v3866, %v3868
      %v3870 = vrot.slane %v3862, %v3869
      %v3872 = vunpack.c.l.s4 1983009808
      %v3873 = vunpack.c.0.s8 %v3872
      %v3874 = vlaneseq
      %v3875 = vshrl.u32 %v3874, 7
      %v3876 = vsub.s32 %v3873, %v3875
      %v3877 = vrot.slane %v3863, %v3876
      %v3878 = vcombine.low %v3870, %v3877
      %v3879 = vcombine.low %v3310, %v3318
      %v3880 = vcombine.low %v3326, %v3325
      %v3882 = vunpack.c.l.s4 1983009808
      %v3883 = vunpack.c.0.s8 %v3882
      %v3884 = vlaneseq
      %v3885 = vshrl.u32 %v3884, 7
      %v3886 = vsub.s32 %v3883, %v3885
      %v3887 = vrot.slane %v3879, %v3886
      %v3889 = vunpack.c.l.s4 1983009808
      %v3890 = vunpack.c.0.s8 %v3889
      %v3891 = vlaneseq
      %v3892 = vshrl.u32 %v3891, 7
      %v3893 = vsub.s32 %v3890, %v3892
      %v3894 = vrot.slane %v3880, %v3893
      %v3895 = vcombine.low %v3887, %v3894
      %v3897 = vunpack.c.l.s4 1983009808
      %v3898 = vunpack.c.0.s8 %v3897
      %v3899 = vlaneseq
      %v3900 = vshrl.u32 %v3899, 7
      %v3901 = vsub.s32 %v3898, %v3900
      %v3902 = vrot.slane %v3327, %v3901
      %v3903 = vcombine.low %v3335, %v3343
      %v3904 = vcombine.low %v3342, %v3344
      %v3906 = vunpack.c.l.s4 1983009808
      %v3907 = vunpack.c.0.s8 %v3906
      %v3908 = vlaneseq
      %v3909 = vshrl.u32 %v3908, 7
      %v3910 = vsub.s32 %v3907, %v3909
      %v3911 = vrot.slane %v3903, %v3910
      %v3913 = vunpack.c.l.s4 1983009808
      %v3914 = vunpack.c.0.s8 %v3913
      %v3915 = vlaneseq
      %v3916 = vshrl.u32 %v3915, 7
      %v3917 = vsub.s32 %v3914, %v3916
      %v3918 = vrot.slane %v3904, %v3917
      %v3919 = vcombine.low %v3911, %v3918
      %v3920 = vcombine.low %v3352, %v3360
      %v3921 = vcombine.low %v3359, %v3361
      %v3923 = vunpack.c.l.s4 1983009808
      %v3924 = vunpack.c.0.s8 %v3923
      %v3925 = vlaneseq
      %v3926 = vshrl.u32 %v3925, 7
      %v3927 = vsub.s32 %v3924, %v3926
      %v3928 = vrot.slane %v3920, %v3927
      %v3930 = vunpack.c.l.s4 1983009808
      %v3931 = vunpack.c.0.s8 %v3930
      %v3932 = vlaneseq
      %v3933 = vshrl.u32 %v3932, 7
      %v3934 = vsub.s32 %v3931, %v3933
      %v3935 = vrot.slane %v3921, %v3934
      %v3936 = vcombine.low %v3928, %v3935
      %v3938 = vunpack.c.l.s4 1983009808
      %v3939 = vunpack.c.0.s8 %v3938
      %v3940 = vlaneseq
      %v3941 = vshrl.u32 %v3940, 7
      %v3942 = vsub.s32 %v3939, %v3941
      %v3943 = vrot.slane %v3369, %v3942
      %v3944 = vcombine.low %v3377, %v3376
      %v3945 = vcombine.low %v3378, %v3386
      %v3947 = vunpack.c.l.s4 1983009808
      %v3948 = vunpack.c.0.s8 %v3947
      %v3949 = vlaneseq
      %v3950 = vshrl.u32 %v3949, 7
      %v3951 = vsub.s32 %v3948, %v3950
      %v3952 = vrot.slane %v3944, %v3951
      %v3954 = vunpack.c.l.s4 1983009808
      %v3955 = vunpack.c.0.s8 %v3954
      %v3956 = vlaneseq
      %v3957 = vshrl.u32 %v3956, 7
      %v3958 = vsub.s32 %v3955, %v3957
      %v3959 = vrot.slane %v3945, %v3958
      %v3960 = vcombine.low %v3952, %v3959
      %v3961 = vcombine.low %v3394, %v3393
      %v3962 = vcombine.low %v3395, %v3402
      %v3964 = vunpack.c.l.s4 1983009808
      %v3965 = vunpack.c.0.s8 %v3964
      %v3966 = vlaneseq
      %v3967 = vshrl.u32 %v3966, 7
      %v3968 = vsub.s32 %v3965, %v3967
      %v3969 = vrot.slane %v3961, %v3968
      %v3971 = vunpack.c.l.s4 1983009808
      %v3972 = vunpack.c.0.s8 %v3971
      %v3973 = vlaneseq
      %v3974 = vshrl.u32 %v3973, 7
      %v3975 = vsub.s32 %v3972, %v3974
      %v3976 = vrot.slane %v3962, %v3975
      %v3977 = vcombine.low %v3969, %v3976
      %v3979 = vunpack.c.l.s4 1983009808
      %v3980 = vunpack.c.0.s8 %v3979
      %v3981 = vlaneseq
      %v3982 = vshrl.u32 %v3981, 7
      %v3983 = vsub.s32 %v3980, %v3982
      %v3984 = vrot.slane %v3403, %v3983
      %v4015 = vsel %vm3545, %v3591, 0.0
      %v4016 = vsel %vm3546, %v3608, 0.0
      %v4017 = vsel %vm3547, %v3615, 0.0
      %v4018 = vsel %vm3548, %v3632, 0.0
      %v4019 = vsel %vm3549, %v3649, 0.0
      %v4020 = vsel %vm3550, %v3656, 0.0
      %v4021 = vsel %vm3551, %v3673, 0.0
      %v4022 = vsel %vm3552, %v3690, 0.0
      %v4023 = vsel %vm3553, %v3697, 0.0
      %v4024 = vsel %vm3554, %v3714, 0.0
      %v4025 = vsel %vm3555, %v3731, 0.0
      %v4026 = vsel %vm3556, %v3738, 0.0
      %v4027 = vsel %vm3557, %v3755, 0.0
      %v4028 = vsel %vm3558, %v3772, 0.0
      %v4029 = vsel %vm3559, %v3779, 0.0
      %v4030 = vsel %vm3560, %v3796, 0.0
      %v4031 = vsel %vm3561, %v3813, 0.0
      %v4032 = vsel %vm3562, %v3820, 0.0
      %v4033 = vsel %vm3563, %v3837, 0.0
      %v4034 = vsel %vm3564, %v3854, 0.0
      %v4035 = vsel %vm3565, %v3861, 0.0
      %v4036 = vsel %vm3566, %v3878, 0.0
      %v4037 = vsel %vm3567, %v3895, 0.0
      %v4038 = vsel %vm3568, %v3902, 0.0
      %v4039 = vsel %vm3569, %v3919, 0.0
      %v4040 = vsel %vm3570, %v3936, 0.0
      %v4041 = vsel %vm3571, %v3943, 0.0
      %v4042 = vsel %vm3572, %v3960, 0.0
      %v4043 = vsel %vm3573, %v3977, 0.0
      %v4044 = vsel %vm3574, %v3984, 0.0
      %vm4069 = vcmask 1046528
      %v4070 = vrot.slane %v4015, 1
      %v4071 = vrot.slane %v4016, 1
      %v4072 = vsel %vm4069, %v4070, %v4071
      %v4073 = vrot.slane %v4017, 1
      %v4074 = vsel %vm4069, %v4071, %v4073
      %v4075 = vrot.slane %v4018, 1
      %v4076 = vrot.slane %v4019, 1
      %v4077 = vsel %vm4069, %v4075, %v4076
      %v4078 = vrot.slane %v4020, 1
      %v4079 = vsel %vm4069, %v4076, %v4078
      %v4080 = vrot.slane %v4021, 1
      %v4081 = vrot.slane %v4022, 1
      %v4082 = vsel %vm4069, %v4080, %v4081
      %v4083 = vrot.slane %v4023, 1
      %v4084 = vsel %vm4069, %v4081, %v4083
      %v4085 = vrot.slane %v4024, 1
      %v4086 = vrot.slane %v4025, 1
      %v4087 = vsel %vm4069, %v4085, %v4086
      %v4088 = vrot.slane %v4026, 1
      %v4089 = vsel %vm4069, %v4086, %v4088
      %v4090 = vrot.slane %v4027, 1
      %v4091 = vrot.slane %v4028, 1
      %v4092 = vsel %vm4069, %v4090, %v4091
      %v4093 = vrot.slane %v4029, 1
      %v4094 = vsel %vm4069, %v4091, %v4093
      %v4095 = vrot.slane %v4030, 1
      %v4096 = vrot.slane %v4031, 1
      %v4097 = vsel %vm4069, %v4095, %v4096
      %v4098 = vrot.slane %v4032, 1
      %v4099 = vsel %vm4069, %v4096, %v4098
      %v4100 = vrot.slane %v4033, 1
      %v4101 = vrot.slane %v4034, 1
      %v4102 = vsel %vm4069, %v4100, %v4101
      %v4103 = vrot.slane %v4035, 1
      %v4104 = vsel %vm4069, %v4101, %v4103
      %v4105 = vrot.slane %v4036, 1
      %v4106 = vrot.slane %v4037, 1
      %v4107 = vsel %vm4069, %v4105, %v4106
      %v4108 = vrot.slane %v4038, 1
      %v4109 = vsel %vm4069, %v4106, %v4108
      %4110 = vrot.lane.b32.xlu0 %v4072, 4
      %v4111 = vpop.permute.xlu0 %4110
      %4112 = vrot.lane.b32.xlu0 %v4074, 4
      %v4113 = vpop.permute.xlu0 %4112
      %4114 = vrot.lane.b32.xlu0 %v4077, 4
      %v4115 = vpop.permute.xlu0 %4114
      %4116 = vrot.lane.b32.xlu0 %v4079, 4
      %v4117 = vpop.permute.xlu0 %4116
      %4118 = vrot.lane.b32.xlu0 %v4082, 4
      %v4119 = vpop.permute.xlu0 %4118
      %4120 = vrot.lane.b32.xlu0 %v4084, 4
      %v4121 = vpop.permute.xlu0 %4120
      %4122 = vrot.lane.b32.xlu0 %v4087, 4
      %v4123 = vpop.permute.xlu0 %4122
      %4124 = vrot.lane.b32.xlu0 %v4089, 4
      %v4125 = vpop.permute.xlu0 %4124
      %4126 = vrot.lane.b32.xlu0 %v4092, 4
      %v4127 = vpop.permute.xlu0 %4126
      %4128 = vrot.lane.b32.xlu0 %v4094, 4
      %v4129 = vpop.permute.xlu0 %4128
      %4130 = vrot.lane.b32.xlu0 %v4097, 4
      %v4131 = vpop.permute.xlu0 %4130
      %4132 = vrot.lane.b32.xlu0 %v4099, 4
      %v4133 = vpop.permute.xlu0 %4132
      %4134 = vrot.lane.b32.xlu0 %v4102, 4
      %v4135 = vpop.permute.xlu0 %4134
      %4136 = vrot.lane.b32.xlu0 %v4104, 4
      %v4137 = vpop.permute.xlu0 %4136
      %4138 = vrot.lane.b32.xlu0 %v4107, 4
      %v4139 = vpop.permute.xlu0 %4138
      %4140 = vrot.lane.b32.xlu0 %v4109, 4
      %v4141 = vpop.permute.xlu0 %4140
      %vm4158 = vcmask 1045504
      %v4159 = vrot.slane %v4015, 2
      %v4160 = vrot.slane %v4016, 2
      %v4161 = vsel %vm4158, %v4159, %v4160
      %v4162 = vrot.slane %v4017, 2
      %v4163 = vsel %vm4158, %v4160, %v4162
      %v4164 = vrot.slane %v4018, 2
      %v4165 = vrot.slane %v4019, 2
      %v4166 = vsel %vm4158, %v4164, %v4165
      %v4167 = vrot.slane %v4020, 2
      %v4168 = vsel %vm4158, %v4165, %v4167
      %v4169 = vrot.slane %v4021, 2
      %v4170 = vrot.slane %v4022, 2
      %v4171 = vsel %vm4158, %v4169, %v4170
      %v4172 = vrot.slane %v4023, 2
      %v4173 = vsel %vm4158, %v4170, %v4172
      %v4174 = vrot.slane %v4024, 2
      %v4175 = vrot.slane %v4025, 2
      %v4176 = vsel %vm4158, %v4174, %v4175
      %v4177 = vrot.slane %v4026, 2
      %v4178 = vsel %vm4158, %v4175, %v4177
      %v4179 = vrot.slane %v4027, 2
      %v4180 = vrot.slane %v4028, 2
      %v4181 = vsel %vm4158, %v4179, %v4180
      %v4182 = vrot.slane %v4029, 2
      %v4183 = vsel %vm4158, %v4180, %v4182
      %v4184 = vrot.slane %v4030, 2
      %v4185 = vrot.slane %v4031, 2
      %v4186 = vsel %vm4158, %v4184, %v4185
      %v4187 = vrot.slane %v4032, 2
      %v4188 = vsel %vm4158, %v4185, %v4187
      %v4189 = vrot.slane %v4033, 2
      %v4190 = vrot.slane %v4034, 2
      %v4191 = vsel %vm4158, %v4189, %v4190
      %v4192 = vrot.slane %v4035, 2
      %v4193 = vsel %vm4158, %v4190, %v4192
      %v4194 = vrot.slane %v4036, 2
      %v4195 = vrot.slane %v4037, 2
      %v4196 = vsel %vm4158, %v4194, %v4195
      %v4197 = vrot.slane %v4038, 2
      %v4198 = vsel %vm4158, %v4195, %v4197
      %4199 = vrot.lane.b32.xlu0 %v4161, 8
      %v4200 = vpop.permute.xlu0 %4199
      %4201 = vrot.lane.b32.xlu0 %v4163, 8
      %v4202 = vpop.permute.xlu0 %4201
      %4203 = vrot.lane.b32.xlu0 %v4166, 8
      %v4204 = vpop.permute.xlu0 %4203
      %4205 = vrot.lane.b32.xlu0 %v4168, 8
      %v4206 = vpop.permute.xlu0 %4205
      %4207 = vrot.lane.b32.xlu0 %v4171, 8
      %v4208 = vpop.permute.xlu0 %4207
      %4209 = vrot.lane.b32.xlu0 %v4173, 8
      %v4210 = vpop.permute.xlu0 %4209
      %4211 = vrot.lane.b32.xlu0 %v4176, 8
      %v4212 = vpop.permute.xlu0 %4211
      %4213 = vrot.lane.b32.xlu0 %v4178, 8
      %v4214 = vpop.permute.xlu0 %4213
      %4215 = vrot.lane.b32.xlu0 %v4181, 8
      %v4216 = vpop.permute.xlu0 %4215
      %4217 = vrot.lane.b32.xlu0 %v4183, 8
      %v4218 = vpop.permute.xlu0 %4217
      %4219 = vrot.lane.b32.xlu0 %v4186, 8
      %v4220 = vpop.permute.xlu0 %4219
      %4221 = vrot.lane.b32.xlu0 %v4188, 8
      %v4222 = vpop.permute.xlu0 %4221
      %4223 = vrot.lane.b32.xlu0 %v4191, 8
      %v4224 = vpop.permute.xlu0 %4223
      %4225 = vrot.lane.b32.xlu0 %v4193, 8
      %v4226 = vpop.permute.xlu0 %4225
      %4227 = vrot.lane.b32.xlu0 %v4196, 8
      %v4228 = vpop.permute.xlu0 %4227
      %4229 = vrot.lane.b32.xlu0 %v4198, 8
      %v4230 = vpop.permute.xlu0 %4229
      %4249 = vrot.lane.b32.xlu0 %v4018, 12
      %v4250 = vpop.permute.xlu0 %4249
      %4251 = vrot.lane.b32.xlu0 %v4019, 12
      %v4252 = vpop.permute.xlu0 %4251
      %4253 = vrot.lane.b32.xlu0 %v4021, 12
      %v4254 = vpop.permute.xlu0 %4253
      %4255 = vrot.lane.b32.xlu0 %v4022, 12
      %v4256 = vpop.permute.xlu0 %4255
      %4257 = vrot.lane.b32.xlu0 %v4024, 12
      %v4258 = vpop.permute.xlu0 %4257
      %4259 = vrot.lane.b32.xlu0 %v4025, 12
      %v4260 = vpop.permute.xlu0 %4259
      %4261 = vrot.lane.b32.xlu0 %v4027, 12
      %v4262 = vpop.permute.xlu0 %4261
      %4263 = vrot.lane.b32.xlu0 %v4028, 12
      %v4264 = vpop.permute.xlu0 %4263
      %4265 = vrot.lane.b32.xlu0 %v4030, 12
      %v4266 = vpop.permute.xlu0 %4265
      %4267 = vrot.lane.b32.xlu0 %v4031, 12
      %v4268 = vpop.permute.xlu0 %4267
      %4269 = vrot.lane.b32.xlu0 %v4033, 12
      %v4270 = vpop.permute.xlu0 %4269
      %4271 = vrot.lane.b32.xlu0 %v4034, 12
      %v4272 = vpop.permute.xlu0 %4271
      %4273 = vrot.lane.b32.xlu0 %v4036, 12
      %v4274 = vpop.permute.xlu0 %4273
      %4275 = vrot.lane.b32.xlu0 %v4037, 12
      %v4276 = vpop.permute.xlu0 %4275
      %4277 = vrot.lane.b32.xlu0 %v4039, 12
      %v4278 = vpop.permute.xlu0 %4277
      %4279 = vrot.lane.b32.xlu0 %v4040, 12
      %v4280 = vpop.permute.xlu0 %4279
      %v4298 = vrot.slane %v4039, 1
      %v4299 = vrot.slane %v4040, 1
      %v4300 = vsel %vm4069, %v4298, %v4299
      %v4301 = vrot.slane %v4041, 1
      %v4302 = vsel %vm4069, %v4299, %v4301
      %4303 = vrot.lane.b32.xlu0 %v4077, 16
      %v4304 = vpop.permute.xlu0 %4303
      %4305 = vrot.lane.b32.xlu0 %v4079, 16
      %v4306 = vpop.permute.xlu0 %4305
      %4307 = vrot.lane.b32.xlu0 %v4082, 16
      %v4308 = vpop.permute.xlu0 %4307
      %4309 = vrot.lane.b32.xlu0 %v4084, 16
      %v4310 = vpop.permute.xlu0 %4309
      %4311 = vrot.lane.b32.xlu0 %v4087, 16
      %v4312 = vpop.permute.xlu0 %4311
      %4313 = vrot.lane.b32.xlu0 %v4089, 16
      %v4314 = vpop.permute.xlu0 %4313
      %4315 = vrot.lane.b32.xlu0 %v4092, 16
      %v4316 = vpop.permute.xlu0 %4315
      %4317 = vrot.lane.b32.xlu0 %v4094, 16
      %v4318 = vpop.permute.xlu0 %4317
      %4319 = vrot.lane.b32.xlu0 %v4097, 16
      %v4320 = vpop.permute.xlu0 %4319
      %4321 = vrot.lane.b32.xlu0 %v4099, 16
      %v4322 = vpop.permute.xlu0 %4321
      %4323 = vrot.lane.b32.xlu0 %v4102, 16
      %v4324 = vpop.permute.xlu0 %4323
      %4325 = vrot.lane.b32.xlu0 %v4104, 16
      %v4326 = vpop.permute.xlu0 %4325
      %4327 = vrot.lane.b32.xlu0 %v4107, 16
      %v4328 = vpop.permute.xlu0 %4327
      %4329 = vrot.lane.b32.xlu0 %v4109, 16
      %v4330 = vpop.permute.xlu0 %4329
      %4331 = vrot.lane.b32.xlu0 %v4300, 16
      %v4332 = vpop.permute.xlu0 %4331
      %4333 = vrot.lane.b32.xlu0 %v4302, 16
      %v4334 = vpop.permute.xlu0 %4333
      %v4351 = vrot.slane %v4039, 2
      %v4352 = vrot.slane %v4040, 2
      %v4353 = vsel %vm4158, %v4351, %v4352
      %v4354 = vrot.slane %v4041, 2
      %v4355 = vsel %vm4158, %v4352, %v4354
      %4356 = vrot.lane.b32.xlu0 %v4166, 20
      %v4357 = vpop.permute.xlu0 %4356
      %4358 = vrot.lane.b32.xlu0 %v4168, 20
      %v4359 = vpop.permute.xlu0 %4358
      %4360 = vrot.lane.b32.xlu0 %v4171, 20
      %v4361 = vpop.permute.xlu0 %4360
      %4362 = vrot.lane.b32.xlu0 %v4173, 20
      %v4363 = vpop.permute.xlu0 %4362
      %4364 = vrot.lane.b32.xlu0 %v4176, 20
      %v4365 = vpop.permute.xlu0 %4364
      %4366 = vrot.lane.b32.xlu0 %v4178, 20
      %v4367 = vpop.permute.xlu0 %4366
      %4368 = vrot.lane.b32.xlu0 %v4181, 20
      %v4369 = vpop.permute.xlu0 %4368
      %4370 = vrot.lane.b32.xlu0 %v4183, 20
      %v4371 = vpop.permute.xlu0 %4370
      %4372 = vrot.lane.b32.xlu0 %v4186, 20
      %v4373 = vpop.permute.xlu0 %4372
      %4374 = vrot.lane.b32.xlu0 %v4188, 20
      %v4375 = vpop.permute.xlu0 %4374
      %4376 = vrot.lane.b32.xlu0 %v4191, 20
      %v4377 = vpop.permute.xlu0 %4376
      %4378 = vrot.lane.b32.xlu0 %v4193, 20
      %v4379 = vpop.permute.xlu0 %4378
      %4380 = vrot.lane.b32.xlu0 %v4196, 20
      %v4381 = vpop.permute.xlu0 %4380
      %4382 = vrot.lane.b32.xlu0 %v4198, 20
      %v4383 = vpop.permute.xlu0 %4382
      %4384 = vrot.lane.b32.xlu0 %v4353, 20
      %v4385 = vpop.permute.xlu0 %4384
      %4386 = vrot.lane.b32.xlu0 %v4355, 20
      %v4387 = vpop.permute.xlu0 %4386
      %4406 = vrot.lane.b32.xlu0 %v4021, 24
      %v4407 = vpop.permute.xlu0 %4406
      %4408 = vrot.lane.b32.xlu0 %v4022, 24
      %v4409 = vpop.permute.xlu0 %4408
      %4410 = vrot.lane.b32.xlu0 %v4024, 24
      %v4411 = vpop.permute.xlu0 %4410
      %4412 = vrot.lane.b32.xlu0 %v4025, 24
      %v4413 = vpop.permute.xlu0 %4412
      %4414 = vrot.lane.b32.xlu0 %v4027, 24
      %v4415 = vpop.permute.xlu0 %4414
      %4416 = vrot.lane.b32.xlu0 %v4028, 24
      %v4417 = vpop.permute.xlu0 %4416
      %4418 = vrot.lane.b32.xlu0 %v4030, 24
      %v4419 = vpop.permute.xlu0 %4418
      %4420 = vrot.lane.b32.xlu0 %v4031, 24
      %v4421 = vpop.permute.xlu0 %4420
      %4422 = vrot.lane.b32.xlu0 %v4033, 24
      %v4423 = vpop.permute.xlu0 %4422
      %4424 = vrot.lane.b32.xlu0 %v4034, 24
      %v4425 = vpop.permute.xlu0 %4424
      %4426 = vrot.lane.b32.xlu0 %v4036, 24
      %v4427 = vpop.permute.xlu0 %4426
      %4428 = vrot.lane.b32.xlu0 %v4037, 24
      %v4429 = vpop.permute.xlu0 %4428
      %4430 = vrot.lane.b32.xlu0 %v4039, 24
      %v4431 = vpop.permute.xlu0 %4430
      %4432 = vrot.lane.b32.xlu0 %v4040, 24
      %v4433 = vpop.permute.xlu0 %4432
      %4434 = vrot.lane.b32.xlu0 %v4042, 24
      %v4435 = vpop.permute.xlu0 %4434
      %4436 = vrot.lane.b32.xlu0 %v4043, 24
      %v4437 = vpop.permute.xlu0 %4436
      %v4455 = vrot.slane %v4042, 1
      %v4456 = vrot.slane %v4043, 1
      %v4457 = vsel %vm4069, %v4455, %v4456
      %v4458 = vrot.slane %v4044, 1
      %v4459 = vsel %vm4069, %v4456, %v4458
      %4460 = vrot.lane.b32.xlu0 %v4082, 28
      %v4461 = vpop.permute.xlu0 %4460
      %4462 = vrot.lane.b32.xlu0 %v4084, 28
      %v4463 = vpop.permute.xlu0 %4462
      %4464 = vrot.lane.b32.xlu0 %v4087, 28
      %v4465 = vpop.permute.xlu0 %4464
      %4466 = vrot.lane.b32.xlu0 %v4089, 28
      %v4467 = vpop.permute.xlu0 %4466
      %4468 = vrot.lane.b32.xlu0 %v4092, 28
      %v4469 = vpop.permute.xlu0 %4468
      %4470 = vrot.lane.b32.xlu0 %v4094, 28
      %v4471 = vpop.permute.xlu0 %4470
      %4472 = vrot.lane.b32.xlu0 %v4097, 28
      %v4473 = vpop.permute.xlu0 %4472
      %4474 = vrot.lane.b32.xlu0 %v4099, 28
      %v4475 = vpop.permute.xlu0 %4474
      %4476 = vrot.lane.b32.xlu0 %v4102, 28
      %v4477 = vpop.permute.xlu0 %4476
      %4478 = vrot.lane.b32.xlu0 %v4104, 28
      %v4479 = vpop.permute.xlu0 %4478
      %4480 = vrot.lane.b32.xlu0 %v4107, 28
      %v4481 = vpop.permute.xlu0 %4480
      %4482 = vrot.lane.b32.xlu0 %v4109, 28
      %v4483 = vpop.permute.xlu0 %4482
      %4484 = vrot.lane.b32.xlu0 %v4300, 28
      %v4485 = vpop.permute.xlu0 %4484
      %4486 = vrot.lane.b32.xlu0 %v4302, 28
      %v4487 = vpop.permute.xlu0 %4486
      %4488 = vrot.lane.b32.xlu0 %v4457, 28
      %v4489 = vpop.permute.xlu0 %4488
      %4490 = vrot.lane.b32.xlu0 %v4459, 28
      %v4491 = vpop.permute.xlu0 %4490
      %v4508 = vrot.slane %v4042, 2
      %v4509 = vrot.slane %v4043, 2
      %v4510 = vsel %vm4158, %v4508, %v4509
      %v4511 = vrot.slane %v4044, 2
      %v4512 = vsel %vm4158, %v4509, %v4511
      %4513 = vrot.lane.b32.xlu0 %v4171, 32
      %v4514 = vpop.permute.xlu0 %4513
      %4515 = vrot.lane.b32.xlu0 %v4173, 32
      %v4516 = vpop.permute.xlu0 %4515
      %4517 = vrot.lane.b32.xlu0 %v4176, 32
      %v4518 = vpop.permute.xlu0 %4517
      %4519 = vrot.lane.b32.xlu0 %v4178, 32
      %v4520 = vpop.permute.xlu0 %4519
      %4521 = vrot.lane.b32.xlu0 %v4181, 32
      %v4522 = vpop.permute.xlu0 %4521
      %4523 = vrot.lane.b32.xlu0 %v4183, 32
      %v4524 = vpop.permute.xlu0 %4523
      %4525 = vrot.lane.b32.xlu0 %v4186, 32
      %v4526 = vpop.permute.xlu0 %4525
      %4527 = vrot.lane.b32.xlu0 %v4188, 32
      %v4528 = vpop.permute.xlu0 %4527
      %4529 = vrot.lane.b32.xlu0 %v4191, 32
      %v4530 = vpop.permute.xlu0 %4529
      %4531 = vrot.lane.b32.xlu0 %v4193, 32
      %v4532 = vpop.permute.xlu0 %4531
      %4533 = vrot.lane.b32.xlu0 %v4196, 32
      %v4534 = vpop.permute.xlu0 %4533
      %4535 = vrot.lane.b32.xlu0 %v4198, 32
      %v4536 = vpop.permute.xlu0 %4535
      %4537 = vrot.lane.b32.xlu0 %v4353, 32
      %v4538 = vpop.permute.xlu0 %4537
      %4539 = vrot.lane.b32.xlu0 %v4355, 32
      %v4540 = vpop.permute.xlu0 %4539
      %4541 = vrot.lane.b32.xlu0 %v4510, 32
      %v4542 = vpop.permute.xlu0 %4541
      %4543 = vrot.lane.b32.xlu0 %v4512, 32
      %v4544 = vpop.permute.xlu0 %4543
      %v4561 = vsel %vm1617, %v4015, %v4111
      %v4562 = vsel %vm1617, %v4016, %v4113
      %v4563 = vsel %vm1617, %v4018, %v4115
      %v4564 = vsel %vm1617, %v4019, %v4117
      %v4565 = vsel %vm1617, %v4021, %v4119
      %v4566 = vsel %vm1617, %v4022, %v4121
      %v4567 = vsel %vm1617, %v4024, %v4123
      %v4568 = vsel %vm1617, %v4025, %v4125
      %v4569 = vsel %vm1617, %v4027, %v4127
      %v4570 = vsel %vm1617, %v4028, %v4129
      %v4571 = vsel %vm1617, %v4030, %v4131
      %v4572 = vsel %vm1617, %v4031, %v4133
      %v4573 = vsel %vm1617, %v4033, %v4135
      %v4574 = vsel %vm1617, %v4034, %v4137
      %v4575 = vsel %vm1617, %v4036, %v4139
      %v4576 = vsel %vm1617, %v4037, %v4141
      %v4577 = vsel %vm1648, %v4561, %v4200
      %v4578 = vsel %vm1648, %v4562, %v4202
      %v4579 = vsel %vm1648, %v4563, %v4204
      %v4580 = vsel %vm1648, %v4564, %v4206
      %v4581 = vsel %vm1648, %v4565, %v4208
      %v4582 = vsel %vm1648, %v4566, %v4210
      %v4583 = vsel %vm1648, %v4567, %v4212
      %v4584 = vsel %vm1648, %v4568, %v4214
      %v4585 = vsel %vm1648, %v4569, %v4216
      %v4586 = vsel %vm1648, %v4570, %v4218
      %v4587 = vsel %vm1648, %v4571, %v4220
      %v4588 = vsel %vm1648, %v4572, %v4222
      %v4589 = vsel %vm1648, %v4573, %v4224
      %v4590 = vsel %vm1648, %v4574, %v4226
      %v4591 = vsel %vm1648, %v4575, %v4228
      %v4592 = vsel %vm1648, %v4576, %v4230
      %v4593 = vsel %vm1679, %v4577, %v4250
      %v4594 = vsel %vm1679, %v4578, %v4252
      %v4595 = vsel %vm1679, %v4579, %v4254
      %v4596 = vsel %vm1679, %v4580, %v4256
      %v4597 = vsel %vm1679, %v4581, %v4258
      %v4598 = vsel %vm1679, %v4582, %v4260
      %v4599 = vsel %vm1679, %v4583, %v4262
      %v4600 = vsel %vm1679, %v4584, %v4264
      %v4601 = vsel %vm1679, %v4585, %v4266
      %v4602 = vsel %vm1679, %v4586, %v4268
      %v4603 = vsel %vm1679, %v4587, %v4270
      %v4604 = vsel %vm1679, %v4588, %v4272
      %v4605 = vsel %vm1679, %v4589, %v4274
      %v4606 = vsel %vm1679, %v4590, %v4276
      %v4607 = vsel %vm1679, %v4591, %v4278
      %v4608 = vsel %vm1679, %v4592, %v4280
      %v4609 = vsel %vm1710, %v4593, %v4304
      %v4610 = vsel %vm1710, %v4594, %v4306
      %v4611 = vsel %vm1710, %v4595, %v4308
      %v4612 = vsel %vm1710, %v4596, %v4310
      %v4613 = vsel %vm1710, %v4597, %v4312
      %v4614 = vsel %vm1710, %v4598, %v4314
      %v4615 = vsel %vm1710, %v4599, %v4316
      %v4616 = vsel %vm1710, %v4600, %v4318
      %v4617 = vsel %vm1710, %v4601, %v4320
      %v4618 = vsel %vm1710, %v4602, %v4322
      %v4619 = vsel %vm1710, %v4603, %v4324
      %v4620 = vsel %vm1710, %v4604, %v4326
      %v4621 = vsel %vm1710, %v4605, %v4328
      %v4622 = vsel %vm1710, %v4606, %v4330
      %v4623 = vsel %vm1710, %v4607, %v4332
      %v4624 = vsel %vm1710, %v4608, %v4334
      %v4625 = vsel %vm1741, %v4609, %v4357
      %v4626 = vsel %vm1741, %v4610, %v4359
      %v4627 = vsel %vm1741, %v4611, %v4361
      %v4628 = vsel %vm1741, %v4612, %v4363
      %v4629 = vsel %vm1741, %v4613, %v4365
      %v4630 = vsel %vm1741, %v4614, %v4367
      %v4631 = vsel %vm1741, %v4615, %v4369
      %v4632 = vsel %vm1741, %v4616, %v4371
      %v4633 = vsel %vm1741, %v4617, %v4373
      %v4634 = vsel %vm1741, %v4618, %v4375
      %v4635 = vsel %vm1741, %v4619, %v4377
      %v4636 = vsel %vm1741, %v4620, %v4379
      %v4637 = vsel %vm1741, %v4621, %v4381
      %v4638 = vsel %vm1741, %v4622, %v4383
      %v4639 = vsel %vm1741, %v4623, %v4385
      %v4640 = vsel %vm1741, %v4624, %v4387
      %v4641 = vsel %vm1772, %v4625, %v4407
      %v4642 = vsel %vm1772, %v4626, %v4409
      %v4643 = vsel %vm1772, %v4627, %v4411
      %v4644 = vsel %vm1772, %v4628, %v4413
      %v4645 = vsel %vm1772, %v4629, %v4415
      %v4646 = vsel %vm1772, %v4630, %v4417
      %v4647 = vsel %vm1772, %v4631, %v4419
      %v4648 = vsel %vm1772, %v4632, %v4421
      %v4649 = vsel %vm1772, %v4633, %v4423
      %v4650 = vsel %vm1772, %v4634, %v4425
      %v4651 = vsel %vm1772, %v4635, %v4427
      %v4652 = vsel %vm1772, %v4636, %v4429
      %v4653 = vsel %vm1772, %v4637, %v4431
      %v4654 = vsel %vm1772, %v4638, %v4433
      %v4655 = vsel %vm1772, %v4639, %v4435
      %v4656 = vsel %vm1772, %v4640, %v4437
      %v4657 = vsel %vm1803, %v4641, %v4461
      %v4658 = vsel %vm1803, %v4642, %v4463
      %v4659 = vsel %vm1803, %v4643, %v4465
      %v4660 = vsel %vm1803, %v4644, %v4467
      %v4661 = vsel %vm1803, %v4645, %v4469
      %v4662 = vsel %vm1803, %v4646, %v4471
      %v4663 = vsel %vm1803, %v4647, %v4473
      %v4664 = vsel %vm1803, %v4648, %v4475
      %v4665 = vsel %vm1803, %v4649, %v4477
      %v4666 = vsel %vm1803, %v4650, %v4479
      %v4667 = vsel %vm1803, %v4651, %v4481
      %v4668 = vsel %vm1803, %v4652, %v4483
      %v4669 = vsel %vm1803, %v4653, %v4485
      %v4670 = vsel %vm1803, %v4654, %v4487
      %v4671 = vsel %vm1803, %v4655, %v4489
      %v4672 = vsel %vm1803, %v4656, %v4491
      %v4673 = vsel %vm1834, %v4657, %v4514
      %v4674 = vsel %vm1834, %v4658, %v4516
      %v4675 = vsel %vm1834, %v4659, %v4518
      %v4676 = vsel %vm1834, %v4660, %v4520
      %v4677 = vsel %vm1834, %v4661, %v4522
      %v4678 = vsel %vm1834, %v4662, %v4524
      %v4679 = vsel %vm1834, %v4663, %v4526
      %v4680 = vsel %vm1834, %v4664, %v4528
      %v4681 = vsel %vm1834, %v4665, %v4530
      %v4682 = vsel %vm1834, %v4666, %v4532
      %v4683 = vsel %vm1834, %v4667, %v4534
      %v4684 = vsel %vm1834, %v4668, %v4536
      %v4685 = vsel %vm1834, %v4669, %v4538
      %v4686 = vsel %vm1834, %v4670, %v4540
      %v4687 = vsel %vm1834, %v4671, %v4542
      %v4688 = vsel %vm1834, %v4672, %v4544
      %v4689 = vld [vmem:[%s3] sm:$0xff]
      %v4690 = vld [vmem:[%s3 + $0x8] sm:$0xff]
      %v4691 = vld [vmem:[%s3 + $0x10] sm:$0xff]
      %v4692 = vld [vmem:[%s3 + $0x18] sm:$0xff]
      %v4693 = vld [vmem:[%s3 + $0x20] sm:$0xf]
      %v4695 = vsel %vm2699, %v4673, 0
      %v4698 = vsel %vm2699, %v4674, 0
      %v4701 = vsel %vm2699, %v4675, 0
      %v4704 = vsel %vm2699, %v4676, 0
      %v4707 = vsel %vm2699, %v4677, 0
      %v4710 = vsel %vm2699, %v4678, 0
      %v4713 = vsel %vm2699, %v4679, 0
      %v4716 = vsel %vm2699, %v4680, 0
      %v4719 = vsel %vm2699, %v4681, 0
      %v4722 = vsel %vm2699, %v4682, 0
      %v4725 = vsel %vm2699, %v4683, 0
      %v4728 = vsel %vm2699, %v4684, 0
      %v4731 = vsel %vm2699, %v4685, 0
      %v4734 = vsel %vm2699, %v4686, 0
      %v4737 = vsel %vm2699, %v4687, 0
      %v4740 = vsel %vm2699, %v4688, 0
      %v4743 = vsel %vm2746, %v4693, 0
      %4745 = vmatprep.subr.mxu0 0.0
      %4746 = vmatpush1.msra.mxu0 0.0
      %4747 = vmatprep.subr.mxu0 0.0
      %4748 = vmatpush1.msra.mxu0 0.0
      %4749 = vmatprep.subr.mxu0 0.0
      %4750 = vmatpush1.msra.mxu0 0.0
      %4751 = vmatprep.subr.mxu0 0.0
      %4752 = vmatpush1.msra.mxu0 0.0
      %4753 = vmatprep.subr.mxu0 0.0
      %4754 = vmatpush1.msra.mxu0 0.0
      %4755 = vmatprep.subr.mxu0 0.0
      %4756 = vmatpush1.msra.mxu0 0.0
      %4757 = vmatprep.subr.mxu0 0.0
      %4758 = vmatpush1.msra.mxu0 0.0
      %4759 = vmatprep.subr.mxu0 0.0
      %4760 = vmatpush1.msra.mxu0 0.0
      %4761 = vmatprep.subr.mxu0 0.0
      %4762 = vmatpush1.msra.mxu0 0.0
      %4763 = vmatprep.subr.mxu0 0.0
      %4764 = vmatpush1.msra.mxu0 0.0
      %4765 = vmatprep.subr.mxu0 0.0
      %4766 = vmatpush1.msra.mxu0 0.0
      %4767 = vmatprep.subr.mxu0 0.0
      %4768 = vmatpush1.msra.mxu0 %v4743
      %4769 = vmatprep.subr.mxu0 0.0
      %4770 = vmatpush1.msra.mxu0 %v4692
      %4771 = vmatprep.subr.mxu0 0.0
      %4772 = vmatpush1.msra.mxu0 %v4691
      %4773 = vmatprep.subr.mxu0 0.0
      %4774 = vmatpush1.msra.mxu0 %v4690
      %4775 = vmatprep.subr.mxu0 0.0
      %4776 = vmatpush1.msra.mxu0 %v4689
      %4777 = vmatprep.subr.mxu0 0.0
      %4778 = vmatpush2.msra.mxu0 0.0
      %4779 = vmatprep.subr.mxu0 0.0
      %4780 = vmatpush2.msra.mxu0 0.0
      %4781 = vmatprep.subr.mxu0 0.0
      %4782 = vmatpush2.msra.mxu0 0.0
      %4783 = vmatprep.subr.mxu0 0.0
      %4784 = vmatpush2.msra.mxu0 0.0
      %4785 = vmatprep.subr.mxu0 0.0
      %4786 = vmatpush2.msra.mxu0 0.0
      %4787 = vmatprep.subr.mxu0 0.0
      %4788 = vmatpush2.msra.mxu0 0.0
      %4789 = vmatprep.subr.mxu0 0.0
      %4790 = vmatpush2.msra.mxu0 0.0
      %4791 = vmatprep.subr.mxu0 0.0
      %4792 = vmatpush2.msra.mxu0 0.0
      %4793 = vmatprep.subr.mxu0 0.0
      %4794 = vmatpush2.msra.mxu0 0.0
      %4795 = vmatprep.subr.mxu0 0.0
      %4796 = vmatpush2.msra.mxu0 0.0
      %4797 = vmatprep.subr.mxu0 0.0
      %4798 = vmatpush2.msra.mxu0 0.0
      %4799 = vmatprep.subr.mxu0 0.0
      %4800 = vmatpush2.msra.mxu0 0.0
      %4801 = vmatprep.subr.mxu0 0.0
      %4802 = vmatpush2.msra.mxu0 0.0
      %4803 = vmatprep.subr.mxu0 0.0
      %4804 = vmatpush2.msra.mxu0 0.0
      %4805 = vmatprep.subr.mxu0 0.0
      %4806 = vmatpush2.msra.mxu0 0.0
      %4807 = vmatprep.subr.mxu0 0.0
      %4808 = vmatpush2.msra.mxu0 0.0
      %4809 = vmatprep.mubr.f32.mxu0 0.0
      %4810 = vmatmul.mubr.f32.gmra.mxu0 %v4695
      %v4811 = vpop.f32.mrf.mxu0
      %v4812 = vadd.f32 0.0, %v4811
      %v4813 = vpop.f32.mrf.mxu0
      %4814 = vmatprep.mubr.f32.mxu0 0.0
      %4815 = vmatmul.mubr.f32.gmra.mxu0 %v4698
      %v4816 = vpop.f32.mrf.mxu0
      %v4817 = vadd.f32 0.0, %v4816
      %v4818 = vpop.f32.mrf.mxu0
      %4819 = vmatprep.mubr.f32.mxu0 0.0
      %4820 = vmatmul.mubr.f32.gmra.mxu0 %v4701
      %v4821 = vpop.f32.mrf.mxu0
      %v4822 = vadd.f32 0.0, %v4821
      %v4823 = vpop.f32.mrf.mxu0
      %4824 = vmatprep.mubr.f32.mxu0 0.0
      %4825 = vmatmul.mubr.f32.gmra.mxu0 %v4704
      %v4826 = vpop.f32.mrf.mxu0
      %v4827 = vadd.f32 0.0, %v4826
      %v4828 = vpop.f32.mrf.mxu0
      %4829 = vmatprep.mubr.f32.mxu0 0.0
      %4830 = vmatmul.mubr.f32.gmra.mxu0 %v4707
      %v4831 = vpop.f32.mrf.mxu0
      %v4832 = vadd.f32 0.0, %v4831
      %v4833 = vpop.f32.mrf.mxu0
      %4834 = vmatprep.mubr.f32.mxu0 0.0
      %4835 = vmatmul.mubr.f32.gmra.mxu0 %v4710
      %v4836 = vpop.f32.mrf.mxu0
      %v4837 = vadd.f32 0.0, %v4836
      %v4838 = vpop.f32.mrf.mxu0
      %4839 = vmatprep.mubr.f32.mxu0 0.0
      %4840 = vmatmul.mubr.f32.gmra.mxu0 %v4713
      %v4841 = vpop.f32.mrf.mxu0
      %v4842 = vadd.f32 0.0, %v4841
      %v4843 = vpop.f32.mrf.mxu0
      %4844 = vmatprep.mubr.f32.mxu0 0.0
      %4845 = vmatmul.mubr.f32.gmra.mxu0 %v4716
      %v4846 = vpop.f32.mrf.mxu0
      %v4847 = vadd.f32 0.0, %v4846
      %v4848 = vpop.f32.mrf.mxu0
      %4849 = vmatprep.mubr.f32.mxu0 0.0
      %4850 = vmatmul.mubr.f32.gmra.mxu0 %v4719
      %v4851 = vpop.f32.mrf.mxu0
      %v4852 = vadd.f32 0.0, %v4851
      %v4853 = vpop.f32.mrf.mxu0
      %4854 = vmatprep.mubr.f32.mxu0 0.0
      %4855 = vmatmul.mubr.f32.gmra.mxu0 %v4722
      %v4856 = vpop.f32.mrf.mxu0
      %v4857 = vadd.f32 0.0, %v4856
      %v4858 = vpop.f32.mrf.mxu0
      %4859 = vmatprep.mubr.f32.mxu0 0.0
      %4860 = vmatmul.mubr.f32.gmra.mxu0 %v4725
      %v4861 = vpop.f32.mrf.mxu0
      %v4862 = vadd.f32 0.0, %v4861
      %v4863 = vpop.f32.mrf.mxu0
      %4864 = vmatprep.mubr.f32.mxu0 0.0
      %4865 = vmatmul.mubr.f32.gmra.mxu0 %v4728
      %v4866 = vpop.f32.mrf.mxu0
      %v4867 = vadd.f32 0.0, %v4866
      %v4868 = vpop.f32.mrf.mxu0
      %4869 = vmatprep.mubr.f32.mxu0 0.0
      %4870 = vmatmul.mubr.f32.gmra.mxu0 %v4731
      %v4871 = vpop.f32.mrf.mxu0
      %v4872 = vadd.f32 0.0, %v4871
      %v4873 = vpop.f32.mrf.mxu0
      %4874 = vmatprep.mubr.f32.mxu0 0.0
      %4875 = vmatmul.mubr.f32.gmra.mxu0 %v4734
      %v4876 = vpop.f32.mrf.mxu0
      %v4877 = vadd.f32 0.0, %v4876
      %v4878 = vpop.f32.mrf.mxu0
      %4879 = vmatprep.mubr.f32.mxu0 0.0
      %4880 = vmatmul.mubr.f32.gmra.mxu0 %v4737
      %v4881 = vpop.f32.mrf.mxu0
      %v4882 = vadd.f32 0.0, %v4881
      %v4883 = vpop.f32.mrf.mxu0
      %4884 = vmatprep.mubr.f32.mxu0 0.0
      %4885 = vmatmul.mubr.f32.gmra.mxu0 %v4740
      %v4886 = vpop.f32.mrf.mxu0
      %v4887 = vadd.f32 0.0, %v4886
      %v4888 = vpop.f32.mrf.mxu0
      %4889 = vdwg.mxu0
      %v4890 = vld [vmem:[%s4] sm:$0x1]
      %v4892 = vlaneseq
      %v4893 = vshrl.u32 %v4892, 7
      %v4894 = vsub.s32 0, %v4893
      %v4895 = vrot.slane %v4890, %v4894
      %v4897 = vadd.f32 %v4812, %v4895
      %v4898 = vadd.f32 %v4817, %v4895
      %v4899 = vadd.f32 %v4822, %v4895
      %v4900 = vadd.f32 %v4827, %v4895
      %v4901 = vadd.f32 %v4832, %v4895
      %v4902 = vadd.f32 %v4837, %v4895
      %v4903 = vadd.f32 %v4842, %v4895
      %v4904 = vadd.f32 %v4847, %v4895
      %v4905 = vadd.f32 %v4852, %v4895
      %v4906 = vadd.f32 %v4857, %v4895
      %v4907 = vadd.f32 %v4862, %v4895
      %v4908 = vadd.f32 %v4867, %v4895
      %v4909 = vadd.f32 %v4872, %v4895
      %v4910 = vadd.f32 %v4877, %v4895
      %v4911 = vadd.f32 %v4882, %v4895
      %v4912 = vadd.f32 %v4887, %v4895
      %s4913 = smul.u32 %s250, 16
      %s4914 = scalar_lea.vmem %s238, %s4913
      %v4915 = vld [vmem:[%s4914] sm:$0xff]
      %v4916 = vld [vmem:[%s4914 + $0x8] sm:$0xff]
      %v4917 = vld [vmem:[%s4914 + $0x10] sm:$0xff]
      %v4918 = vld [vmem:[%s4914 + $0x18] sm:$0xff]
      %v4919 = vld [vmem:[%s4914 + $0x20] sm:$0xff]
      %v4920 = vld [vmem:[%s4914 + $0x28] sm:$0xff]
      %v4921 = vld [vmem:[%s4914 + $0x30] sm:$0xff]
      %v4922 = vld [vmem:[%s4914 + $0x38] sm:$0xff]
      %v4923 = vld [vmem:[%s4914 + $0x40] sm:$0xff]
      %v4924 = vld [vmem:[%s4914 + $0x48] sm:$0xff]
      %v4925 = vld [vmem:[%s4914 + $0x50] sm:$0xff]
      %v4926 = vld [vmem:[%s4914 + $0x58] sm:$0xff]
      %v4927 = vld [vmem:[%s4914 + $0x60] sm:$0xff]
      %v4928 = vld [vmem:[%s4914 + $0x68] sm:$0xff]
      %v4929 = vld [vmem:[%s4914 + $0x70] sm:$0xff]
      %v4930 = vld [vmem:[%s4914 + $0x78] sm:$0xff]
      %v4931 = vadd.f32 %v4897, %v4915
      %v4932 = vadd.f32 %v4898, %v4916
      %v4933 = vadd.f32 %v4899, %v4917
      %v4934 = vadd.f32 %v4900, %v4918
      %v4935 = vadd.f32 %v4901, %v4919
      %v4936 = vadd.f32 %v4902, %v4920
      %v4937 = vadd.f32 %v4903, %v4921
      %v4938 = vadd.f32 %v4904, %v4922
      %v4939 = vadd.f32 %v4905, %v4923
      %v4940 = vadd.f32 %v4906, %v4924
      %v4941 = vadd.f32 %v4907, %v4925
      %v4942 = vadd.f32 %v4908, %v4926
      %v4943 = vadd.f32 %v4909, %v4927
      %v4944 = vadd.f32 %v4910, %v4928
      %v4945 = vadd.f32 %v4911, %v4929
      %v4946 = vadd.f32 %v4912, %v4930
      %4947 = vst.msk [vmem:[%s248] sm:$0xff] %vm1617, %v4931
      %4948 = vst.msk [vmem:[%s248 + $0x8] sm:$0xff] %vm1617, %v4932
      %4949 = vst.msk [vmem:[%s248 + $0x10] sm:$0xff] %vm1617, %v4933
      %4950 = vst.msk [vmem:[%s248 + $0x18] sm:$0xff] %vm1617, %v4934
      %4951 = vst.msk [vmem:[%s248 + $0x20] sm:$0xff] %vm1617, %v4935
      %4952 = vst.msk [vmem:[%s248 + $0x28] sm:$0xff] %vm1617, %v4936
      %4953 = vst.msk [vmem:[%s248 + $0x30] sm:$0xff] %vm1617, %v4937
      %4954 = vst.msk [vmem:[%s248 + $0x38] sm:$0xff] %vm1617, %v4938
      %4955 = vst.msk [vmem:[%s248 + $0x40] sm:$0xff] %vm1617, %v4939
      %4956 = vst.msk [vmem:[%s248 + $0x48] sm:$0xff] %vm1617, %v4940
      %4957 = vst.msk [vmem:[%s248 + $0x50] sm:$0xff] %vm1617, %v4941
      %4958 = vst.msk [vmem:[%s248 + $0x58] sm:$0xff] %vm1617, %v4942
      %4959 = vst.msk [vmem:[%s248 + $0x60] sm:$0xff] %vm1617, %v4943
      %4960 = vst.msk [vmem:[%s248 + $0x68] sm:$0xff] %vm1617, %v4944
      %4961 = vst.msk [vmem:[%s248 + $0x70] sm:$0xff] %vm1617, %v4945
      %4962 = vst.msk [vmem:[%s248 + $0x78] sm:$0xff] %vm1617, %v4946
      %s4963 = smul.u32 8, %s21
      %p4964 = scmp.lt.s32.totalorder %s20, 1
      %s4965 = scalar_select %p4964, %s20, 1
      %p4966 = scmp.lt.s32.totalorder %s4963, 15
      %s4967 = scalar_select %p4966, %s4963, 15
      %s4968 = smul.addr %s4967, 2
      %s4969 = smul.addr %s4965, 32
      %s4970 = sadd.s32 %s4968, %s4969
      %s4971 = smul.addr %s4970, 8
      %s4972 = scalar_lea.vmem %s5, %s4971
      // Predicated region
      $region49: #{tpu_custom_call.1} parent=39 // pred_check
        %p4973 = pneg %p158
      $region50: #{tpu_custom_call.1} parent=39 // pred_check_branch
        %4975 = sbr.rel (%p4973) target = $region52
      $region51: #{tpu_custom_call.1} parent=39 // pred_region
        %s4976 = smul.u32 8, %s21
      $region52: #{tpu_custom_call.1} parent=39 // pred_fallthru
        _
    $region40: #{tpu_custom_call.1} parent=5 // pred_fallthru
      _
    %p4977 = scmp.le.s32.totalorder 2, %s11
    // Predicated region
    $region53: #{tpu_custom_call.1} parent=5 // pred_check
      %p4978 = pneg %p4977
    $region54: #{tpu_custom_call.1} parent=5 // pred_check_branch
      %4980 = sbr.rel (%p4978) target = $region56
    $region55: #{tpu_custom_call.1} parent=5 // pred_region
      %s4981 = ssub.s32 %s11, 2
      // Predicated region
      $region57: #{tpu_custom_call.1} parent=55 // pred_check
        %p4982 = pneg %p164
      $region58: #{tpu_custom_call.1} parent=55 // pred_check_branch
        %4984 = sbr.rel (%p4982) target = $region60
      $region59: #{tpu_custom_call.1} parent=55 // pred_region
        %s4985 = smul.u32 8, %s23
        %p4986 = scmp.lt.s32.totalorder %s22, 1
        %s4987 = scalar_select %p4986, %s22, 1
        %p4988 = scmp.lt.s32.totalorder %s4985, 15
        %s4989 = scalar_select %p4988, %s4985, 15
        %s4990 = smul.addr %s4989, 2
        %s4991 = smul.addr %s4987, 32
        %s4992 = sadd.s32 %s4990, %s4991
        %s4993 = smul.addr %s4992, 8
        %s4994 = scalar_lea.vmem %s5, %s4993
      $region60: #{tpu_custom_call.1} parent=55 // pred_fallthru
        _
    $region56: #{tpu_custom_call.1} parent=5 // pred_fallthru
      _
  $region6: #{tpu_custom_call.1} parent=0 // loop_footer
    %s15 = sadd.s32 1, %s11
  $region7: #{tpu_custom_call.1} parent=0 // loop_footer_branch
    %10 = sbr.rel target = $region3
  $region8: #{tpu_custom_call.1} parent=0 // loop_exit
    _

</llo_original>
